<compile_context>
chip_gen: v7x
topology: tpu7x:2x2x1
jax: 0.10.0
libtpu: 0.0.40
codegen_flags: <defaults>
</compile_context>

<pallas_src>
import math
import jax
import jax.numpy as jnp
from jax import lax
from jax.experimental import pallas as pl

# ---------------- model dims (small, synthetic) ----------------
D_MODEL = 32
H = 4
D_K = D_MODEL // H
D_FF = 64
B = 2
LQ = 8      # target sequence length
LK = 8      # source (memory) sequence length
EPS = 1e-6
NEG_INF = -1e9

# MXU operand dtype (bf16 single-pass on v6e/v7x; set to jnp.float32 for
# exact-f32 reference parity).
MXU_DTYPE = jnp.bfloat16

# ---------------- parameter-slab row offsets (lane width = 128) ----------------
R_WSA = 0            # (32,128) [sa_wq | sa_wk | sa_wv | sa_wo]
R_WCA = 32           # (32,128) [ca_wq | ca_wk | ca_wv | ca_wo]
R_WFF1 = 64          # (32,128) [ff_w1 (64) | zeros]
R_WFF2 = 96          # (64,128) [ff_w2 (32) | zeros]
R_VEC = 160          # ( 8,128) biases / LN params (see _pack_params)
R_TGTB = 168         # (16,128) tgt additive score bias (B*LQ, LQ) lane-padded
R_SRCB = 184         # (16,128) src additive score bias (B*LQ, LK) lane-padded
SLAB_ROWS = 200


# ---------------- fused Pallas kernel ----------------
def _decoder_layer_kernel(x_ref, m_ref, slab_ref, o_ref):
    scale = jnp.float32(1.0 / math.sqrt(D_K))

    # ---- one small load of all vector params (biases / LN) ----
    vec = slab_ref[R_VEC:R_VEC + 8, :]            # (8,128) f32
    b_sa = vec[0:1, :]                            # [bq|bk|bv|bo] self-attn
    b_ca = vec[1:2, :]                            # [bq|bk|bv|bo] src-attn
    b_ff = vec[2:3, :]                            # [ff_b1(64)|ff_b2(32)|0]
    ln_a = vec[3:4, :]                            # [ln0_a|ln1_a|ln2_a|0]
    ln_b = vec[4:5, :]                            # [ln0_b|ln1_b|ln2_b|0]

    # ---- weight blocks (cast once to MXU dtype) ----
    w_sa = slab_ref[R_WSA:R_WSA + D_MODEL, :].astype(MXU_DTYPE)       # (32,128)
    w_ca = slab_ref[R_WCA:R_WCA + D_MODEL, :].astype(MXU_DTYPE)       # (32,128)
    w_ff1 = slab_ref[R_WFF1:R_WFF1 + D_MODEL, :].astype(MXU_DTYPE)    # (32,128)
    w_ff2 = slab_ref[R_WFF2:R_WFF2 + D_FF, :].astype(MXU_DTYPE)       # (64,128)

    x = x_ref[...]                                # (B*LQ, D) f32
    m = m_ref[...]                                # (B*LK, D) f32

    def add_layernorm(res, s, a, b):
        # res + (a * (s - mean(s)) / (std(s, ddof=1) + eps) + b)   [torch .std()]
        mean = jnp.sum(s, axis=-1, keepdims=True) * jnp.float32(1.0 / D_MODEL)
        cen = s - mean
        var = jnp.sum(cen * cen, axis=-1, keepdims=True) * jnp.float32(
            1.0 / (D_MODEL - 1))
        inv = pl.reciprocal(jnp.sqrt(var) + jnp.float32(EPS), approx=True)
        return res + (a * cen * inv + b)

    def attention(q, k, v, bias_row0, lq, lk):
        # q: (B*lq, D) f32, k/v: (B*lk, D) f32; heads packed along lanes.
        # phase (a): issue all B*H qk^T matmuls
        scores = []
        for b in range(B):
            for h in range(H):
                qh = q[b * lq:(b + 1) * lq, h * D_K:(h + 1) * D_K].astype(MXU_DTYPE)
                kh = k[b * lk:(b + 1) * lk, h * D_K:(h + 1) * D_K].astype(MXU_DTYPE)
                scores.append(lax.dot_general(                        # q @ k.T
                    qh, kh, (((1,), (1,)), ((), ())),
                    preferred_element_type=jnp.float32))
        # per-(batch,head) additive bias rows, read from the slab
        bias_b = [slab_ref[bias_row0 + b * lq:bias_row0 + (b + 1) * lq, :][:, 0:lk]
                  for b in range(B)]
        bias_all = jnp.concatenate(
            [bias_b[b] for b in range(B) for _ in range(H)], axis=0)  # (B*H*lq, lk)

        # phase (b): ONE stacked softmax (single max/exp/sum/reciprocal chain)
        s_all = jnp.concatenate(scores, axis=0) * scale + bias_all
        s_all = s_all - jnp.max(s_all, axis=-1, keepdims=True)
        p_all = jnp.exp(s_all)
        p_all = p_all * pl.reciprocal(
            jnp.sum(p_all, axis=-1, keepdims=True), approx=True)

        # phase (c): all B*H p@v matmuls; context assembled in vregs (no scratch)
        ctx_rows = []
        for b in range(B):
            heads = []
            for h in range(H):
                i = b * H + h
                pj = p_all[i * lq:(i + 1) * lq, :].astype(MXU_DTYPE)
                vh = v[b * lk:(b + 1) * lk, h * D_K:(h + 1) * D_K].astype(MXU_DTYPE)
                heads.append(jnp.dot(pj, vh, preferred_element_type=jnp.float32))
            ctx_rows.append(jnp.concatenate(heads, axis=1))           # (lq, D)
        return jnp.concatenate(ctx_rows, axis=0)                      # (B*lq, D)

    # ---- sublayer 0: self-attention ----
    qkvo = jnp.dot(x.astype(MXU_DTYPE), w_sa,
                   preferred_element_type=jnp.float32) + b_sa         # (B*LQ,128)
    ctx0 = attention(qkvo[:, 0:D_MODEL],
                     qkvo[:, D_MODEL:2 * D_MODEL],
                     qkvo[:, 2 * D_MODEL:3 * D_MODEL],
                     R_TGTB, LQ, LQ)
    s0 = (jnp.dot(ctx0.astype(MXU_DTYPE), w_sa,
                  preferred_element_type=jnp.float32)[:, 3 * D_MODEL:]
          + b_sa[:, 3 * D_MODEL:])
    x1 = add_layernorm(x, s0, ln_a[:, 0:D_MODEL], ln_b[:, 0:D_MODEL])

    # ---- sublayer 1: src-attention ----
    q1 = jnp.dot(x1.astype(MXU_DTYPE), w_ca,
                 preferred_element_type=jnp.float32) + b_ca           # (B*LQ,128)
    kv = jnp.dot(m.astype(MXU_DTYPE), w_ca,
                 preferred_element_type=jnp.float32) + b_ca           # (B*LK,128)
    ctx1 = attention(q1[:, 0:D_MODEL],
                     kv[:, D_MODEL:2 * D_MODEL],
                     kv[:, 2 * D_MODEL:3 * D_MODEL],
                     R_SRCB, LQ, LK)
    s1 = (jnp.dot(ctx1.astype(MXU_DTYPE), w_ca,
                  preferred_element_type=jnp.float32)[:, 3 * D_MODEL:]
          + b_ca[:, 3 * D_MODEL:])
    x2 = add_layernorm(x1, s1, ln_a[:, D_MODEL:2 * D_MODEL],
                       ln_b[:, D_MODEL:2 * D_MODEL])

    # ---- sublayer 2: feed-forward ----
    h_full = jnp.dot(x2.astype(MXU_DTYPE), w_ff1,
                     preferred_element_type=jnp.float32) + b_ff       # (B*LQ,128)
    h1 = jnp.maximum(h_full[:, 0:D_FF], jnp.float32(0.0))
    s2 = (jnp.dot(h1.astype(MXU_DTYPE), w_ff2,
                  preferred_element_type=jnp.float32)[:, 0:D_MODEL]
          + b_ff[:, D_FF:D_FF + D_MODEL])
    x3 = add_layernorm(x2, s2, ln_a[:, 2 * D_MODEL:3 * D_MODEL],
                       ln_b[:, 2 * D_MODEL:3 * D_MODEL])

    o_ref[...] = x3.astype(o_ref.dtype)


# ---------------- wrapper ----------------
def _pack_params(params, tgt_bias, src_bias):
    """Pack every parameter + additive mask bias into one (SLAB_ROWS,128) slab."""
    sa, ca = params["self_attn"], params["src_attn"]

    def pad_lanes(a):
        return jnp.pad(a, ((0, 0), (0, 128 - a.shape[1])))

    w_sa = jnp.concatenate([sa["wq"], sa["wk"], sa["wv"], sa["wo"]], axis=1)   # (32,128)
    w_ca = jnp.concatenate([ca["wq"], ca["wk"], ca["wv"], ca["wo"]], axis=1)   # (32,128)
    w_ff1 = pad_lanes(params["ff_w1"])                                         # (32,128)
    w_ff2 = pad_lanes(params["ff_w2"])                                         # (64,128)

    z32 = jnp.zeros((D_MODEL,), jnp.float32)
    b_sa = jnp.concatenate([sa["bq"], sa["bk"], sa["bv"], sa["bo"]]).reshape(1, 128)
    b_ca = jnp.concatenate([ca["bq"], ca["bk"], ca["bv"], ca["bo"]]).reshape(1, 128)
    b_ff = jnp.concatenate([params["ff_b1"], params["ff_b2"], z32]).reshape(1, 128)
    ln_a = jnp.concatenate([params["ln0_a"], params["ln1_a"],
                            params["ln2_a"], z32]).reshape(1, 128)
    ln_b = jnp.concatenate([params["ln0_b"], params["ln1_b"],
                            params["ln2_b"], z32]).reshape(1, 128)
    vec = jnp.concatenate([b_sa, b_ca, b_ff, ln_a, ln_b,
                           jnp.zeros((3, 128), jnp.float32)], axis=0)          # (8,128)

    tgt_rows = pad_lanes(tgt_bias.reshape(B * LQ, LQ))                         # (16,128)
    src_rows = pad_lanes(src_bias.reshape(B * LQ, LK))                         # (16,128)

    slab = jnp.concatenate([w_sa, w_ca, w_ff1, w_ff2, vec, tgt_rows, src_rows],
                           axis=0)
    assert slab.shape == (SLAB_ROWS, 128)
    return slab


def decoder_layer(x, memory, src_mask, tgt_mask, params):
    # TODO(synk): nn.Dropout is identity in eval mode; training-mode dropout not modeled.
    bsz, lq, d = x.shape
    lk = memory.shape[1]

    # Masks -> additive score biases (0 keep / -1e9 drop), one per batch row.
    tgt_bias = jnp.where(
        jnp.broadcast_to(tgt_mask, (bsz, 1, lq, lq))[:, 0] == 0,
        jnp.float32(NEG_INF), jnp.float32(0.0))
    src_bias = jnp.where(
        jnp.broadcast_to(src_mask, (bsz, 1, lq, lk))[:, 0] == 0,
        jnp.float32(NEG_INF), jnp.float32(0.0))

    slab = _pack_params(params, tgt_bias, src_bias)

    out = pl.pallas_call(
        _decoder_layer_kernel,
        out_shape=jax.ShapeDtypeStruct((bsz * lq, d), jnp.float32),
    )(x.reshape(bsz * lq, d), memory.reshape(bsz * lk, d), slab)
    return out.reshape(bsz, lq, d)


# ---------------- params ----------------
def init_params(key):
    def lin(k, din, dout):
        kw, kb = jax.random.split(k)
        return (jax.random.normal(kw, (din, dout), jnp.float32) * 0.05,
                jax.random.normal(kb, (dout,), jnp.float32) * 0.05)

    keys = jax.random.split(key, 10)

    def attn_params(k):
        k0, k1, k2, k3 = jax.random.split(k, 4)
        wq, bq = lin(k0, D_MODEL, D_MODEL)
        wk, bk = lin(k1, D_MODEL, D_MODEL)
        wv, bv = lin(k2, D_MODEL, D_MODEL)
        wo, bo = lin(k3, D_MODEL, D_MODEL)
        return dict(wq=wq, bq=bq, wk=wk, bk=bk, wv=wv, bv=bv, wo=wo, bo=bo)

    w1, b1 = lin(keys[2], D_MODEL, D_FF)
    w2, b2 = lin(keys[3], D_FF, D_MODEL)
    return dict(
        self_attn=attn_params(keys[0]),
        src_attn=attn_params(keys[1]),
        ff_w1=w1, ff_b1=b1, ff_w2=w2, ff_b2=b2,
        ln0_a=jnp.ones((D_MODEL,), jnp.float32), ln0_b=jnp.zeros((D_MODEL,), jnp.float32),
        ln1_a=jnp.ones((D_MODEL,), jnp.float32), ln1_b=jnp.zeros((D_MODEL,), jnp.float32),
        ln2_a=jnp.ones((D_MODEL,), jnp.float32), ln2_b=jnp.zeros((D_MODEL,), jnp.float32),
    )


if __name__ == "__main__":
    key = jax.random.PRNGKey(0)
    k_x, k_m, k_p = jax.random.split(key, 3)

    x = jax.random.normal(k_x, (B, LQ, D_MODEL), jnp.float32)
    memory = jax.random.normal(k_m, (B, LK, D_MODEL), jnp.float32)

    # tgt_mask: causal (subsequent) mask (1,1,LQ,LQ); src_mask: all-ones (B,1,1,LK)
    tgt_mask = jnp.tril(jnp.ones((LQ, LQ), jnp.float32)).reshape(1, 1, LQ, LQ)
    src_mask = jnp.ones((B, 1, 1, LK), jnp.float32)

    params = init_params(k_p)

    decoder = jax.jit(decoder_layer)
    out = decoder(x, memory, src_mask, tgt_mask, params)
    out = jax.block_until_ready(out)
    assert out.shape == (B, LQ, D_MODEL)
    assert bool(jnp.all(jnp.isfinite(out)))
    print("KERNEL_OK")
</pallas_src>

<mosaic_0001>
module attributes {stable_mosaic.version = 11 : i64} {
  func.func @_decoder_layer_kernel(%arg0: memref<16x32xf32, #tpu.memory_space<vmem>>, %arg1: memref<16x32xf32, #tpu.memory_space<vmem>>, %arg2: memref<200x128xf32, #tpu.memory_space<vmem>>, %arg3: memref<16x32xf32, #tpu.memory_space<vmem>>) attributes {dimension_semantics = [], scalar_prefetch = 0 : i64, scratch_operands = 0 : i64, tpu.core_type = #tpu.core_type<tc>} {
    %c160 = arith.constant 160 : index
    %c0 = arith.constant 0 : index
    %0 = vector.load %arg2[%c160, %c0] : memref<200x128xf32, #tpu.memory_space<vmem>>, vector<8x128xf32>
    %1 = vector.extract_strided_slice %0 {offsets = [0, 0], sizes = [1, 128], strides = [1, 1]} : vector<8x128xf32> to vector<1x128xf32>
    %2 = vector.extract_strided_slice %0 {offsets = [1, 0], sizes = [1, 128], strides = [1, 1]} : vector<8x128xf32> to vector<1x128xf32>
    %3 = vector.extract_strided_slice %0 {offsets = [2, 0], sizes = [1, 128], strides = [1, 1]} : vector<8x128xf32> to vector<1x128xf32>
    %4 = vector.extract_strided_slice %0 {offsets = [3, 0], sizes = [1, 128], strides = [1, 1]} : vector<8x128xf32> to vector<1x128xf32>
    %5 = vector.extract_strided_slice %0 {offsets = [4, 0], sizes = [1, 128], strides = [1, 1]} : vector<8x128xf32> to vector<1x128xf32>
    %c0_0 = arith.constant 0 : index
    %c0_1 = arith.constant 0 : index
    %6 = vector.load %arg2[%c0_0, %c0_1] : memref<200x128xf32, #tpu.memory_space<vmem>>, vector<32x128xf32>
    %7 = arith.truncf %6 : vector<32x128xf32> to vector<32x128xbf16>
    %c32 = arith.constant 32 : index
    %c0_2 = arith.constant 0 : index
    %8 = vector.load %arg2[%c32, %c0_2] : memref<200x128xf32, #tpu.memory_space<vmem>>, vector<32x128xf32>
    %9 = arith.truncf %8 : vector<32x128xf32> to vector<32x128xbf16>
    %c64 = arith.constant 64 : index
    %c0_3 = arith.constant 0 : index
    %10 = vector.load %arg2[%c64, %c0_3] : memref<200x128xf32, #tpu.memory_space<vmem>>, vector<32x128xf32>
    %11 = arith.truncf %10 : vector<32x128xf32> to vector<32x128xbf16>
    %c96 = arith.constant 96 : index
    %c0_4 = arith.constant 0 : index
    %12 = vector.load %arg2[%c96, %c0_4] : memref<200x128xf32, #tpu.memory_space<vmem>>, vector<64x128xf32>
    %13 = arith.truncf %12 : vector<64x128xf32> to vector<64x128xbf16>
    %c0_5 = arith.constant 0 : index
    %c0_6 = arith.constant 0 : index
    %14 = vector.load %arg0[%c0_5, %c0_6] : memref<16x32xf32, #tpu.memory_space<vmem>>, vector<16x32xf32>
    %c0_7 = arith.constant 0 : index
    %c0_8 = arith.constant 0 : index
    %15 = vector.load %arg1[%c0_7, %c0_8] : memref<16x32xf32, #tpu.memory_space<vmem>>, vector<16x32xf32>
    %16 = arith.truncf %14 : vector<16x32xf32> to vector<16x32xbf16>
    %cst = arith.constant dense<0.000000e+00> : vector<16x128xf32>
    %17 = tpu.matmul %16, %7, %cst {dimension_numbers = #tpu.dot_dimension_numbers<[1], [0], [0], [1], [0, 0, 1, 1], [], []>} : vector<16x32xbf16>, vector<32x128xbf16>, vector<16x128xf32> -> vector<16x128xf32>
    %18 = vector.broadcast %1 : vector<1x128xf32> to vector<16x128xf32>
    %19 = arith.addf %17, %18 : vector<16x128xf32>
    %20 = vector.extract_strided_slice %19 {offsets = [0, 0], sizes = [16, 32], strides = [1, 1]} : vector<16x128xf32> to vector<16x32xf32>
    %21 = vector.extract_strided_slice %19 {offsets = [0, 32], sizes = [16, 32], strides = [1, 1]} : vector<16x128xf32> to vector<16x32xf32>
    %22 = vector.extract_strided_slice %19 {offsets = [0, 64], sizes = [16, 32], strides = [1, 1]} : vector<16x128xf32> to vector<16x32xf32>
    %23 = vector.extract_strided_slice %20 {offsets = [0, 0], sizes = [8, 8], strides = [1, 1]} : vector<16x32xf32> to vector<8x8xf32>
    %24 = arith.truncf %23 : vector<8x8xf32> to vector<8x8xbf16>
    %25 = vector.extract_strided_slice %21 {offsets = [0, 0], sizes = [8, 8], strides = [1, 1]} : vector<16x32xf32> to vector<8x8xf32>
    %26 = arith.truncf %25 : vector<8x8xf32> to vector<8x8xbf16>
    %cst_9 = arith.constant dense<0.000000e+00> : vector<8x8xf32>
    %27 = tpu.matmul %24, %26, %cst_9 {dimension_numbers = #tpu.dot_dimension_numbers<[1], [1], [0], [0], [0, 0, 1, 0], [], []>} : vector<8x8xbf16>, vector<8x8xbf16>, vector<8x8xf32> -> vector<8x8xf32>
    %28 = vector.extract_strided_slice %20 {offsets = [0, 8], sizes = [8, 8], strides = [1, 1]} : vector<16x32xf32> to vector<8x8xf32>
    %29 = arith.truncf %28 : vector<8x8xf32> to vector<8x8xbf16>
    %30 = vector.extract_strided_slice %21 {offsets = [0, 8], sizes = [8, 8], strides = [1, 1]} : vector<16x32xf32> to vector<8x8xf32>
    %31 = arith.truncf %30 : vector<8x8xf32> to vector<8x8xbf16>
    %cst_10 = arith.constant dense<0.000000e+00> : vector<8x8xf32>
    %32 = tpu.matmul %29, %31, %cst_10 {dimension_numbers = #tpu.dot_dimension_numbers<[1], [1], [0], [0], [0, 0, 1, 0], [], []>} : vector<8x8xbf16>, vector<8x8xbf16>, vector<8x8xf32> -> vector<8x8xf32>
    %33 = vector.extract_strided_slice %20 {offsets = [0, 16], sizes = [8, 8], strides = [1, 1]} : vector<16x32xf32> to vector<8x8xf32>
    %34 = arith.truncf %33 : vector<8x8xf32> to vector<8x8xbf16>
    %35 = vector.extract_strided_slice %21 {offsets = [0, 16], sizes = [8, 8], strides = [1, 1]} : vector<16x32xf32> to vector<8x8xf32>
    %36 = arith.truncf %35 : vector<8x8xf32> to vector<8x8xbf16>
    %cst_11 = arith.constant dense<0.000000e+00> : vector<8x8xf32>
    %37 = tpu.matmul %34, %36, %cst_11 {dimension_numbers = #tpu.dot_dimension_numbers<[1], [1], [0], [0], [0, 0, 1, 0], [], []>} : vector<8x8xbf16>, vector<8x8xbf16>, vector<8x8xf32> -> vector<8x8xf32>
    %38 = vector.extract_strided_slice %20 {offsets = [0, 24], sizes = [8, 8], strides = [1, 1]} : vector<16x32xf32> to vector<8x8xf32>
    %39 = arith.truncf %38 : vector<8x8xf32> to vector<8x8xbf16>
    %40 = vector.extract_strided_slice %21 {offsets = [0, 24], sizes = [8, 8], strides = [1, 1]} : vector<16x32xf32> to vector<8x8xf32>
    %41 = arith.truncf %40 : vector<8x8xf32> to vector<8x8xbf16>
    %cst_12 = arith.constant dense<0.000000e+00> : vector<8x8xf32>
    %42 = tpu.matmul %39, %41, %cst_12 {dimension_numbers = #tpu.dot_dimension_numbers<[1], [1], [0], [0], [0, 0, 1, 0], [], []>} : vector<8x8xbf16>, vector<8x8xbf16>, vector<8x8xf32> -> vector<8x8xf32>
    %43 = vector.extract_strided_slice %20 {offsets = [8, 0], sizes = [8, 8], strides = [1, 1]} : vector<16x32xf32> to vector<8x8xf32>
    %44 = arith.truncf %43 : vector<8x8xf32> to vector<8x8xbf16>
    %45 = vector.extract_strided_slice %21 {offsets = [8, 0], sizes = [8, 8], strides = [1, 1]} : vector<16x32xf32> to vector<8x8xf32>
    %46 = arith.truncf %45 : vector<8x8xf32> to vector<8x8xbf16>
    %cst_13 = arith.constant dense<0.000000e+00> : vector<8x8xf32>
    %47 = tpu.matmul %44, %46, %cst_13 {dimension_numbers = #tpu.dot_dimension_numbers<[1], [1], [0], [0], [0, 0, 1, 0], [], []>} : vector<8x8xbf16>, vector<8x8xbf16>, vector<8x8xf32> -> vector<8x8xf32>
    %48 = vector.extract_strided_slice %20 {offsets = [8, 8], sizes = [8, 8], strides = [1, 1]} : vector<16x32xf32> to vector<8x8xf32>
    %49 = arith.truncf %48 : vector<8x8xf32> to vector<8x8xbf16>
    %50 = vector.extract_strided_slice %21 {offsets = [8, 8], sizes = [8, 8], strides = [1, 1]} : vector<16x32xf32> to vector<8x8xf32>
    %51 = arith.truncf %50 : vector<8x8xf32> to vector<8x8xbf16>
    %cst_14 = arith.constant dense<0.000000e+00> : vector<8x8xf32>
    %52 = tpu.matmul %49, %51, %cst_14 {dimension_numbers = #tpu.dot_dimension_numbers<[1], [1], [0], [0], [0, 0, 1, 0], [], []>} : vector<8x8xbf16>, vector<8x8xbf16>, vector<8x8xf32> -> vector<8x8xf32>
    %53 = vector.extract_strided_slice %20 {offsets = [8, 16], sizes = [8, 8], strides = [1, 1]} : vector<16x32xf32> to vector<8x8xf32>
    %54 = arith.truncf %53 : vector<8x8xf32> to vector<8x8xbf16>
    %55 = vector.extract_strided_slice %21 {offsets = [8, 16], sizes = [8, 8], strides = [1, 1]} : vector<16x32xf32> to vector<8x8xf32>
    %56 = arith.truncf %55 : vector<8x8xf32> to vector<8x8xbf16>
    %cst_15 = arith.constant dense<0.000000e+00> : vector<8x8xf32>
    %57 = tpu.matmul %54, %56, %cst_15 {dimension_numbers = #tpu.dot_dimension_numbers<[1], [1], [0], [0], [0, 0, 1, 0], [], []>} : vector<8x8xbf16>, vector<8x8xbf16>, vector<8x8xf32> -> vector<8x8xf32>
    %58 = vector.extract_strided_slice %20 {offsets = [8, 24], sizes = [8, 8], strides = [1, 1]} : vector<16x32xf32> to vector<8x8xf32>
    %59 = arith.truncf %58 : vector<8x8xf32> to vector<8x8xbf16>
    %60 = vector.extract_strided_slice %21 {offsets = [8, 24], sizes = [8, 8], strides = [1, 1]} : vector<16x32xf32> to vector<8x8xf32>
    %61 = arith.truncf %60 : vector<8x8xf32> to vector<8x8xbf16>
    %cst_16 = arith.constant dense<0.000000e+00> : vector<8x8xf32>
    %62 = tpu.matmul %59, %61, %cst_16 {dimension_numbers = #tpu.dot_dimension_numbers<[1], [1], [0], [0], [0, 0, 1, 0], [], []>} : vector<8x8xbf16>, vector<8x8xbf16>, vector<8x8xf32> -> vector<8x8xf32>
    %c168 = arith.constant 168 : index
    %c0_17 = arith.constant 0 : index
    %63 = vector.load %arg2[%c168, %c0_17] : memref<200x128xf32, #tpu.memory_space<vmem>>, vector<8x128xf32>
    %64 = vector.extract_strided_slice %63 {offsets = [0, 0], sizes = [8, 8], strides = [1, 1]} : vector<8x128xf32> to vector<8x8xf32>
    %c176 = arith.constant 176 : index
    %c0_18 = arith.constant 0 : index
    %65 = vector.load %arg2[%c176, %c0_18] : memref<200x128xf32, #tpu.memory_space<vmem>>, vector<8x128xf32>
    %66 = vector.extract_strided_slice %65 {offsets = [0, 0], sizes = [8, 8], strides = [1, 1]} : vector<8x128xf32> to vector<8x8xf32>
    %67 = tpu.concatenate %64, %64, %64, %64, %66, %66, %66, %66 in 0 : vector<8x8xf32>, vector<8x8xf32>, vector<8x8xf32>, vector<8x8xf32>, vector<8x8xf32>, vector<8x8xf32>, vector<8x8xf32>, vector<8x8xf32> -> vector<64x8xf32>
    %68 = tpu.concatenate %27, %32, %37, %42, %47, %52, %57, %62 in 0 : vector<8x8xf32>, vector<8x8xf32>, vector<8x8xf32>, vector<8x8xf32>, vector<8x8xf32>, vector<8x8xf32>, vector<8x8xf32>, vector<8x8xf32> -> vector<64x8xf32>
    %cst_19 = arith.constant 0.353553385 : f32
    %69 = vector.broadcast %cst_19 : f32 to vector<64x8xf32>
    %70 = arith.mulf %68, %69 : vector<64x8xf32>
    %71 = arith.addf %70, %67 : vector<64x8xf32>
    %cst_20 = arith.constant dense<0xFF800000> : vector<64xf32>
    %72 = vector.multi_reduction <maximumf>, %71, %cst_20 [1] : vector<64x8xf32> to vector<64xf32>
    %73 = vector.shape_cast %72 : vector<64xf32> to vector<64x1xf32>
    %74 = vector.broadcast %73 : vector<64x1xf32> to vector<64x8xf32>
    %75 = arith.subf %71, %74 : vector<64x8xf32>
    %76 = math.exp %75 : vector<64x8xf32>
    %cst_21 = arith.constant dense<0.000000e+00> : vector<64xf32>
    %77 = vector.multi_reduction <add>, %76, %cst_21 [1] : vector<64x8xf32> to vector<64xf32>
    %78 = vector.shape_cast %77 : vector<64xf32> to vector<64x1xf32>
    %79 = tpu.reciprocal %78 {approx = true} : vector<64x1xf32> -> vector<64x1xf32>
    %80 = vector.broadcast %79 : vector<64x1xf32> to vector<64x8xf32>
    %81 = arith.mulf %76, %80 : vector<64x8xf32>
    %82 = vector.extract_strided_slice %81 {offsets = [0, 0], sizes = [8, 8], strides = [1, 1]} : vector<64x8xf32> to vector<8x8xf32>
    %83 = arith.truncf %82 : vector<8x8xf32> to vector<8x8xbf16>
    %84 = vector.extract_strided_slice %22 {offsets = [0, 0], sizes = [8, 8], strides = [1, 1]} : vector<16x32xf32> to vector<8x8xf32>
    %85 = arith.truncf %84 : vector<8x8xf32> to vector<8x8xbf16>
    %cst_22 = arith.constant dense<0.000000e+00> : vector<8x8xf32>
    %86 = tpu.matmul %83, %85, %cst_22 {dimension_numbers = #tpu.dot_dimension_numbers<[1], [0], [0], [1], [0, 0, 1, 1], [], []>} : vector<8x8xbf16>, vector<8x8xbf16>, vector<8x8xf32> -> vector<8x8xf32>
    %87 = vector.extract_strided_slice %81 {offsets = [8, 0], sizes = [8, 8], strides = [1, 1]} : vector<64x8xf32> to vector<8x8xf32>
    %88 = arith.truncf %87 : vector<8x8xf32> to vector<8x8xbf16>
    %89 = vector.extract_strided_slice %22 {offsets = [0, 8], sizes = [8, 8], strides = [1, 1]} : vector<16x32xf32> to vector<8x8xf32>
    %90 = arith.truncf %89 : vector<8x8xf32> to vector<8x8xbf16>
    %cst_23 = arith.constant dense<0.000000e+00> : vector<8x8xf32>
    %91 = tpu.matmul %88, %90, %cst_23 {dimension_numbers = #tpu.dot_dimension_numbers<[1], [0], [0], [1], [0, 0, 1, 1], [], []>} : vector<8x8xbf16>, vector<8x8xbf16>, vector<8x8xf32> -> vector<8x8xf32>
    %92 = vector.extract_strided_slice %81 {offsets = [16, 0], sizes = [8, 8], strides = [1, 1]} : vector<64x8xf32> to vector<8x8xf32>
    %93 = arith.truncf %92 : vector<8x8xf32> to vector<8x8xbf16>
    %94 = vector.extract_strided_slice %22 {offsets = [0, 16], sizes = [8, 8], strides = [1, 1]} : vector<16x32xf32> to vector<8x8xf32>
    %95 = arith.truncf %94 : vector<8x8xf32> to vector<8x8xbf16>
    %cst_24 = arith.constant dense<0.000000e+00> : vector<8x8xf32>
    %96 = tpu.matmul %93, %95, %cst_24 {dimension_numbers = #tpu.dot_dimension_numbers<[1], [0], [0], [1], [0, 0, 1, 1], [], []>} : vector<8x8xbf16>, vector<8x8xbf16>, vector<8x8xf32> -> vector<8x8xf32>
    %97 = vector.extract_strided_slice %81 {offsets = [24, 0], sizes = [8, 8], strides = [1, 1]} : vector<64x8xf32> to vector<8x8xf32>
    %98 = arith.truncf %97 : vector<8x8xf32> to vector<8x8xbf16>
    %99 = vector.extract_strided_slice %22 {offsets = [0, 24], sizes = [8, 8], strides = [1, 1]} : vector<16x32xf32> to vector<8x8xf32>
    %100 = arith.truncf %99 : vector<8x8xf32> to vector<8x8xbf16>
    %cst_25 = arith.constant dense<0.000000e+00> : vector<8x8xf32>
    %101 = tpu.matmul %98, %100, %cst_25 {dimension_numbers = #tpu.dot_dimension_numbers<[1], [0], [0], [1], [0, 0, 1, 1], [], []>} : vector<8x8xbf16>, vector<8x8xbf16>, vector<8x8xf32> -> vector<8x8xf32>
    %102 = tpu.concatenate %86, %91, %96, %101 in 1 : vector<8x8xf32>, vector<8x8xf32>, vector<8x8xf32>, vector<8x8xf32> -> vector<8x32xf32>
    %103 = vector.extract_strided_slice %81 {offsets = [32, 0], sizes = [8, 8], strides = [1, 1]} : vector<64x8xf32> to vector<8x8xf32>
    %104 = arith.truncf %103 : vector<8x8xf32> to vector<8x8xbf16>
    %105 = vector.extract_strided_slice %22 {offsets = [8, 0], sizes = [8, 8], strides = [1, 1]} : vector<16x32xf32> to vector<8x8xf32>
    %106 = arith.truncf %105 : vector<8x8xf32> to vector<8x8xbf16>
    %cst_26 = arith.constant dense<0.000000e+00> : vector<8x8xf32>
    %107 = tpu.matmul %104, %106, %cst_26 {dimension_numbers = #tpu.dot_dimension_numbers<[1], [0], [0], [1], [0, 0, 1, 1], [], []>} : vector<8x8xbf16>, vector<8x8xbf16>, vector<8x8xf32> -> vector<8x8xf32>
    %108 = vector.extract_strided_slice %81 {offsets = [40, 0], sizes = [8, 8], strides = [1, 1]} : vector<64x8xf32> to vector<8x8xf32>
    %109 = arith.truncf %108 : vector<8x8xf32> to vector<8x8xbf16>
    %110 = vector.extract_strided_slice %22 {offsets = [8, 8], sizes = [8, 8], strides = [1, 1]} : vector<16x32xf32> to vector<8x8xf32>
    %111 = arith.truncf %110 : vector<8x8xf32> to vector<8x8xbf16>
    %cst_27 = arith.constant dense<0.000000e+00> : vector<8x8xf32>
    %112 = tpu.matmul %109, %111, %cst_27 {dimension_numbers = #tpu.dot_dimension_numbers<[1], [0], [0], [1], [0, 0, 1, 1], [], []>} : vector<8x8xbf16>, vector<8x8xbf16>, vector<8x8xf32> -> vector<8x8xf32>
    %113 = vector.extract_strided_slice %81 {offsets = [48, 0], sizes = [8, 8], strides = [1, 1]} : vector<64x8xf32> to vector<8x8xf32>
    %114 = arith.truncf %113 : vector<8x8xf32> to vector<8x8xbf16>
    %115 = vector.extract_strided_slice %22 {offsets = [8, 16], sizes = [8, 8], strides = [1, 1]} : vector<16x32xf32> to vector<8x8xf32>
    %116 = arith.truncf %115 : vector<8x8xf32> to vector<8x8xbf16>
    %cst_28 = arith.constant dense<0.000000e+00> : vector<8x8xf32>
    %117 = tpu.matmul %114, %116, %cst_28 {dimension_numbers = #tpu.dot_dimension_numbers<[1], [0], [0], [1], [0, 0, 1, 1], [], []>} : vector<8x8xbf16>, vector<8x8xbf16>, vector<8x8xf32> -> vector<8x8xf32>
    %118 = vector.extract_strided_slice %81 {offsets = [56, 0], sizes = [8, 8], strides = [1, 1]} : vector<64x8xf32> to vector<8x8xf32>
    %119 = arith.truncf %118 : vector<8x8xf32> to vector<8x8xbf16>
    %120 = vector.extract_strided_slice %22 {offsets = [8, 24], sizes = [8, 8], strides = [1, 1]} : vector<16x32xf32> to vector<8x8xf32>
    %121 = arith.truncf %120 : vector<8x8xf32> to vector<8x8xbf16>
    %cst_29 = arith.constant dense<0.000000e+00> : vector<8x8xf32>
    %122 = tpu.matmul %119, %121, %cst_29 {dimension_numbers = #tpu.dot_dimension_numbers<[1], [0], [0], [1], [0, 0, 1, 1], [], []>} : vector<8x8xbf16>, vector<8x8xbf16>, vector<8x8xf32> -> vector<8x8xf32>
    %123 = tpu.concatenate %107, %112, %117, %122 in 1 : vector<8x8xf32>, vector<8x8xf32>, vector<8x8xf32>, vector<8x8xf32> -> vector<8x32xf32>
    %124 = tpu.concatenate %102, %123 in 0 : vector<8x32xf32>, vector<8x32xf32> -> vector<16x32xf32>
    %125 = arith.truncf %124 : vector<16x32xf32> to vector<16x32xbf16>
    %cst_30 = arith.constant dense<0.000000e+00> : vector<16x128xf32>
    %126 = tpu.matmul %125, %7, %cst_30 {dimension_numbers = #tpu.dot_dimension_numbers<[1], [0], [0], [1], [0, 0, 1, 1], [], []>} : vector<16x32xbf16>, vector<32x128xbf16>, vector<16x128xf32> -> vector<16x128xf32>
    %127 = vector.extract_strided_slice %126 {offsets = [0, 96], sizes = [16, 32], strides = [1, 1]} : vector<16x128xf32> to vector<16x32xf32>
    %128 = vector.extract_strided_slice %1 {offsets = [0, 96], sizes = [1, 32], strides = [1, 1]} : vector<1x128xf32> to vector<1x32xf32>
    %129 = vector.broadcast %128 : vector<1x32xf32> to vector<16x32xf32>
    %130 = arith.addf %127, %129 : vector<16x32xf32>
    %131 = vector.extract_strided_slice %4 {offsets = [0, 0], sizes = [1, 32], strides = [1, 1]} : vector<1x128xf32> to vector<1x32xf32>
    %132 = vector.extract_strided_slice %5 {offsets = [0, 0], sizes = [1, 32], strides = [1, 1]} : vector<1x128xf32> to vector<1x32xf32>
    %cst_31 = arith.constant dense<0.000000e+00> : vector<16xf32>
    %133 = vector.multi_reduction <add>, %130, %cst_31 [1] : vector<16x32xf32> to vector<16xf32>
    %134 = vector.shape_cast %133 : vector<16xf32> to vector<16x1xf32>
    %cst_32 = arith.constant 3.125000e-02 : f32
    %135 = vector.broadcast %cst_32 : f32 to vector<16x1xf32>
    %136 = arith.mulf %134, %135 : vector<16x1xf32>
    %137 = vector.broadcast %136 : vector<16x1xf32> to vector<16x32xf32>
    %138 = arith.subf %130, %137 : vector<16x32xf32>
    %139 = arith.mulf %138, %138 : vector<16x32xf32>
    %cst_33 = arith.constant dense<0.000000e+00> : vector<16xf32>
    %140 = vector.multi_reduction <add>, %139, %cst_33 [1] : vector<16x32xf32> to vector<16xf32>
    %141 = vector.shape_cast %140 : vector<16xf32> to vector<16x1xf32>
    %cst_34 = arith.constant 0.0322580636 : f32
    %142 = vector.broadcast %cst_34 : f32 to vector<16x1xf32>
    %143 = arith.mulf %141, %142 : vector<16x1xf32>
    %144 = math.sqrt %143 : vector<16x1xf32>
    %cst_35 = arith.constant 9.99999997E-7 : f32
    %145 = vector.broadcast %cst_35 : f32 to vector<16x1xf32>
    %146 = arith.addf %144, %145 : vector<16x1xf32>
    %147 = tpu.reciprocal %146 {approx = true} : vector<16x1xf32> -> vector<16x1xf32>
    %148 = vector.broadcast %131 : vector<1x32xf32> to vector<16x32xf32>
    %149 = arith.mulf %148, %138 : vector<16x32xf32>
    %150 = vector.broadcast %147 : vector<16x1xf32> to vector<16x32xf32>
    %151 = arith.mulf %149, %150 : vector<16x32xf32>
    %152 = vector.broadcast %132 : vector<1x32xf32> to vector<16x32xf32>
    %153 = arith.addf %151, %152 : vector<16x32xf32>
    %154 = arith.addf %14, %153 : vector<16x32xf32>
    %155 = arith.truncf %154 : vector<16x32xf32> to vector<16x32xbf16>
    %cst_36 = arith.constant dense<0.000000e+00> : vector<16x128xf32>
    %156 = tpu.matmul %155, %9, %cst_36 {dimension_numbers = #tpu.dot_dimension_numbers<[1], [0], [0], [1], [0, 0, 1, 1], [], []>} : vector<16x32xbf16>, vector<32x128xbf16>, vector<16x128xf32> -> vector<16x128xf32>
    %157 = vector.broadcast %2 : vector<1x128xf32> to vector<16x128xf32>
    %158 = arith.addf %156, %157 : vector<16x128xf32>
    %159 = arith.truncf %15 : vector<16x32xf32> to vector<16x32xbf16>
    %cst_37 = arith.constant dense<0.000000e+00> : vector<16x128xf32>
    %160 = tpu.matmul %159, %9, %cst_37 {dimension_numbers = #tpu.dot_dimension_numbers<[1], [0], [0], [1], [0, 0, 1, 1], [], []>} : vector<16x32xbf16>, vector<32x128xbf16>, vector<16x128xf32> -> vector<16x128xf32>
    %161 = vector.broadcast %2 : vector<1x128xf32> to vector<16x128xf32>
    %162 = arith.addf %160, %161 : vector<16x128xf32>
    %163 = vector.extract_strided_slice %158 {offsets = [0, 0], sizes = [16, 32], strides = [1, 1]} : vector<16x128xf32> to vector<16x32xf32>
    %164 = vector.extract_strided_slice %162 {offsets = [0, 32], sizes = [16, 32], strides = [1, 1]} : vector<16x128xf32> to vector<16x32xf32>
    %165 = vector.extract_strided_slice %162 {offsets = [0, 64], sizes = [16, 32], strides = [1, 1]} : vector<16x128xf32> to vector<16x32xf32>
    %166 = vector.extract_strided_slice %163 {offsets = [0, 0], sizes = [8, 8], strides = [1, 1]} : vector<16x32xf32> to vector<8x8xf32>
    %167 = arith.truncf %166 : vector<8x8xf32> to vector<8x8xbf16>
    %168 = vector.extract_strided_slice %164 {offsets = [0, 0], sizes = [8, 8], strides = [1, 1]} : vector<16x32xf32> to vector<8x8xf32>
    %169 = arith.truncf %168 : vector<8x8xf32> to vector<8x8xbf16>
    %cst_38 = arith.constant dense<0.000000e+00> : vector<8x8xf32>
    %170 = tpu.matmul %167, %169, %cst_38 {dimension_numbers = #tpu.dot_dimension_numbers<[1], [1], [0], [0], [0, 0, 1, 0], [], []>} : vector<8x8xbf16>, vector<8x8xbf16>, vector<8x8xf32> -> vector<8x8xf32>
    %171 = vector.extract_strided_slice %163 {offsets = [0, 8], sizes = [8, 8], strides = [1, 1]} : vector<16x32xf32> to vector<8x8xf32>
    %172 = arith.truncf %171 : vector<8x8xf32> to vector<8x8xbf16>
    %173 = vector.extract_strided_slice %164 {offsets = [0, 8], sizes = [8, 8], strides = [1, 1]} : vector<16x32xf32> to vector<8x8xf32>
    %174 = arith.truncf %173 : vector<8x8xf32> to vector<8x8xbf16>
    %cst_39 = arith.constant dense<0.000000e+00> : vector<8x8xf32>
    %175 = tpu.matmul %172, %174, %cst_39 {dimension_numbers = #tpu.dot_dimension_numbers<[1], [1], [0], [0], [0, 0, 1, 0], [], []>} : vector<8x8xbf16>, vector<8x8xbf16>, vector<8x8xf32> -> vector<8x8xf32>
    %176 = vector.extract_strided_slice %163 {offsets = [0, 16], sizes = [8, 8], strides = [1, 1]} : vector<16x32xf32> to vector<8x8xf32>
    %177 = arith.truncf %176 : vector<8x8xf32> to vector<8x8xbf16>
    %178 = vector.extract_strided_slice %164 {offsets = [0, 16], sizes = [8, 8], strides = [1, 1]} : vector<16x32xf32> to vector<8x8xf32>
    %179 = arith.truncf %178 : vector<8x8xf32> to vector<8x8xbf16>
    %cst_40 = arith.constant dense<0.000000e+00> : vector<8x8xf32>
    %180 = tpu.matmul %177, %179, %cst_40 {dimension_numbers = #tpu.dot_dimension_numbers<[1], [1], [0], [0], [0, 0, 1, 0], [], []>} : vector<8x8xbf16>, vector<8x8xbf16>, vector<8x8xf32> -> vector<8x8xf32>
    %181 = vector.extract_strided_slice %163 {offsets = [0, 24], sizes = [8, 8], strides = [1, 1]} : vector<16x32xf32> to vector<8x8xf32>
    %182 = arith.truncf %181 : vector<8x8xf32> to vector<8x8xbf16>
    %183 = vector.extract_strided_slice %164 {offsets = [0, 24], sizes = [8, 8], strides = [1, 1]} : vector<16x32xf32> to vector<8x8xf32>
    %184 = arith.truncf %183 : vector<8x8xf32> to vector<8x8xbf16>
    %cst_41 = arith.constant dense<0.000000e+00> : vector<8x8xf32>
    %185 = tpu.matmul %182, %184, %cst_41 {dimension_numbers = #tpu.dot_dimension_numbers<[1], [1], [0], [0], [0, 0, 1, 0], [], []>} : vector<8x8xbf16>, vector<8x8xbf16>, vector<8x8xf32> -> vector<8x8xf32>
    %186 = vector.extract_strided_slice %163 {offsets = [8, 0], sizes = [8, 8], strides = [1, 1]} : vector<16x32xf32> to vector<8x8xf32>
    %187 = arith.truncf %186 : vector<8x8xf32> to vector<8x8xbf16>
    %188 = vector.extract_strided_slice %164 {offsets = [8, 0], sizes = [8, 8], strides = [1, 1]} : vector<16x32xf32> to vector<8x8xf32>
    %189 = arith.truncf %188 : vector<8x8xf32> to vector<8x8xbf16>
    %cst_42 = arith.constant dense<0.000000e+00> : vector<8x8xf32>
    %190 = tpu.matmul %187, %189, %cst_42 {dimension_numbers = #tpu.dot_dimension_numbers<[1], [1], [0], [0], [0, 0, 1, 0], [], []>} : vector<8x8xbf16>, vector<8x8xbf16>, vector<8x8xf32> -> vector<8x8xf32>
    %191 = vector.extract_strided_slice %163 {offsets = [8, 8], sizes = [8, 8], strides = [1, 1]} : vector<16x32xf32> to vector<8x8xf32>
    %192 = arith.truncf %191 : vector<8x8xf32> to vector<8x8xbf16>
    %193 = vector.extract_strided_slice %164 {offsets = [8, 8], sizes = [8, 8], strides = [1, 1]} : vector<16x32xf32> to vector<8x8xf32>
    %194 = arith.truncf %193 : vector<8x8xf32> to vector<8x8xbf16>
    %cst_43 = arith.constant dense<0.000000e+00> : vector<8x8xf32>
    %195 = tpu.matmul %192, %194, %cst_43 {dimension_numbers = #tpu.dot_dimension_numbers<[1], [1], [0], [0], [0, 0, 1, 0], [], []>} : vector<8x8xbf16>, vector<8x8xbf16>, vector<8x8xf32> -> vector<8x8xf32>
    %196 = vector.extract_strided_slice %163 {offsets = [8, 16], sizes = [8, 8], strides = [1, 1]} : vector<16x32xf32> to vector<8x8xf32>
    %197 = arith.truncf %196 : vector<8x8xf32> to vector<8x8xbf16>
    %198 = vector.extract_strided_slice %164 {offsets = [8, 16], sizes = [8, 8], strides = [1, 1]} : vector<16x32xf32> to vector<8x8xf32>
    %199 = arith.truncf %198 : vector<8x8xf32> to vector<8x8xbf16>
    %cst_44 = arith.constant dense<0.000000e+00> : vector<8x8xf32>
    %200 = tpu.matmul %197, %199, %cst_44 {dimension_numbers = #tpu.dot_dimension_numbers<[1], [1], [0], [0], [0, 0, 1, 0], [], []>} : vector<8x8xbf16>, vector<8x8xbf16>, vector<8x8xf32> -> vector<8x8xf32>
    %201 = vector.extract_strided_slice %163 {offsets = [8, 24], sizes = [8, 8], strides = [1, 1]} : vector<16x32xf32> to vector<8x8xf32>
    %202 = arith.truncf %201 : vector<8x8xf32> to vector<8x8xbf16>
    %203 = vector.extract_strided_slice %164 {offsets = [8, 24], sizes = [8, 8], strides = [1, 1]} : vector<16x32xf32> to vector<8x8xf32>
    %204 = arith.truncf %203 : vector<8x8xf32> to vector<8x8xbf16>
    %cst_45 = arith.constant dense<0.000000e+00> : vector<8x8xf32>
    %205 = tpu.matmul %202, %204, %cst_45 {dimension_numbers = #tpu.dot_dimension_numbers<[1], [1], [0], [0], [0, 0, 1, 0], [], []>} : vector<8x8xbf16>, vector<8x8xbf16>, vector<8x8xf32> -> vector<8x8xf32>
    %c184 = arith.constant 184 : index
    %c0_46 = arith.constant 0 : index
    %206 = vector.load %arg2[%c184, %c0_46] : memref<200x128xf32, #tpu.memory_space<vmem>>, vector<8x128xf32>
    %207 = vector.extract_strided_slice %206 {offsets = [0, 0], sizes = [8, 8], strides = [1, 1]} : vector<8x128xf32> to vector<8x8xf32>
    %c192 = arith.constant 192 : index
    %c0_47 = arith.constant 0 : index
    %208 = vector.load %arg2[%c192, %c0_47] : memref<200x128xf32, #tpu.memory_space<vmem>>, vector<8x128xf32>
    %209 = vector.extract_strided_slice %208 {offsets = [0, 0], sizes = [8, 8], strides = [1, 1]} : vector<8x128xf32> to vector<8x8xf32>
    %210 = tpu.concatenate %207, %207, %207, %207, %209, %209, %209, %209 in 0 : vector<8x8xf32>, vector<8x8xf32>, vector<8x8xf32>, vector<8x8xf32>, vector<8x8xf32>, vector<8x8xf32>, vector<8x8xf32>, vector<8x8xf32> -> vector<64x8xf32>
    %211 = tpu.concatenate %170, %175, %180, %185, %190, %195, %200, %205 in 0 : vector<8x8xf32>, vector<8x8xf32>, vector<8x8xf32>, vector<8x8xf32>, vector<8x8xf32>, vector<8x8xf32>, vector<8x8xf32>, vector<8x8xf32> -> vector<64x8xf32>
    %cst_48 = arith.constant 0.353553385 : f32
    %212 = vector.broadcast %cst_48 : f32 to vector<64x8xf32>
    %213 = arith.mulf %211, %212 : vector<64x8xf32>
    %214 = arith.addf %213, %210 : vector<64x8xf32>
    %cst_49 = arith.constant dense<0xFF800000> : vector<64xf32>
    %215 = vector.multi_reduction <maximumf>, %214, %cst_49 [1] : vector<64x8xf32> to vector<64xf32>
    %216 = vector.shape_cast %215 : vector<64xf32> to vector<64x1xf32>
    %217 = vector.broadcast %216 : vector<64x1xf32> to vector<64x8xf32>
    %218 = arith.subf %214, %217 : vector<64x8xf32>
    %219 = math.exp %218 : vector<64x8xf32>
    %cst_50 = arith.constant dense<0.000000e+00> : vector<64xf32>
    %220 = vector.multi_reduction <add>, %219, %cst_50 [1] : vector<64x8xf32> to vector<64xf32>
    %221 = vector.shape_cast %220 : vector<64xf32> to vector<64x1xf32>
    %222 = tpu.reciprocal %221 {approx = true} : vector<64x1xf32> -> vector<64x1xf32>
    %223 = vector.broadcast %222 : vector<64x1xf32> to vector<64x8xf32>
    %224 = arith.mulf %219, %223 : vector<64x8xf32>
    %225 = vector.extract_strided_slice %224 {offsets = [0, 0], sizes = [8, 8], strides = [1, 1]} : vector<64x8xf32> to vector<8x8xf32>
    %226 = arith.truncf %225 : vector<8x8xf32> to vector<8x8xbf16>
    %227 = vector.extract_strided_slice %165 {offsets = [0, 0], sizes = [8, 8], strides = [1, 1]} : vector<16x32xf32> to vector<8x8xf32>
    %228 = arith.truncf %227 : vector<8x8xf32> to vector<8x8xbf16>
    %cst_51 = arith.constant dense<0.000000e+00> : vector<8x8xf32>
    %229 = tpu.matmul %226, %228, %cst_51 {dimension_numbers = #tpu.dot_dimension_numbers<[1], [0], [0], [1], [0, 0, 1, 1], [], []>} : vector<8x8xbf16>, vector<8x8xbf16>, vector<8x8xf32> -> vector<8x8xf32>
    %230 = vector.extract_strided_slice %224 {offsets = [8, 0], sizes = [8, 8], strides = [1, 1]} : vector<64x8xf32> to vector<8x8xf32>
    %231 = arith.truncf %230 : vector<8x8xf32> to vector<8x8xbf16>
    %232 = vector.extract_strided_slice %165 {offsets = [0, 8], sizes = [8, 8], strides = [1, 1]} : vector<16x32xf32> to vector<8x8xf32>
    %233 = arith.truncf %232 : vector<8x8xf32> to vector<8x8xbf16>
    %cst_52 = arith.constant dense<0.000000e+00> : vector<8x8xf32>
    %234 = tpu.matmul %231, %233, %cst_52 {dimension_numbers = #tpu.dot_dimension_numbers<[1], [0], [0], [1], [0, 0, 1, 1], [], []>} : vector<8x8xbf16>, vector<8x8xbf16>, vector<8x8xf32> -> vector<8x8xf32>
    %235 = vector.extract_strided_slice %224 {offsets = [16, 0], sizes = [8, 8], strides = [1, 1]} : vector<64x8xf32> to vector<8x8xf32>
    %236 = arith.truncf %235 : vector<8x8xf32> to vector<8x8xbf16>
    %237 = vector.extract_strided_slice %165 {offsets = [0, 16], sizes = [8, 8], strides = [1, 1]} : vector<16x32xf32> to vector<8x8xf32>
    %238 = arith.truncf %237 : vector<8x8xf32> to vector<8x8xbf16>
    %cst_53 = arith.constant dense<0.000000e+00> : vector<8x8xf32>
    %239 = tpu.matmul %236, %238, %cst_53 {dimension_numbers = #tpu.dot_dimension_numbers<[1], [0], [0], [1], [0, 0, 1, 1], [], []>} : vector<8x8xbf16>, vector<8x8xbf16>, vector<8x8xf32> -> vector<8x8xf32>
    %240 = vector.extract_strided_slice %224 {offsets = [24, 0], sizes = [8, 8], strides = [1, 1]} : vector<64x8xf32> to vector<8x8xf32>
    %241 = arith.truncf %240 : vector<8x8xf32> to vector<8x8xbf16>
    %242 = vector.extract_strided_slice %165 {offsets = [0, 24], sizes = [8, 8], strides = [1, 1]} : vector<16x32xf32> to vector<8x8xf32>
    %243 = arith.truncf %242 : vector<8x8xf32> to vector<8x8xbf16>
    %cst_54 = arith.constant dense<0.000000e+00> : vector<8x8xf32>
    %244 = tpu.matmul %241, %243, %cst_54 {dimension_numbers = #tpu.dot_dimension_numbers<[1], [0], [0], [1], [0, 0, 1, 1], [], []>} : vector<8x8xbf16>, vector<8x8xbf16>, vector<8x8xf32> -> vector<8x8xf32>
    %245 = tpu.concatenate %229, %234, %239, %244 in 1 : vector<8x8xf32>, vector<8x8xf32>, vector<8x8xf32>, vector<8x8xf32> -> vector<8x32xf32>
    %246 = vector.extract_strided_slice %224 {offsets = [32, 0], sizes = [8, 8], strides = [1, 1]} : vector<64x8xf32> to vector<8x8xf32>
    %247 = arith.truncf %246 : vector<8x8xf32> to vector<8x8xbf16>
    %248 = vector.extract_strided_slice %165 {offsets = [8, 0], sizes = [8, 8], strides = [1, 1]} : vector<16x32xf32> to vector<8x8xf32>
    %249 = arith.truncf %248 : vector<8x8xf32> to vector<8x8xbf16>
    %cst_55 = arith.constant dense<0.000000e+00> : vector<8x8xf32>
    %250 = tpu.matmul %247, %249, %cst_55 {dimension_numbers = #tpu.dot_dimension_numbers<[1], [0], [0], [1], [0, 0, 1, 1], [], []>} : vector<8x8xbf16>, vector<8x8xbf16>, vector<8x8xf32> -> vector<8x8xf32>
    %251 = vector.extract_strided_slice %224 {offsets = [40, 0], sizes = [8, 8], strides = [1, 1]} : vector<64x8xf32> to vector<8x8xf32>
    %252 = arith.truncf %251 : vector<8x8xf32> to vector<8x8xbf16>
    %253 = vector.extract_strided_slice %165 {offsets = [8, 8], sizes = [8, 8], strides = [1, 1]} : vector<16x32xf32> to vector<8x8xf32>
    %254 = arith.truncf %253 : vector<8x8xf32> to vector<8x8xbf16>
    %cst_56 = arith.constant dense<0.000000e+00> : vector<8x8xf32>
    %255 = tpu.matmul %252, %254, %cst_56 {dimension_numbers = #tpu.dot_dimension_numbers<[1], [0], [0], [1], [0, 0, 1, 1], [], []>} : vector<8x8xbf16>, vector<8x8xbf16>, vector<8x8xf32> -> vector<8x8xf32>
    %256 = vector.extract_strided_slice %224 {offsets = [48, 0], sizes = [8, 8], strides = [1, 1]} : vector<64x8xf32> to vector<8x8xf32>
    %257 = arith.truncf %256 : vector<8x8xf32> to vector<8x8xbf16>
    %258 = vector.extract_strided_slice %165 {offsets = [8, 16], sizes = [8, 8], strides = [1, 1]} : vector<16x32xf32> to vector<8x8xf32>
    %259 = arith.truncf %258 : vector<8x8xf32> to vector<8x8xbf16>
    %cst_57 = arith.constant dense<0.000000e+00> : vector<8x8xf32>
    %260 = tpu.matmul %257, %259, %cst_57 {dimension_numbers = #tpu.dot_dimension_numbers<[1], [0], [0], [1], [0, 0, 1, 1], [], []>} : vector<8x8xbf16>, vector<8x8xbf16>, vector<8x8xf32> -> vector<8x8xf32>
    %261 = vector.extract_strided_slice %224 {offsets = [56, 0], sizes = [8, 8], strides = [1, 1]} : vector<64x8xf32> to vector<8x8xf32>
    %262 = arith.truncf %261 : vector<8x8xf32> to vector<8x8xbf16>
    %263 = vector.extract_strided_slice %165 {offsets = [8, 24], sizes = [8, 8], strides = [1, 1]} : vector<16x32xf32> to vector<8x8xf32>
    %264 = arith.truncf %263 : vector<8x8xf32> to vector<8x8xbf16>
    %cst_58 = arith.constant dense<0.000000e+00> : vector<8x8xf32>
    %265 = tpu.matmul %262, %264, %cst_58 {dimension_numbers = #tpu.dot_dimension_numbers<[1], [0], [0], [1], [0, 0, 1, 1], [], []>} : vector<8x8xbf16>, vector<8x8xbf16>, vector<8x8xf32> -> vector<8x8xf32>
    %266 = tpu.concatenate %250, %255, %260, %265 in 1 : vector<8x8xf32>, vector<8x8xf32>, vector<8x8xf32>, vector<8x8xf32> -> vector<8x32xf32>
    %267 = tpu.concatenate %245, %266 in 0 : vector<8x32xf32>, vector<8x32xf32> -> vector<16x32xf32>
    %268 = arith.truncf %267 : vector<16x32xf32> to vector<16x32xbf16>
    %cst_59 = arith.constant dense<0.000000e+00> : vector<16x128xf32>
    %269 = tpu.matmul %268, %9, %cst_59 {dimension_numbers = #tpu.dot_dimension_numbers<[1], [0], [0], [1], [0, 0, 1, 1], [], []>} : vector<16x32xbf16>, vector<32x128xbf16>, vector<16x128xf32> -> vector<16x128xf32>
    %270 = vector.extract_strided_slice %269 {offsets = [0, 96], sizes = [16, 32], strides = [1, 1]} : vector<16x128xf32> to vector<16x32xf32>
    %271 = vector.extract_strided_slice %2 {offsets = [0, 96], sizes = [1, 32], strides = [1, 1]} : vector<1x128xf32> to vector<1x32xf32>
    %272 = vector.broadcast %271 : vector<1x32xf32> to vector<16x32xf32>
    %273 = arith.addf %270, %272 : vector<16x32xf32>
    %274 = vector.extract_strided_slice %4 {offsets = [0, 32], sizes = [1, 32], strides = [1, 1]} : vector<1x128xf32> to vector<1x32xf32>
    %275 = vector.extract_strided_slice %5 {offsets = [0, 32], sizes = [1, 32], strides = [1, 1]} : vector<1x128xf32> to vector<1x32xf32>
    %cst_60 = arith.constant dense<0.000000e+00> : vector<16xf32>
    %276 = vector.multi_reduction <add>, %273, %cst_60 [1] : vector<16x32xf32> to vector<16xf32>
    %277 = vector.shape_cast %276 : vector<16xf32> to vector<16x1xf32>
    %cst_61 = arith.constant 3.125000e-02 : f32
    %278 = vector.broadcast %cst_61 : f32 to vector<16x1xf32>
    %279 = arith.mulf %277, %278 : vector<16x1xf32>
    %280 = vector.broadcast %279 : vector<16x1xf32> to vector<16x32xf32>
    %281 = arith.subf %273, %280 : vector<16x32xf32>
    %282 = arith.mulf %281, %281 : vector<16x32xf32>
    %cst_62 = arith.constant dense<0.000000e+00> : vector<16xf32>
    %283 = vector.multi_reduction <add>, %282, %cst_62 [1] : vector<16x32xf32> to vector<16xf32>
    %284 = vector.shape_cast %283 : vector<16xf32> to vector<16x1xf32>
    %cst_63 = arith.constant 0.0322580636 : f32
    %285 = vector.broadcast %cst_63 : f32 to vector<16x1xf32>
    %286 = arith.mulf %284, %285 : vector<16x1xf32>
    %287 = math.sqrt %286 : vector<16x1xf32>
    %cst_64 = arith.constant 9.99999997E-7 : f32
    %288 = vector.broadcast %cst_64 : f32 to vector<16x1xf32>
    %289 = arith.addf %287, %288 : vector<16x1xf32>
    %290 = tpu.reciprocal %289 {approx = true} : vector<16x1xf32> -> vector<16x1xf32>
    %291 = vector.broadcast %274 : vector<1x32xf32> to vector<16x32xf32>
    %292 = arith.mulf %291, %281 : vector<16x32xf32>
    %293 = vector.broadcast %290 : vector<16x1xf32> to vector<16x32xf32>
    %294 = arith.mulf %292, %293 : vector<16x32xf32>
    %295 = vector.broadcast %275 : vector<1x32xf32> to vector<16x32xf32>
    %296 = arith.addf %294, %295 : vector<16x32xf32>
    %297 = arith.addf %154, %296 : vector<16x32xf32>
    %298 = arith.truncf %297 : vector<16x32xf32> to vector<16x32xbf16>
    %cst_65 = arith.constant dense<0.000000e+00> : vector<16x128xf32>
    %299 = tpu.matmul %298, %11, %cst_65 {dimension_numbers = #tpu.dot_dimension_numbers<[1], [0], [0], [1], [0, 0, 1, 1], [], []>} : vector<16x32xbf16>, vector<32x128xbf16>, vector<16x128xf32> -> vector<16x128xf32>
    %300 = vector.broadcast %3 : vector<1x128xf32> to vector<16x128xf32>
    %301 = arith.addf %299, %300 : vector<16x128xf32>
    %302 = vector.extract_strided_slice %301 {offsets = [0, 0], sizes = [16, 64], strides = [1, 1]} : vector<16x128xf32> to vector<16x64xf32>
    %cst_66 = arith.constant 0.000000e+00 : f32
    %303 = vector.broadcast %cst_66 : f32 to vector<16x64xf32>
    %304 = arith.maximumf %302, %303 : vector<16x64xf32>
    %305 = arith.truncf %304 : vector<16x64xf32> to vector<16x64xbf16>
    %cst_67 = arith.constant dense<0.000000e+00> : vector<16x128xf32>
    %306 = tpu.matmul %305, %13, %cst_67 {dimension_numbers = #tpu.dot_dimension_numbers<[1], [0], [0], [1], [0, 0, 1, 1], [], []>} : vector<16x64xbf16>, vector<64x128xbf16>, vector<16x128xf32> -> vector<16x128xf32>
    %307 = vector.extract_strided_slice %306 {offsets = [0, 0], sizes = [16, 32], strides = [1, 1]} : vector<16x128xf32> to vector<16x32xf32>
    %308 = vector.extract_strided_slice %3 {offsets = [0, 64], sizes = [1, 32], strides = [1, 1]} : vector<1x128xf32> to vector<1x32xf32>
    %309 = vector.broadcast %308 : vector<1x32xf32> to vector<16x32xf32>
    %310 = arith.addf %307, %309 : vector<16x32xf32>
    %311 = vector.extract_strided_slice %4 {offsets = [0, 64], sizes = [1, 32], strides = [1, 1]} : vector<1x128xf32> to vector<1x32xf32>
    %312 = vector.extract_strided_slice %5 {offsets = [0, 64], sizes = [1, 32], strides = [1, 1]} : vector<1x128xf32> to vector<1x32xf32>
    %cst_68 = arith.constant dense<0.000000e+00> : vector<16xf32>
    %313 = vector.multi_reduction <add>, %310, %cst_68 [1] : vector<16x32xf32> to vector<16xf32>
    %314 = vector.shape_cast %313 : vector<16xf32> to vector<16x1xf32>
    %cst_69 = arith.constant 3.125000e-02 : f32
    %315 = vector.broadcast %cst_69 : f32 to vector<16x1xf32>
    %316 = arith.mulf %314, %315 : vector<16x1xf32>
    %317 = vector.broadcast %316 : vector<16x1xf32> to vector<16x32xf32>
    %318 = arith.subf %310, %317 : vector<16x32xf32>
    %319 = arith.mulf %318, %318 : vector<16x32xf32>
    %cst_70 = arith.constant dense<0.000000e+00> : vector<16xf32>
    %320 = vector.multi_reduction <add>, %319, %cst_70 [1] : vector<16x32xf32> to vector<16xf32>
    %321 = vector.shape_cast %320 : vector<16xf32> to vector<16x1xf32>
    %cst_71 = arith.constant 0.0322580636 : f32
    %322 = vector.broadcast %cst_71 : f32 to vector<16x1xf32>
    %323 = arith.mulf %321, %322 : vector<16x1xf32>
    %324 = math.sqrt %323 : vector<16x1xf32>
    %cst_72 = arith.constant 9.99999997E-7 : f32
    %325 = vector.broadcast %cst_72 : f32 to vector<16x1xf32>
    %326 = arith.addf %324, %325 : vector<16x1xf32>
    %327 = tpu.reciprocal %326 {approx = true} : vector<16x1xf32> -> vector<16x1xf32>
    %328 = vector.broadcast %311 : vector<1x32xf32> to vector<16x32xf32>
    %329 = arith.mulf %328, %318 : vector<16x32xf32>
    %330 = vector.broadcast %327 : vector<16x1xf32> to vector<16x32xf32>
    %331 = arith.mulf %329, %330 : vector<16x32xf32>
    %332 = vector.broadcast %312 : vector<1x32xf32> to vector<16x32xf32>
    %333 = arith.addf %331, %332 : vector<16x32xf32>
    %334 = arith.addf %297, %333 : vector<16x32xf32>
    %c0_73 = arith.constant 0 : index
    %c0_74 = arith.constant 0 : index
    %335 = vector.load %arg3[%c0_73, %c0_74] : memref<16x32xf32, #tpu.memory_space<vmem>>, vector<16x32xf32>
    tpu.vector_store %arg3[%c0_73, %c0_74], %334 {strides = array<i32>} : memref<16x32xf32, #tpu.memory_space<vmem>>, vector<16x32xf32>,
    return
  }
}

</mosaic_0001>

<llo_original>
// kernel: decoder_layer.1
$region0: #{decoder_layer.1}
  #allocation0 [shape = 'u32[]', space=smem, size = 0x4, offset = 0x4, fixed_abs, tag = 'smem constant byte address 0x4 - core index']
  #allocation1 [shape = 'u32[144,128]{1,0:T(1,128)}', space=vmem, size = 0x12000, scoped, tag = 'internal scratch']
  %s0 = inlined_call_operand.vmem [shape: f32[16,32], index: 0, kind: input, shape index: {}]
  %s1 = inlined_call_operand.vmem [shape: f32[16,32], index: 1, kind: input, shape index: {}]
  %s2 = inlined_call_operand.vmem [shape: f32[200,128], index: 2, kind: input, shape index: {}]
  %s3 = inlined_call_operand.hbm [shape: f32[16,32], index: 3, kind: output, shape index: {}]
  %s4 = sld [smem:[#allocation0]]
  $region22: #{decoder_layer.1} parent=0
    _
  %s6 = ssub.s32 1, %s4
  %s7 = scalar_select 0, %s6, %s4
  $region1: #{decoder_layer.1} parent=0
    #allocation2 [shape = 'u8[8192]{0}', space=vmem, size = 0x2000, scoped, tag = 'output window, operand 0, single buffered']
    #allocation3 [shape = 's32[1]{0}', space=sflag, size = 0x4, scoped, tag = 'scoped memory for decoder_layer.1']
    %8 = vsyncpa [#allocation3], 0
    // Predicated region
    $region2: #{decoder_layer.1} parent=1 // pred_check
      _
    $region3: #{decoder_layer.1} parent=1 // pred_check_branch
      %10 = sbr.rel (0) target = $region5
    $region4: #{decoder_layer.1} parent=1 // pred_region
      _
    $region5: #{decoder_layer.1} parent=1 // pred_fallthru
      _
    // Predicated region
    $region6: #{decoder_layer.1} parent=1 // pred_check
      _
    $region7: #{decoder_layer.1} parent=1 // pred_check_branch
      %12 = sbr.rel (0) target = $region9
    $region8: #{decoder_layer.1} parent=1 // pred_region
      _
    $region9: #{decoder_layer.1} parent=1 // pred_fallthru
      _
    // Predicated region
    $region10: #{decoder_layer.1} parent=1 // pred_check
      _
    $region11: #{decoder_layer.1} parent=1 // pred_check_branch
      %14 = sbr.rel (0) target = $region13
    $region12: #{decoder_layer.1} parent=1 // pred_region
      _
    $region13: #{decoder_layer.1} parent=1 // pred_fallthru
      _
    %v16 = vld [vmem:[%s2 + $0xa0] sm:$0xff]
    %v17 = vld [vmem:[%s2] sm:$0xff]
    %v18 = vld [vmem:[%s2 + $0x8] sm:$0xff]
    %v19 = vld [vmem:[%s2 + $0x10] sm:$0xff]
    %v20 = vld [vmem:[%s2 + $0x18] sm:$0xff]
    %v21 = vpack.c.bf16 %v18, %v17
    %v22 = vpack.c.bf16 %v20, %v19
    %v23 = vld [vmem:[%s2 + $0x20] sm:$0xff]
    %v24 = vld [vmem:[%s2 + $0x28] sm:$0xff]
    %v25 = vld [vmem:[%s2 + $0x30] sm:$0xff]
    %v26 = vld [vmem:[%s2 + $0x38] sm:$0xff]
    %v27 = vpack.c.bf16 %v24, %v23
    %v28 = vpack.c.bf16 %v26, %v25
    %v29 = vld [vmem:[%s2 + $0x40] sm:$0xff]
    %v30 = vld [vmem:[%s2 + $0x48] sm:$0xff]
    %v31 = vld [vmem:[%s2 + $0x50] sm:$0xff]
    %v32 = vld [vmem:[%s2 + $0x58] sm:$0xff]
    %v33 = vpack.c.bf16 %v30, %v29
    %v34 = vpack.c.bf16 %v32, %v31
    %v35 = vld [vmem:[%s2 + $0x60] sm:$0xff]
    %v36 = vld [vmem:[%s2 + $0x68] sm:$0xff]
    %v37 = vld [vmem:[%s2 + $0x70] sm:$0xff]
    %v38 = vld [vmem:[%s2 + $0x78] sm:$0xff]
    %v39 = vld [vmem:[%s2 + $0x80] sm:$0xff]
    %v40 = vld [vmem:[%s2 + $0x88] sm:$0xff]
    %v41 = vld [vmem:[%s2 + $0x90] sm:$0xff]
    %v42 = vld [vmem:[%s2 + $0x98] sm:$0xff]
    %v43 = vpack.c.bf16 %v36, %v35
    %v44 = vpack.c.bf16 %v38, %v37
    %v45 = vpack.c.bf16 %v40, %v39
    %v46 = vpack.c.bf16 %v42, %v41
    %v47 = vld [vmem:[%s0] sm:$0xff]
    %v48 = vld [vmem:[%s0 + $0x8] sm:$0xff]
    %v49 = vld [vmem:[%s1] sm:$0xff]
    %v50 = vld [vmem:[%s1 + $0x8] sm:$0xff]
    %v51 = vpack.c.bf16 %v48, %v47
    %v52 = vlaneseq
    %v53 = vshrl.u32 %v52, 7
    %v54 = vsub.s32 0, %v53
    %v55 = vrot.slane %v16, %v54
    %vm56 = vcmask 261120
    %v58 = vsel %vm56, %v51, 0
    %60 = vmatprep.subr.bf16.mxu0 0
    %61 = vmatpush1.bf16.msra.mxu0 %v21
    %62 = vmatprep.subr.bf16.mxu0 0
    %63 = vmatpush1.bf16.msra.mxu0 %v22
    %64 = vmatprep.subr.bf16.mxu0 0
    %65 = vmatpush1.bf16.msra.mxu0 0
    %66 = vmatprep.subr.bf16.mxu0 0
    %67 = vmatpush1.bf16.msra.mxu0 0
    %68 = vmatprep.subr.bf16.mxu0 0
    %69 = vmatpush1.bf16.msra.mxu0 0
    %70 = vmatprep.subr.bf16.mxu0 0
    %71 = vmatpush1.bf16.msra.mxu0 0
    %72 = vmatprep.subr.bf16.mxu0 0
    %73 = vmatpush1.bf16.msra.mxu0 0
    %74 = vmatprep.subr.bf16.mxu0 0
    %75 = vmatpush1.bf16.msra.mxu0 0
    %76 = vmatprep.subr.bf16.mxu0 0
    %77 = vmatpush1.bf16.msra.mxu0 0
    %78 = vmatprep.subr.bf16.mxu0 0
    %79 = vmatpush1.bf16.msra.mxu0 0
    %80 = vmatprep.subr.bf16.mxu0 0
    %81 = vmatpush1.bf16.msra.mxu0 0
    %82 = vmatprep.subr.bf16.mxu0 0
    %83 = vmatpush1.bf16.msra.mxu0 0
    %84 = vmatprep.subr.bf16.mxu0 0
    %85 = vmatpush1.bf16.msra.mxu0 0
    %86 = vmatprep.subr.bf16.mxu0 0
    %87 = vmatpush1.bf16.msra.mxu0 0
    %88 = vmatprep.subr.bf16.mxu0 0
    %89 = vmatpush1.bf16.msra.mxu0 0
    %90 = vmatprep.subr.bf16.mxu0 0
    %91 = vmatpush1.bf16.msra.mxu0 0
    %92 = vmatprep.mubr.bf16.mxu0 0
    %93 = vmatmul.mubr.bf16.gmra.mrb[0].mxu0 %v58
    %v94 = vpop.f32.mrb[0].mxu0
    %v95 = vadd.f32 %v55, %v94
    %v96 = vpop.f32.mrb[0].mxu0
    %v97 = vpop.f32.mrb[0].mxu0
    %v98 = vadd.f32 %v55, %v97
    %v99 = vpop.f32.mrb[0].mxu0
    %100 = vdwg.mxu0
    %v101 = vpack.c.bf16 %v95, %v95
    %103 = vrot.lane.b32.xlu0 %v101, 96
    %v104 = vpop.permute.xlu0 %103
    %vm105 = vcmask 64512
    %v107 = vsel %vm105, %v101, 0
    %v110 = vsel %vm105, %v104, 0
    %112 = vmatprep.subr.bf16.mxu0 0
    %113 = vmatpush1.bf16.xpose.msra.mxu0 %v110
    %114 = vmatprep.subr.bf16.mxu0 0
    %115 = vmatpush1.bf16.xpose.msra.mxu0 0
    %116 = vmatprep.subr.bf16.mxu0 0
    %117 = vmatpush1.bf16.xpose.msra.mxu0 0
    %118 = vmatprep.subr.bf16.mxu0 0
    %119 = vmatpush1.bf16.xpose.msra.mxu0 0
    %120 = vmatprep.subr.bf16.mxu0 0
    %121 = vmatpush1.bf16.xpose.msra.mxu0 0
    %122 = vmatprep.subr.bf16.mxu0 0
    %123 = vmatpush1.bf16.xpose.msra.mxu0 0
    %124 = vmatprep.subr.bf16.mxu0 0
    %125 = vmatpush1.bf16.xpose.msra.mxu0 0
    %126 = vmatprep.subr.bf16.mxu0 0
    %127 = vmatpush1.bf16.xpose.msra.mxu0 0
    %128 = vmatprep.subr.bf16.mxu0 0
    %129 = vmatpush1.bf16.xpose.msra.mxu0 0
    %130 = vmatprep.subr.bf16.mxu0 0
    %131 = vmatpush1.bf16.xpose.msra.mxu0 0
    %132 = vmatprep.subr.bf16.mxu0 0
    %133 = vmatpush1.bf16.xpose.msra.mxu0 0
    %134 = vmatprep.subr.bf16.mxu0 0
    %135 = vmatpush1.bf16.xpose.msra.mxu0 0
    %136 = vmatprep.subr.bf16.mxu0 0
    %137 = vmatpush1.bf16.xpose.msra.mxu0 0
    %138 = vmatprep.subr.bf16.mxu0 0
    %139 = vmatpush1.bf16.xpose.msra.mxu0 0
    %140 = vmatprep.subr.bf16.mxu0 0
    %141 = vmatpush1.bf16.xpose.msra.mxu0 0
    %142 = vmatprep.subr.bf16.mxu0 0
    %143 = vmatpush1.bf16.xpose.msra.mxu0 0
    %144 = vmatprep.mubr.bf16.mxu0 0
    %145 = vmatmul.mubr.bf16.gmra.mrb[0].mxu0 %v107
    %v146 = vpop.f32.mrb[0].mxu0
    %v147 = vadd.f32 0.0, %v146
    %v148 = vpop.f32.mrb[0].mxu0
    %v149 = vpop.f32.mrb[0].mxu0
    %v150 = vpop.f32.mrb[0].mxu0
    %151 = vdwg.mxu0
    %152 = vrot.lane.b32.xlu0 %v101, 120
    %v153 = vpop.permute.xlu0 %152
    %154 = vrot.lane.b32.xlu0 %v101, 88
    %v155 = vpop.permute.xlu0 %154
    %v157 = vsel %vm105, %v153, 0
    %v160 = vsel %vm105, %v155, 0
    %162 = vmatprep.subr.bf16.mxu0 0
    %163 = vmatpush1.bf16.xpose.msra.mxu0 %v160
    %164 = vmatprep.subr.bf16.mxu0 0
    %165 = vmatpush1.bf16.xpose.msra.mxu0 0
    %166 = vmatprep.subr.bf16.mxu0 0
    %167 = vmatpush1.bf16.xpose.msra.mxu0 0
    %168 = vmatprep.subr.bf16.mxu0 0
    %169 = vmatpush1.bf16.xpose.msra.mxu0 0
    %170 = vmatprep.subr.bf16.mxu0 0
    %171 = vmatpush1.bf16.xpose.msra.mxu0 0
    %172 = vmatprep.subr.bf16.mxu0 0
    %173 = vmatpush1.bf16.xpose.msra.mxu0 0
    %174 = vmatprep.subr.bf16.mxu0 0
    %175 = vmatpush1.bf16.xpose.msra.mxu0 0
    %176 = vmatprep.subr.bf16.mxu0 0
    %177 = vmatpush1.bf16.xpose.msra.mxu0 0
    %178 = vmatprep.subr.bf16.mxu0 0
    %179 = vmatpush1.bf16.xpose.msra.mxu0 0
    %180 = vmatprep.subr.bf16.mxu0 0
    %181 = vmatpush1.bf16.xpose.msra.mxu0 0
    %182 = vmatprep.subr.bf16.mxu0 0
    %183 = vmatpush1.bf16.xpose.msra.mxu0 0
    %184 = vmatprep.subr.bf16.mxu0 0
    %185 = vmatpush1.bf16.xpose.msra.mxu0 0
    %186 = vmatprep.subr.bf16.mxu0 0
    %187 = vmatpush1.bf16.xpose.msra.mxu0 0
    %188 = vmatprep.subr.bf16.mxu0 0
    %189 = vmatpush1.bf16.xpose.msra.mxu0 0
    %190 = vmatprep.subr.bf16.mxu0 0
    %191 = vmatpush1.bf16.xpose.msra.mxu0 0
    %192 = vmatprep.subr.bf16.mxu0 0
    %193 = vmatpush1.bf16.xpose.msra.mxu0 0
    %194 = vmatprep.mubr.bf16.mxu0 0
    %195 = vmatmul.mubr.bf16.gmra.mrb[0].mxu0 %v157
    %v196 = vpop.f32.mrb[0].mxu0
    %v197 = vadd.f32 0.0, %v196
    %v198 = vpop.f32.mrb[0].mxu0
    %v199 = vpop.f32.mrb[0].mxu0
    %v200 = vpop.f32.mrb[0].mxu0
    %201 = vdwg.mxu0
    %202 = vrot.lane.b32.xlu0 %v101, 112
    %v203 = vpop.permute.xlu0 %202
    %204 = vrot.lane.b32.xlu0 %v101, 80
    %v205 = vpop.permute.xlu0 %204
    %v207 = vsel %vm105, %v203, 0
    %v210 = vsel %vm105, %v205, 0
    %212 = vmatprep.subr.bf16.mxu0 0
    %213 = vmatpush1.bf16.xpose.msra.mxu0 %v210
    %214 = vmatprep.subr.bf16.mxu0 0
    %215 = vmatpush1.bf16.xpose.msra.mxu0 0
    %216 = vmatprep.subr.bf16.mxu0 0
    %217 = vmatpush1.bf16.xpose.msra.mxu0 0
    %218 = vmatprep.subr.bf16.mxu0 0
    %219 = vmatpush1.bf16.xpose.msra.mxu0 0
    %220 = vmatprep.subr.bf16.mxu0 0
    %221 = vmatpush1.bf16.xpose.msra.mxu0 0
    %222 = vmatprep.subr.bf16.mxu0 0
    %223 = vmatpush1.bf16.xpose.msra.mxu0 0
    %224 = vmatprep.subr.bf16.mxu0 0
    %225 = vmatpush1.bf16.xpose.msra.mxu0 0
    %226 = vmatprep.subr.bf16.mxu0 0
    %227 = vmatpush1.bf16.xpose.msra.mxu0 0
    %228 = vmatprep.subr.bf16.mxu0 0
    %229 = vmatpush1.bf16.xpose.msra.mxu0 0
    %230 = vmatprep.subr.bf16.mxu0 0
    %231 = vmatpush1.bf16.xpose.msra.mxu0 0
    %232 = vmatprep.subr.bf16.mxu0 0
    %233 = vmatpush1.bf16.xpose.msra.mxu0 0
    %234 = vmatprep.subr.bf16.mxu0 0
    %235 = vmatpush1.bf16.xpose.msra.mxu0 0
    %236 = vmatprep.subr.bf16.mxu0 0
    %237 = vmatpush1.bf16.xpose.msra.mxu0 0
    %238 = vmatprep.subr.bf16.mxu0 0
    %239 = vmatpush1.bf16.xpose.msra.mxu0 0
    %240 = vmatprep.subr.bf16.mxu0 0
    %241 = vmatpush1.bf16.xpose.msra.mxu0 0
    %242 = vmatprep.subr.bf16.mxu0 0
    %243 = vmatpush1.bf16.xpose.msra.mxu0 0
    %244 = vmatprep.mubr.bf16.mxu0 0
    %245 = vmatmul.mubr.bf16.gmra.mrb[0].mxu0 %v207
    %v246 = vpop.f32.mrb[0].mxu0
    %v247 = vadd.f32 0.0, %v246
    %v248 = vpop.f32.mrb[0].mxu0
    %v249 = vpop.f32.mrb[0].mxu0
    %v250 = vpop.f32.mrb[0].mxu0
    %251 = vdwg.mxu0
    %252 = vrot.lane.b32.xlu0 %v101, 104
    %v253 = vpop.permute.xlu0 %252
    %254 = vrot.lane.b32.xlu0 %v101, 72
    %v255 = vpop.permute.xlu0 %254
    %v257 = vsel %vm105, %v253, 0
    %v260 = vsel %vm105, %v255, 0
    %262 = vmatprep.subr.bf16.mxu0 0
    %263 = vmatpush1.bf16.xpose.msra.mxu0 %v260
    %264 = vmatprep.subr.bf16.mxu0 0
    %265 = vmatpush1.bf16.xpose.msra.mxu0 0
    %266 = vmatprep.subr.bf16.mxu0 0
    %267 = vmatpush1.bf16.xpose.msra.mxu0 0
    %268 = vmatprep.subr.bf16.mxu0 0
    %269 = vmatpush1.bf16.xpose.msra.mxu0 0
    %270 = vmatprep.subr.bf16.mxu0 0
    %271 = vmatpush1.bf16.xpose.msra.mxu0 0
    %272 = vmatprep.subr.bf16.mxu0 0
    %273 = vmatpush1.bf16.xpose.msra.mxu0 0
    %274 = vmatprep.subr.bf16.mxu0 0
    %275 = vmatpush1.bf16.xpose.msra.mxu0 0
    %276 = vmatprep.subr.bf16.mxu0 0
    %277 = vmatpush1.bf16.xpose.msra.mxu0 0
    %278 = vmatprep.subr.bf16.mxu0 0
    %279 = vmatpush1.bf16.xpose.msra.mxu0 0
    %280 = vmatprep.subr.bf16.mxu0 0
    %281 = vmatpush1.bf16.xpose.msra.mxu0 0
    %282 = vmatprep.subr.bf16.mxu0 0
    %283 = vmatpush1.bf16.xpose.msra.mxu0 0
    %284 = vmatprep.subr.bf16.mxu0 0
    %285 = vmatpush1.bf16.xpose.msra.mxu0 0
    %286 = vmatprep.subr.bf16.mxu0 0
    %287 = vmatpush1.bf16.xpose.msra.mxu0 0
    %288 = vmatprep.subr.bf16.mxu0 0
    %289 = vmatpush1.bf16.xpose.msra.mxu0 0
    %290 = vmatprep.subr.bf16.mxu0 0
    %291 = vmatpush1.bf16.xpose.msra.mxu0 0
    %292 = vmatprep.subr.bf16.mxu0 0
    %293 = vmatpush1.bf16.xpose.msra.mxu0 0
    %294 = vmatprep.mubr.bf16.mxu0 0
    %295 = vmatmul.mubr.bf16.gmra.mrb[0].mxu0 %v257
    %v296 = vpop.f32.mrb[0].mxu0
    %v297 = vadd.f32 0.0, %v296
    %v298 = vpop.f32.mrb[0].mxu0
    %v299 = vpop.f32.mrb[0].mxu0
    %v300 = vpop.f32.mrb[0].mxu0
    %301 = vdwg.mxu0
    %v302 = vpack.c.bf16 %v98, %v98
    %304 = vrot.lane.b32.xlu0 %v302, 96
    %v305 = vpop.permute.xlu0 %304
    %v307 = vsel %vm105, %v302, 0
    %v310 = vsel %vm105, %v305, 0
    %312 = vmatprep.subr.bf16.mxu0 0
    %313 = vmatpush1.bf16.xpose.msra.mxu0 %v310
    %314 = vmatprep.subr.bf16.mxu0 0
    %315 = vmatpush1.bf16.xpose.msra.mxu0 0
    %316 = vmatprep.subr.bf16.mxu0 0
    %317 = vmatpush1.bf16.xpose.msra.mxu0 0
    %318 = vmatprep.subr.bf16.mxu0 0
    %319 = vmatpush1.bf16.xpose.msra.mxu0 0
    %320 = vmatprep.subr.bf16.mxu0 0
    %321 = vmatpush1.bf16.xpose.msra.mxu0 0
    %322 = vmatprep.subr.bf16.mxu0 0
    %323 = vmatpush1.bf16.xpose.msra.mxu0 0
    %324 = vmatprep.subr.bf16.mxu0 0
    %325 = vmatpush1.bf16.xpose.msra.mxu0 0
    %326 = vmatprep.subr.bf16.mxu0 0
    %327 = vmatpush1.bf16.xpose.msra.mxu0 0
    %328 = vmatprep.subr.bf16.mxu0 0
    %329 = vmatpush1.bf16.xpose.msra.mxu0 0
    %330 = vmatprep.subr.bf16.mxu0 0
    %331 = vmatpush1.bf16.xpose.msra.mxu0 0
    %332 = vmatprep.subr.bf16.mxu0 0
    %333 = vmatpush1.bf16.xpose.msra.mxu0 0
    %334 = vmatprep.subr.bf16.mxu0 0
    %335 = vmatpush1.bf16.xpose.msra.mxu0 0
    %336 = vmatprep.subr.bf16.mxu0 0
    %337 = vmatpush1.bf16.xpose.msra.mxu0 0
    %338 = vmatprep.subr.bf16.mxu0 0
    %339 = vmatpush1.bf16.xpose.msra.mxu0 0
    %340 = vmatprep.subr.bf16.mxu0 0
    %341 = vmatpush1.bf16.xpose.msra.mxu0 0
    %342 = vmatprep.subr.bf16.mxu0 0
    %343 = vmatpush1.bf16.xpose.msra.mxu0 0
    %344 = vmatprep.mubr.bf16.mxu0 0
    %345 = vmatmul.mubr.bf16.gmra.mrb[0].mxu0 %v307
    %v346 = vpop.f32.mrb[0].mxu0
    %v347 = vadd.f32 0.0, %v346
    %v348 = vpop.f32.mrb[0].mxu0
    %v349 = vpop.f32.mrb[0].mxu0
    %v350 = vpop.f32.mrb[0].mxu0
    %351 = vdwg.mxu0
    %352 = vrot.lane.b32.xlu0 %v302, 120
    %v353 = vpop.permute.xlu0 %352
    %354 = vrot.lane.b32.xlu0 %v302, 88
    %v355 = vpop.permute.xlu0 %354
    %v357 = vsel %vm105, %v353, 0
    %v360 = vsel %vm105, %v355, 0
    %362 = vmatprep.subr.bf16.mxu0 0
    %363 = vmatpush1.bf16.xpose.msra.mxu0 %v360
    %364 = vmatprep.subr.bf16.mxu0 0
    %365 = vmatpush1.bf16.xpose.msra.mxu0 0
    %366 = vmatprep.subr.bf16.mxu0 0
    %367 = vmatpush1.bf16.xpose.msra.mxu0 0
    %368 = vmatprep.subr.bf16.mxu0 0
    %369 = vmatpush1.bf16.xpose.msra.mxu0 0
    %370 = vmatprep.subr.bf16.mxu0 0
    %371 = vmatpush1.bf16.xpose.msra.mxu0 0
    %372 = vmatprep.subr.bf16.mxu0 0
    %373 = vmatpush1.bf16.xpose.msra.mxu0 0
    %374 = vmatprep.subr.bf16.mxu0 0
    %375 = vmatpush1.bf16.xpose.msra.mxu0 0
    %376 = vmatprep.subr.bf16.mxu0 0
    %377 = vmatpush1.bf16.xpose.msra.mxu0 0
    %378 = vmatprep.subr.bf16.mxu0 0
    %379 = vmatpush1.bf16.xpose.msra.mxu0 0
    %380 = vmatprep.subr.bf16.mxu0 0
    %381 = vmatpush1.bf16.xpose.msra.mxu0 0
    %382 = vmatprep.subr.bf16.mxu0 0
    %383 = vmatpush1.bf16.xpose.msra.mxu0 0
    %384 = vmatprep.subr.bf16.mxu0 0
    %385 = vmatpush1.bf16.xpose.msra.mxu0 0
    %386 = vmatprep.subr.bf16.mxu0 0
    %387 = vmatpush1.bf16.xpose.msra.mxu0 0
    %388 = vmatprep.subr.bf16.mxu0 0
    %389 = vmatpush1.bf16.xpose.msra.mxu0 0
    %390 = vmatprep.subr.bf16.mxu0 0
    %391 = vmatpush1.bf16.xpose.msra.mxu0 0
    %392 = vmatprep.subr.bf16.mxu0 0
    %393 = vmatpush1.bf16.xpose.msra.mxu0 0
    %394 = vmatprep.mubr.bf16.mxu0 0
    %395 = vmatmul.mubr.bf16.gmra.mrb[0].mxu0 %v357
    %v396 = vpop.f32.mrb[0].mxu0
    %v397 = vadd.f32 0.0, %v396
    %v398 = vpop.f32.mrb[0].mxu0
    %v399 = vpop.f32.mrb[0].mxu0
    %v400 = vpop.f32.mrb[0].mxu0
    %401 = vdwg.mxu0
    %402 = vrot.lane.b32.xlu0 %v302, 112
    %v403 = vpop.permute.xlu0 %402
    %404 = vrot.lane.b32.xlu0 %v302, 80
    %v405 = vpop.permute.xlu0 %404
    %v407 = vsel %vm105, %v403, 0
    %v410 = vsel %vm105, %v405, 0
    %412 = vmatprep.subr.bf16.mxu0 0
    %413 = vmatpush1.bf16.xpose.msra.mxu0 %v410
    %414 = vmatprep.subr.bf16.mxu0 0
    %415 = vmatpush1.bf16.xpose.msra.mxu0 0
    %416 = vmatprep.subr.bf16.mxu0 0
    %417 = vmatpush1.bf16.xpose.msra.mxu0 0
    %418 = vmatprep.subr.bf16.mxu0 0
    %419 = vmatpush1.bf16.xpose.msra.mxu0 0
    %420 = vmatprep.subr.bf16.mxu0 0
    %421 = vmatpush1.bf16.xpose.msra.mxu0 0
    %422 = vmatprep.subr.bf16.mxu0 0
    %423 = vmatpush1.bf16.xpose.msra.mxu0 0
    %424 = vmatprep.subr.bf16.mxu0 0
    %425 = vmatpush1.bf16.xpose.msra.mxu0 0
    %426 = vmatprep.subr.bf16.mxu0 0
    %427 = vmatpush1.bf16.xpose.msra.mxu0 0
    %428 = vmatprep.subr.bf16.mxu0 0
    %429 = vmatpush1.bf16.xpose.msra.mxu0 0
    %430 = vmatprep.subr.bf16.mxu0 0
    %431 = vmatpush1.bf16.xpose.msra.mxu0 0
    %432 = vmatprep.subr.bf16.mxu0 0
    %433 = vmatpush1.bf16.xpose.msra.mxu0 0
    %434 = vmatprep.subr.bf16.mxu0 0
    %435 = vmatpush1.bf16.xpose.msra.mxu0 0
    %436 = vmatprep.subr.bf16.mxu0 0
    %437 = vmatpush1.bf16.xpose.msra.mxu0 0
    %438 = vmatprep.subr.bf16.mxu0 0
    %439 = vmatpush1.bf16.xpose.msra.mxu0 0
    %440 = vmatprep.subr.bf16.mxu0 0
    %441 = vmatpush1.bf16.xpose.msra.mxu0 0
    %442 = vmatprep.subr.bf16.mxu0 0
    %443 = vmatpush1.bf16.xpose.msra.mxu0 0
    %444 = vmatprep.mubr.bf16.mxu0 0
    %445 = vmatmul.mubr.bf16.gmra.mrb[0].mxu0 %v407
    %v446 = vpop.f32.mrb[0].mxu0
    %v447 = vadd.f32 0.0, %v446
    %v448 = vpop.f32.mrb[0].mxu0
    %v449 = vpop.f32.mrb[0].mxu0
    %v450 = vpop.f32.mrb[0].mxu0
    %451 = vdwg.mxu0
    %452 = vrot.lane.b32.xlu0 %v302, 104
    %v453 = vpop.permute.xlu0 %452
    %454 = vrot.lane.b32.xlu0 %v302, 72
    %v455 = vpop.permute.xlu0 %454
    %v457 = vsel %vm105, %v453, 0
    %v460 = vsel %vm105, %v455, 0
    %462 = vmatprep.subr.bf16.mxu0 0
    %463 = vmatpush1.bf16.xpose.msra.mxu0 %v460
    %464 = vmatprep.subr.bf16.mxu0 0
    %465 = vmatpush1.bf16.xpose.msra.mxu0 0
    %466 = vmatprep.subr.bf16.mxu0 0
    %467 = vmatpush1.bf16.xpose.msra.mxu0 0
    %468 = vmatprep.subr.bf16.mxu0 0
    %469 = vmatpush1.bf16.xpose.msra.mxu0 0
    %470 = vmatprep.subr.bf16.mxu0 0
    %471 = vmatpush1.bf16.xpose.msra.mxu0 0
    %472 = vmatprep.subr.bf16.mxu0 0
    %473 = vmatpush1.bf16.xpose.msra.mxu0 0
    %474 = vmatprep.subr.bf16.mxu0 0
    %475 = vmatpush1.bf16.xpose.msra.mxu0 0
    %476 = vmatprep.subr.bf16.mxu0 0
    %477 = vmatpush1.bf16.xpose.msra.mxu0 0
    %478 = vmatprep.subr.bf16.mxu0 0
    %479 = vmatpush1.bf16.xpose.msra.mxu0 0
    %480 = vmatprep.subr.bf16.mxu0 0
    %481 = vmatpush1.bf16.xpose.msra.mxu0 0
    %482 = vmatprep.subr.bf16.mxu0 0
    %483 = vmatpush1.bf16.xpose.msra.mxu0 0
    %484 = vmatprep.subr.bf16.mxu0 0
    %485 = vmatpush1.bf16.xpose.msra.mxu0 0
    %486 = vmatprep.subr.bf16.mxu0 0
    %487 = vmatpush1.bf16.xpose.msra.mxu0 0
    %488 = vmatprep.subr.bf16.mxu0 0
    %489 = vmatpush1.bf16.xpose.msra.mxu0 0
    %490 = vmatprep.subr.bf16.mxu0 0
    %491 = vmatpush1.bf16.xpose.msra.mxu0 0
    %492 = vmatprep.subr.bf16.mxu0 0
    %493 = vmatpush1.bf16.xpose.msra.mxu0 0
    %494 = vmatprep.mubr.bf16.mxu0 0
    %495 = vmatmul.mubr.bf16.gmra.mrb[0].mxu0 %v457
    %v496 = vpop.f32.mrb[0].mxu0
    %v497 = vadd.f32 0.0, %v496
    %v498 = vpop.f32.mrb[0].mxu0
    %v499 = vpop.f32.mrb[0].mxu0
    %v500 = vpop.f32.mrb[0].mxu0
    %501 = vdwg.mxu0
    %v502 = vld [vmem:[%s2 + $0xa8] sm:$0xff]
    %v503 = vld [vmem:[%s2 + $0xb0] sm:$0xff]
    %v504 = vmul.f32 %v147, 0.35355338
    %v505 = vmul.f32 %v197, 0.35355338
    %v506 = vmul.f32 %v247, 0.35355338
    %v507 = vmul.f32 %v297, 0.35355338
    %v508 = vmul.f32 %v347, 0.35355338
    %v509 = vmul.f32 %v397, 0.35355338
    %v510 = vmul.f32 %v447, 0.35355338
    %v511 = vmul.f32 %v497, 0.35355338
    %v512 = vadd.f32 %v504, %v502
    %v513 = vadd.f32 %v505, %v502
    %v514 = vadd.f32 %v506, %v502
    %v515 = vadd.f32 %v507, %v502
    %v516 = vadd.f32 %v508, %v503
    %v517 = vadd.f32 %v509, %v503
    %v518 = vadd.f32 %v510, %v503
    %v519 = vadd.f32 %v511, %v503
    %v520 = vsel %vm105, %v512, -inf
    %521 = vmax.xlane.f32.xlu0 %v520
    %v522 = vpop.xlane.xlu0 %521
    %v523 = vsel %vm105, %v513, -inf
    %524 = vmax.xlane.f32.xlu0 %v523
    %v525 = vpop.xlane.xlu0 %524
    %v526 = vsel %vm105, %v514, -inf
    %527 = vmax.xlane.f32.xlu0 %v526
    %v528 = vpop.xlane.xlu0 %527
    %v529 = vsel %vm105, %v515, -inf
    %530 = vmax.xlane.f32.xlu0 %v529
    %v531 = vpop.xlane.xlu0 %530
    %v532 = vsel %vm105, %v516, -inf
    %533 = vmax.xlane.f32.xlu0 %v532
    %v534 = vpop.xlane.xlu0 %533
    %v535 = vsel %vm105, %v517, -inf
    %536 = vmax.xlane.f32.xlu0 %v535
    %v537 = vpop.xlane.xlu0 %536
    %v538 = vsel %vm105, %v518, -inf
    %539 = vmax.xlane.f32.xlu0 %v538
    %v540 = vpop.xlane.xlu0 %539
    %v541 = vsel %vm105, %v519, -inf
    %542 = vmax.xlane.f32.xlu0 %v541
    %v543 = vpop.xlane.xlu0 %542
    %v544 = vsub.f32 %v512, %v522
    %v545 = vsub.f32 %v513, %v525
    %v546 = vsub.f32 %v514, %v528
    %v547 = vsub.f32 %v515, %v531
    %v548 = vsub.f32 %v516, %v534
    %v549 = vsub.f32 %v517, %v537
    %v550 = vsub.f32 %v518, %v540
    %v551 = vsub.f32 %v519, %v543
    %v552 = vmul.f32 %v544, 1.442695
    %v553 = vpow.pop %v552
    %v554 = vmul.f32 %v545, 1.442695
    %v555 = vpow.pop %v554
    %v556 = vmul.f32 %v546, 1.442695
    %v557 = vpow.pop %v556
    %v558 = vmul.f32 %v547, 1.442695
    %v559 = vpow.pop %v558
    %v560 = vmul.f32 %v548, 1.442695
    %v561 = vpow.pop %v560
    %v562 = vmul.f32 %v549, 1.442695
    %v563 = vpow.pop %v562
    %v564 = vmul.f32 %v550, 1.442695
    %v565 = vpow.pop %v564
    %v566 = vmul.f32 %v551, 1.442695
    %v567 = vpow.pop %v566
    %v568 = vsel %vm105, %v553, 0.0
    %569 = vadd.xlane.f32.xlu0 %v568
    %v570 = vpop.xlane.xlu0 %569
    %v571 = vsel %vm105, %v555, 0.0
    %572 = vadd.xlane.f32.xlu0 %v571
    %v573 = vpop.xlane.xlu0 %572
    %v574 = vsel %vm105, %v557, 0.0
    %575 = vadd.xlane.f32.xlu0 %v574
    %v576 = vpop.xlane.xlu0 %575
    %v577 = vsel %vm105, %v559, 0.0
    %578 = vadd.xlane.f32.xlu0 %v577
    %v579 = vpop.xlane.xlu0 %578
    %v580 = vsel %vm105, %v561, 0.0
    %581 = vadd.xlane.f32.xlu0 %v580
    %v582 = vpop.xlane.xlu0 %581
    %v583 = vsel %vm105, %v563, 0.0
    %584 = vadd.xlane.f32.xlu0 %v583
    %v585 = vpop.xlane.xlu0 %584
    %v586 = vsel %vm105, %v565, 0.0
    %587 = vadd.xlane.f32.xlu0 %v586
    %v588 = vpop.xlane.xlu0 %587
    %v589 = vsel %vm105, %v567, 0.0
    %590 = vadd.xlane.f32.xlu0 %v589
    %v591 = vpop.xlane.xlu0 %590
    %v592 = vrcp.pop %v570
    %v593 = vrcp.pop %v573
    %v594 = vrcp.pop %v576
    %v595 = vrcp.pop %v579
    %v596 = vrcp.pop %v582
    %v597 = vrcp.pop %v585
    %v598 = vrcp.pop %v588
    %v599 = vrcp.pop %v591
    %v600 = vmul.f32 %v553, %v592
    %v601 = vmul.f32 %v555, %v593
    %v602 = vmul.f32 %v557, %v594
    %v603 = vmul.f32 %v559, %v595
    %v604 = vmul.f32 %v561, %v596
    %v605 = vmul.f32 %v563, %v597
    %v606 = vmul.f32 %v565, %v598
    %v607 = vmul.f32 %v567, %v599
    %v608 = vpack.c.bf16 %v600, %v600
    %609 = vrot.lane.b32.xlu0 %v101, 64
    %v610 = vpop.permute.xlu0 %609
    %v612 = vsel %vm105, %v608, 0
    %vm614 = vcmask 1043456
    %v616 = vsel %vm614, %v610, 0
    %618 = vmatprep.subr.bf16.mxu0 0
    %619 = vmatpush1.bf16.msra.mxu0 %v616
    %620 = vmatprep.subr.bf16.mxu0 0
    %621 = vmatpush1.bf16.msra.mxu0 0
    %622 = vmatprep.subr.bf16.mxu0 0
    %623 = vmatpush1.bf16.msra.mxu0 0
    %624 = vmatprep.subr.bf16.mxu0 0
    %625 = vmatpush1.bf16.msra.mxu0 0
    %626 = vmatprep.subr.bf16.mxu0 0
    %627 = vmatpush1.bf16.msra.mxu0 0
    %628 = vmatprep.subr.bf16.mxu0 0
    %629 = vmatpush1.bf16.msra.mxu0 0
    %630 = vmatprep.subr.bf16.mxu0 0
    %631 = vmatpush1.bf16.msra.mxu0 0
    %632 = vmatprep.subr.bf16.mxu0 0
    %633 = vmatpush1.bf16.msra.mxu0 0
    %634 = vmatprep.subr.bf16.mxu0 0
    %635 = vmatpush1.bf16.msra.mxu0 0
    %636 = vmatprep.subr.bf16.mxu0 0
    %637 = vmatpush1.bf16.msra.mxu0 0
    %638 = vmatprep.subr.bf16.mxu0 0
    %639 = vmatpush1.bf16.msra.mxu0 0
    %640 = vmatprep.subr.bf16.mxu0 0
    %641 = vmatpush1.bf16.msra.mxu0 0
    %642 = vmatprep.subr.bf16.mxu0 0
    %643 = vmatpush1.bf16.msra.mxu0 0
    %644 = vmatprep.subr.bf16.mxu0 0
    %645 = vmatpush1.bf16.msra.mxu0 0
    %646 = vmatprep.subr.bf16.mxu0 0
    %647 = vmatpush1.bf16.msra.mxu0 0
    %648 = vmatprep.subr.bf16.mxu0 0
    %649 = vmatpush1.bf16.msra.mxu0 0
    %650 = vmatprep.mubr.bf16.mxu0 0
    %651 = vmatmul.mubr.bf16.gmra.mrb[0].mxu0 %v612
    %v652 = vpop.f32.mrb[0].mxu0
    %v653 = vadd.f32 0.0, %v652
    %v654 = vpop.f32.mrb[0].mxu0
    %v655 = vpop.f32.mrb[0].mxu0
    %v656 = vpop.f32.mrb[0].mxu0
    %657 = vdwg.mxu0
    %v658 = vpack.c.bf16 %v601, %v601
    %659 = vrot.lane.b32.xlu0 %v101, 56
    %v660 = vpop.permute.xlu0 %659
    %v662 = vsel %vm105, %v658, 0
    %v665 = vsel %vm614, %v660, 0
    %667 = vmatprep.subr.bf16.mxu0 0
    %668 = vmatpush1.bf16.msra.mxu0 %v665
    %669 = vmatprep.subr.bf16.mxu0 0
    %670 = vmatpush1.bf16.msra.mxu0 0
    %671 = vmatprep.subr.bf16.mxu0 0
    %672 = vmatpush1.bf16.msra.mxu0 0
    %673 = vmatprep.subr.bf16.mxu0 0
    %674 = vmatpush1.bf16.msra.mxu0 0
    %675 = vmatprep.subr.bf16.mxu0 0
    %676 = vmatpush1.bf16.msra.mxu0 0
    %677 = vmatprep.subr.bf16.mxu0 0
    %678 = vmatpush1.bf16.msra.mxu0 0
    %679 = vmatprep.subr.bf16.mxu0 0
    %680 = vmatpush1.bf16.msra.mxu0 0
    %681 = vmatprep.subr.bf16.mxu0 0
    %682 = vmatpush1.bf16.msra.mxu0 0
    %683 = vmatprep.subr.bf16.mxu0 0
    %684 = vmatpush1.bf16.msra.mxu0 0
    %685 = vmatprep.subr.bf16.mxu0 0
    %686 = vmatpush1.bf16.msra.mxu0 0
    %687 = vmatprep.subr.bf16.mxu0 0
    %688 = vmatpush1.bf16.msra.mxu0 0
    %689 = vmatprep.subr.bf16.mxu0 0
    %690 = vmatpush1.bf16.msra.mxu0 0
    %691 = vmatprep.subr.bf16.mxu0 0
    %692 = vmatpush1.bf16.msra.mxu0 0
    %693 = vmatprep.subr.bf16.mxu0 0
    %694 = vmatpush1.bf16.msra.mxu0 0
    %695 = vmatprep.subr.bf16.mxu0 0
    %696 = vmatpush1.bf16.msra.mxu0 0
    %697 = vmatprep.subr.bf16.mxu0 0
    %698 = vmatpush1.bf16.msra.mxu0 0
    %699 = vmatprep.mubr.bf16.mxu0 0
    %700 = vmatmul.mubr.bf16.gmra.mrb[0].mxu0 %v662
    %v701 = vpop.f32.mrb[0].mxu0
    %v702 = vadd.f32 0.0, %v701
    %v703 = vpop.f32.mrb[0].mxu0
    %v704 = vpop.f32.mrb[0].mxu0
    %v705 = vpop.f32.mrb[0].mxu0
    %706 = vdwg.mxu0
    %v707 = vpack.c.bf16 %v602, %v602
    %708 = vrot.lane.b32.xlu0 %v101, 48
    %v709 = vpop.permute.xlu0 %708
    %v711 = vsel %vm105, %v707, 0
    %v714 = vsel %vm614, %v709, 0
    %716 = vmatprep.subr.bf16.mxu0 0
    %717 = vmatpush1.bf16.msra.mxu0 %v714
    %718 = vmatprep.subr.bf16.mxu0 0
    %719 = vmatpush1.bf16.msra.mxu0 0
    %720 = vmatprep.subr.bf16.mxu0 0
    %721 = vmatpush1.bf16.msra.mxu0 0
    %722 = vmatprep.subr.bf16.mxu0 0
    %723 = vmatpush1.bf16.msra.mxu0 0
    %724 = vmatprep.subr.bf16.mxu0 0
    %725 = vmatpush1.bf16.msra.mxu0 0
    %726 = vmatprep.subr.bf16.mxu0 0
    %727 = vmatpush1.bf16.msra.mxu0 0
    %728 = vmatprep.subr.bf16.mxu0 0
    %729 = vmatpush1.bf16.msra.mxu0 0
    %730 = vmatprep.subr.bf16.mxu0 0
    %731 = vmatpush1.bf16.msra.mxu0 0
    %732 = vmatprep.subr.bf16.mxu0 0
    %733 = vmatpush1.bf16.msra.mxu0 0
    %734 = vmatprep.subr.bf16.mxu0 0
    %735 = vmatpush1.bf16.msra.mxu0 0
    %736 = vmatprep.subr.bf16.mxu0 0
    %737 = vmatpush1.bf16.msra.mxu0 0
    %738 = vmatprep.subr.bf16.mxu0 0
    %739 = vmatpush1.bf16.msra.mxu0 0
    %740 = vmatprep.subr.bf16.mxu0 0
    %741 = vmatpush1.bf16.msra.mxu0 0
    %742 = vmatprep.subr.bf16.mxu0 0
    %743 = vmatpush1.bf16.msra.mxu0 0
    %744 = vmatprep.subr.bf16.mxu0 0
    %745 = vmatpush1.bf16.msra.mxu0 0
    %746 = vmatprep.subr.bf16.mxu0 0
    %747 = vmatpush1.bf16.msra.mxu0 0
    %748 = vmatprep.mubr.bf16.mxu0 0
    %749 = vmatmul.mubr.bf16.gmra.mrb[0].mxu0 %v711
    %v750 = vpop.f32.mrb[0].mxu0
    %v751 = vadd.f32 0.0, %v750
    %v752 = vpop.f32.mrb[0].mxu0
    %v753 = vpop.f32.mrb[0].mxu0
    %v754 = vpop.f32.mrb[0].mxu0
    %755 = vdwg.mxu0
    %v756 = vpack.c.bf16 %v603, %v603
    %757 = vrot.lane.b32.xlu0 %v101, 40
    %v758 = vpop.permute.xlu0 %757
    %v760 = vsel %vm105, %v756, 0
    %v763 = vsel %vm614, %v758, 0
    %765 = vmatprep.subr.bf16.mxu0 0
    %766 = vmatpush1.bf16.msra.mxu0 %v763
    %767 = vmatprep.subr.bf16.mxu0 0
    %768 = vmatpush1.bf16.msra.mxu0 0
    %769 = vmatprep.subr.bf16.mxu0 0
    %770 = vmatpush1.bf16.msra.mxu0 0
    %771 = vmatprep.subr.bf16.mxu0 0
    %772 = vmatpush1.bf16.msra.mxu0 0
    %773 = vmatprep.subr.bf16.mxu0 0
    %774 = vmatpush1.bf16.msra.mxu0 0
    %775 = vmatprep.subr.bf16.mxu0 0
    %776 = vmatpush1.bf16.msra.mxu0 0
    %777 = vmatprep.subr.bf16.mxu0 0
    %778 = vmatpush1.bf16.msra.mxu0 0
    %779 = vmatprep.subr.bf16.mxu0 0
    %780 = vmatpush1.bf16.msra.mxu0 0
    %781 = vmatprep.subr.bf16.mxu0 0
    %782 = vmatpush1.bf16.msra.mxu0 0
    %783 = vmatprep.subr.bf16.mxu0 0
    %784 = vmatpush1.bf16.msra.mxu0 0
    %785 = vmatprep.subr.bf16.mxu0 0
    %786 = vmatpush1.bf16.msra.mxu0 0
    %787 = vmatprep.subr.bf16.mxu0 0
    %788 = vmatpush1.bf16.msra.mxu0 0
    %789 = vmatprep.subr.bf16.mxu0 0
    %790 = vmatpush1.bf16.msra.mxu0 0
    %791 = vmatprep.subr.bf16.mxu0 0
    %792 = vmatpush1.bf16.msra.mxu0 0
    %793 = vmatprep.subr.bf16.mxu0 0
    %794 = vmatpush1.bf16.msra.mxu0 0
    %795 = vmatprep.subr.bf16.mxu0 0
    %796 = vmatpush1.bf16.msra.mxu0 0
    %797 = vmatprep.mubr.bf16.mxu0 0
    %798 = vmatmul.mubr.bf16.gmra.mrb[0].mxu0 %v760
    %v799 = vpop.f32.mrb[0].mxu0
    %v800 = vadd.f32 0.0, %v799
    %v801 = vpop.f32.mrb[0].mxu0
    %v802 = vpop.f32.mrb[0].mxu0
    %v803 = vpop.f32.mrb[0].mxu0
    %804 = vdwg.mxu0
    %806 = vrot.lane.b32.xlu0 %v702, 8
    %v807 = vpop.permute.xlu0 %806
    %810 = vrot.lane.b32.xlu0 %v751, 16
    %v811 = vpop.permute.xlu0 %810
    %814 = vrot.lane.b32.xlu0 %v800, 24
    %v815 = vpop.permute.xlu0 %814
    %v817 = vsel %vm105, %v653, %v807
    %vm818 = vcmask 130048
    %v819 = vsel %vm818, %v817, %v811
    %vm820 = vcmask 195584
    %v821 = vsel %vm820, %v819, %v815
    %v822 = vpack.c.bf16 %v604, %v604
    %823 = vrot.lane.b32.xlu0 %v302, 64
    %v824 = vpop.permute.xlu0 %823
    %v826 = vsel %vm105, %v822, 0
    %v829 = vsel %vm614, %v824, 0
    %831 = vmatprep.subr.bf16.mxu0 0
    %832 = vmatpush1.bf16.msra.mxu0 %v829
    %833 = vmatprep.subr.bf16.mxu0 0
    %834 = vmatpush1.bf16.msra.mxu0 0
    %835 = vmatprep.subr.bf16.mxu0 0
    %836 = vmatpush1.bf16.msra.mxu0 0
    %837 = vmatprep.subr.bf16.mxu0 0
    %838 = vmatpush1.bf16.msra.mxu0 0
    %839 = vmatprep.subr.bf16.mxu0 0
    %840 = vmatpush1.bf16.msra.mxu0 0
    %841 = vmatprep.subr.bf16.mxu0 0
    %842 = vmatpush1.bf16.msra.mxu0 0
    %843 = vmatprep.subr.bf16.mxu0 0
    %844 = vmatpush1.bf16.msra.mxu0 0
    %845 = vmatprep.subr.bf16.mxu0 0
    %846 = vmatpush1.bf16.msra.mxu0 0
    %847 = vmatprep.subr.bf16.mxu0 0
    %848 = vmatpush1.bf16.msra.mxu0 0
    %849 = vmatprep.subr.bf16.mxu0 0
    %850 = vmatpush1.bf16.msra.mxu0 0
    %851 = vmatprep.subr.bf16.mxu0 0
    %852 = vmatpush1.bf16.msra.mxu0 0
    %853 = vmatprep.subr.bf16.mxu0 0
    %854 = vmatpush1.bf16.msra.mxu0 0
    %855 = vmatprep.subr.bf16.mxu0 0
    %856 = vmatpush1.bf16.msra.mxu0 0
    %857 = vmatprep.subr.bf16.mxu0 0
    %858 = vmatpush1.bf16.msra.mxu0 0
    %859 = vmatprep.subr.bf16.mxu0 0
    %860 = vmatpush1.bf16.msra.mxu0 0
    %861 = vmatprep.subr.bf16.mxu0 0
    %862 = vmatpush1.bf16.msra.mxu0 0
    %863 = vmatprep.mubr.bf16.mxu0 0
    %864 = vmatmul.mubr.bf16.gmra.mrb[0].mxu0 %v826
    %v865 = vpop.f32.mrb[0].mxu0
    %v866 = vadd.f32 0.0, %v865
    %v867 = vpop.f32.mrb[0].mxu0
    %v868 = vpop.f32.mrb[0].mxu0
    %v869 = vpop.f32.mrb[0].mxu0
    %870 = vdwg.mxu0
    %v871 = vpack.c.bf16 %v605, %v605
    %872 = vrot.lane.b32.xlu0 %v302, 56
    %v873 = vpop.permute.xlu0 %872
    %v875 = vsel %vm105, %v871, 0
    %v878 = vsel %vm614, %v873, 0
    %880 = vmatprep.subr.bf16.mxu0 0
    %881 = vmatpush1.bf16.msra.mxu0 %v878
    %882 = vmatprep.subr.bf16.mxu0 0
    %883 = vmatpush1.bf16.msra.mxu0 0
    %884 = vmatprep.subr.bf16.mxu0 0
    %885 = vmatpush1.bf16.msra.mxu0 0
    %886 = vmatprep.subr.bf16.mxu0 0
    %887 = vmatpush1.bf16.msra.mxu0 0
    %888 = vmatprep.subr.bf16.mxu0 0
    %889 = vmatpush1.bf16.msra.mxu0 0
    %890 = vmatprep.subr.bf16.mxu0 0
    %891 = vmatpush1.bf16.msra.mxu0 0
    %892 = vmatprep.subr.bf16.mxu0 0
    %893 = vmatpush1.bf16.msra.mxu0 0
    %894 = vmatprep.subr.bf16.mxu0 0
    %895 = vmatpush1.bf16.msra.mxu0 0
    %896 = vmatprep.subr.bf16.mxu0 0
    %897 = vmatpush1.bf16.msra.mxu0 0
    %898 = vmatprep.subr.bf16.mxu0 0
    %899 = vmatpush1.bf16.msra.mxu0 0
    %900 = vmatprep.subr.bf16.mxu0 0
    %901 = vmatpush1.bf16.msra.mxu0 0
    %902 = vmatprep.subr.bf16.mxu0 0
    %903 = vmatpush1.bf16.msra.mxu0 0
    %904 = vmatprep.subr.bf16.mxu0 0
    %905 = vmatpush1.bf16.msra.mxu0 0
    %906 = vmatprep.subr.bf16.mxu0 0
    %907 = vmatpush1.bf16.msra.mxu0 0
    %908 = vmatprep.subr.bf16.mxu0 0
    %909 = vmatpush1.bf16.msra.mxu0 0
    %910 = vmatprep.subr.bf16.mxu0 0
    %911 = vmatpush1.bf16.msra.mxu0 0
    %912 = vmatprep.mubr.bf16.mxu0 0
    %913 = vmatmul.mubr.bf16.gmra.mrb[0].mxu0 %v875
    %v914 = vpop.f32.mrb[0].mxu0
    %v915 = vadd.f32 0.0, %v914
    %v916 = vpop.f32.mrb[0].mxu0
    %v917 = vpop.f32.mrb[0].mxu0
    %v918 = vpop.f32.mrb[0].mxu0
    %919 = vdwg.mxu0
    %v920 = vpack.c.bf16 %v606, %v606
    %921 = vrot.lane.b32.xlu0 %v302, 48
    %v922 = vpop.permute.xlu0 %921
    %v924 = vsel %vm105, %v920, 0
    %v927 = vsel %vm614, %v922, 0
    %929 = vmatprep.subr.bf16.mxu0 0
    %930 = vmatpush1.bf16.msra.mxu0 %v927
    %931 = vmatprep.subr.bf16.mxu0 0
    %932 = vmatpush1.bf16.msra.mxu0 0
    %933 = vmatprep.subr.bf16.mxu0 0
    %934 = vmatpush1.bf16.msra.mxu0 0
    %935 = vmatprep.subr.bf16.mxu0 0
    %936 = vmatpush1.bf16.msra.mxu0 0
    %937 = vmatprep.subr.bf16.mxu0 0
    %938 = vmatpush1.bf16.msra.mxu0 0
    %939 = vmatprep.subr.bf16.mxu0 0
    %940 = vmatpush1.bf16.msra.mxu0 0
    %941 = vmatprep.subr.bf16.mxu0 0
    %942 = vmatpush1.bf16.msra.mxu0 0
    %943 = vmatprep.subr.bf16.mxu0 0
    %944 = vmatpush1.bf16.msra.mxu0 0
    %945 = vmatprep.subr.bf16.mxu0 0
    %946 = vmatpush1.bf16.msra.mxu0 0
    %947 = vmatprep.subr.bf16.mxu0 0
    %948 = vmatpush1.bf16.msra.mxu0 0
    %949 = vmatprep.subr.bf16.mxu0 0
    %950 = vmatpush1.bf16.msra.mxu0 0
    %951 = vmatprep.subr.bf16.mxu0 0
    %952 = vmatpush1.bf16.msra.mxu0 0
    %953 = vmatprep.subr.bf16.mxu0 0
    %954 = vmatpush1.bf16.msra.mxu0 0
    %955 = vmatprep.subr.bf16.mxu0 0
    %956 = vmatpush1.bf16.msra.mxu0 0
    %957 = vmatprep.subr.bf16.mxu0 0
    %958 = vmatpush1.bf16.msra.mxu0 0
    %959 = vmatprep.subr.bf16.mxu0 0
    %960 = vmatpush1.bf16.msra.mxu0 0
    %961 = vmatprep.mubr.bf16.mxu0 0
    %962 = vmatmul.mubr.bf16.gmra.mrb[0].mxu0 %v924
    %v963 = vpop.f32.mrb[0].mxu0
    %v964 = vadd.f32 0.0, %v963
    %v965 = vpop.f32.mrb[0].mxu0
    %v966 = vpop.f32.mrb[0].mxu0
    %v967 = vpop.f32.mrb[0].mxu0
    %968 = vdwg.mxu0
    %v969 = vpack.c.bf16 %v607, %v607
    %970 = vrot.lane.b32.xlu0 %v302, 40
    %v971 = vpop.permute.xlu0 %970
    %v973 = vsel %vm105, %v969, 0
    %v976 = vsel %vm614, %v971, 0
    %978 = vmatprep.subr.bf16.mxu0 0
    %979 = vmatpush1.bf16.msra.mxu0 %v976
    %980 = vmatprep.subr.bf16.mxu0 0
    %981 = vmatpush1.bf16.msra.mxu0 0
    %982 = vmatprep.subr.bf16.mxu0 0
    %983 = vmatpush1.bf16.msra.mxu0 0
    %984 = vmatprep.subr.bf16.mxu0 0
    %985 = vmatpush1.bf16.msra.mxu0 0
    %986 = vmatprep.subr.bf16.mxu0 0
    %987 = vmatpush1.bf16.msra.mxu0 0
    %988 = vmatprep.subr.bf16.mxu0 0
    %989 = vmatpush1.bf16.msra.mxu0 0
    %990 = vmatprep.subr.bf16.mxu0 0
    %991 = vmatpush1.bf16.msra.mxu0 0
    %992 = vmatprep.subr.bf16.mxu0 0
    %993 = vmatpush1.bf16.msra.mxu0 0
    %994 = vmatprep.subr.bf16.mxu0 0
    %995 = vmatpush1.bf16.msra.mxu0 0
    %996 = vmatprep.subr.bf16.mxu0 0
    %997 = vmatpush1.bf16.msra.mxu0 0
    %998 = vmatprep.subr.bf16.mxu0 0
    %999 = vmatpush1.bf16.msra.mxu0 0
    %1000 = vmatprep.subr.bf16.mxu0 0
    %1001 = vmatpush1.bf16.msra.mxu0 0
    %1002 = vmatprep.subr.bf16.mxu0 0
    %1003 = vmatpush1.bf16.msra.mxu0 0
    %1004 = vmatprep.subr.bf16.mxu0 0
    %1005 = vmatpush1.bf16.msra.mxu0 0
    %1006 = vmatprep.subr.bf16.mxu0 0
    %1007 = vmatpush1.bf16.msra.mxu0 0
    %1008 = vmatprep.subr.bf16.mxu0 0
    %1009 = vmatpush1.bf16.msra.mxu0 0
    %1010 = vmatprep.mubr.bf16.mxu0 0
    %1011 = vmatmul.mubr.bf16.gmra.mrb[0].mxu0 %v973
    %v1012 = vpop.f32.mrb[0].mxu0
    %v1013 = vadd.f32 0.0, %v1012
    %v1014 = vpop.f32.mrb[0].mxu0
    %v1015 = vpop.f32.mrb[0].mxu0
    %v1016 = vpop.f32.mrb[0].mxu0
    %1017 = vdwg.mxu0
    %1019 = vrot.lane.b32.xlu0 %v915, 8
    %v1020 = vpop.permute.xlu0 %1019
    %1023 = vrot.lane.b32.xlu0 %v964, 16
    %v1024 = vpop.permute.xlu0 %1023
    %1027 = vrot.lane.b32.xlu0 %v1013, 24
    %v1028 = vpop.permute.xlu0 %1027
    %v1030 = vsel %vm105, %v866, %v1020
    %v1031 = vsel %vm818, %v1030, %v1024
    %v1032 = vsel %vm820, %v1031, %v1028
    %v1033 = vpack.c.bf16 %v1032, %v821
    %v1035 = vsel %vm56, %v1033, 0
    %1037 = vmatprep.subr.bf16.mxu0 0
    %1038 = vmatpush1.bf16.msra.mxu0 %v21
    %1039 = vmatprep.subr.bf16.mxu0 0
    %1040 = vmatpush1.bf16.msra.mxu0 %v22
    %1041 = vmatprep.subr.bf16.mxu0 0
    %1042 = vmatpush1.bf16.msra.mxu0 0
    %1043 = vmatprep.subr.bf16.mxu0 0
    %1044 = vmatpush1.bf16.msra.mxu0 0
    %1045 = vmatprep.subr.bf16.mxu0 0
    %1046 = vmatpush1.bf16.msra.mxu0 0
    %1047 = vmatprep.subr.bf16.mxu0 0
    %1048 = vmatpush1.bf16.msra.mxu0 0
    %1049 = vmatprep.subr.bf16.mxu0 0
    %1050 = vmatpush1.bf16.msra.mxu0 0
    %1051 = vmatprep.subr.bf16.mxu0 0
    %1052 = vmatpush1.bf16.msra.mxu0 0
    %1053 = vmatprep.subr.bf16.mxu0 0
    %1054 = vmatpush1.bf16.msra.mxu0 0
    %1055 = vmatprep.subr.bf16.mxu0 0
    %1056 = vmatpush1.bf16.msra.mxu0 0
    %1057 = vmatprep.subr.bf16.mxu0 0
    %1058 = vmatpush1.bf16.msra.mxu0 0
    %1059 = vmatprep.subr.bf16.mxu0 0
    %1060 = vmatpush1.bf16.msra.mxu0 0
    %1061 = vmatprep.subr.bf16.mxu0 0
    %1062 = vmatpush1.bf16.msra.mxu0 0
    %1063 = vmatprep.subr.bf16.mxu0 0
    %1064 = vmatpush1.bf16.msra.mxu0 0
    %1065 = vmatprep.subr.bf16.mxu0 0
    %1066 = vmatpush1.bf16.msra.mxu0 0
    %1067 = vmatprep.subr.bf16.mxu0 0
    %1068 = vmatpush1.bf16.msra.mxu0 0
    %1069 = vmatprep.mubr.bf16.mxu0 0
    %1070 = vmatmul.mubr.bf16.gmra.mrb[0].mxu0 %v1035
    %v1071 = vpop.f32.mrb[0].mxu0
    %v1072 = vadd.f32 0.0, %v1071
    %v1073 = vpop.f32.mrb[0].mxu0
    %v1074 = vpop.f32.mrb[0].mxu0
    %v1075 = vadd.f32 0.0, %v1074
    %v1076 = vpop.f32.mrb[0].mxu0
    %1077 = vdwg.mxu0
    %v1078 = vadd.f32 %v1072, %v55
    %v1079 = vadd.f32 %v1075, %v55
    %1082 = vrot.lane.b32.xlu0 %v1078, 32
    %v1083 = vpop.permute.xlu0 %1082
    %1084 = vrot.lane.b32.xlu0 %v1079, 32
    %v1085 = vpop.permute.xlu0 %1084
    %v1088 = vsel %vm56, %v1083, 0.0
    %1089 = vadd.xlane.f32.xlu0 %v1088
    %v1090 = vpop.xlane.xlu0 %1089
    %v1091 = vsel %vm56, %v1085, 0.0
    %1092 = vadd.xlane.f32.xlu0 %v1091
    %v1093 = vpop.xlane.xlu0 %1092
    %v1094 = vmul.f32 %v1090, 0.03125
    %v1095 = vmul.f32 %v1093, 0.03125
    %v1096 = vsub.f32 %v1078, %v1094
    %v1097 = vsub.f32 %v1079, %v1095
    %v1098 = vmul.f32 %v1096, %v1096
    %v1099 = vmul.f32 %v1097, %v1097
    %1102 = vrot.lane.b32.xlu0 %v1098, 32
    %v1103 = vpop.permute.xlu0 %1102
    %1104 = vrot.lane.b32.xlu0 %v1099, 32
    %v1105 = vpop.permute.xlu0 %1104
    %v1108 = vsel %vm56, %v1103, 0.0
    %1109 = vadd.xlane.f32.xlu0 %v1108
    %v1110 = vpop.xlane.xlu0 %1109
    %v1111 = vsel %vm56, %v1105, 0.0
    %1112 = vadd.xlane.f32.xlu0 %v1111
    %v1113 = vpop.xlane.xlu0 %1112
    %v1114 = vmul.f32 %v1110, 0.032258064
    %v1115 = vmul.f32 %v1113, 0.032258064
    %v1116 = vrsqrt.pop %v1114
    %v1117 = vmul.f32 %v1114, %v1116
    %vm1118 = vcmp.eq.f32.partialorder %v1114, inf
    %v1119 = vsel %vm1118, %v1114, %v1117
    %vm1120 = vcmp.eq.f32.partialorder %v1114, 0.0
    %v1121 = vand.u32 %v1114, 2147483648
    %v1122 = vsel %vm1120, %v1121, %v1119
    %v1123 = vrsqrt.pop %v1115
    %v1124 = vmul.f32 %v1115, %v1123
    %vm1125 = vcmp.eq.f32.partialorder %v1115, inf
    %v1126 = vsel %vm1125, %v1115, %v1124
    %vm1127 = vcmp.eq.f32.partialorder %v1115, 0.0
    %v1128 = vand.u32 %v1115, 2147483648
    %v1129 = vsel %vm1127, %v1128, %v1126
    %v1130 = vadd.f32 %v1122, 1e-06
    %v1131 = vadd.f32 %v1129, 1e-06
    %v1132 = vrcp.pop %v1130
    %v1133 = vrcp.pop %v1131
    %v1134 = vlaneseq
    %v1135 = vshrl.u32 %v1134, 7
    %v1136 = vsub.s32 3, %v1135
    %v1137 = vrot.slane %v16, %v1136
    %1140 = vrot.lane.b32.xlu0 %v1096, 32
    %v1141 = vpop.permute.xlu0 %1140
    %1142 = vrot.lane.b32.xlu0 %v1097, 32
    %v1143 = vpop.permute.xlu0 %1142
    %v1146 = vmul.f32 %v1137, %v1141
    %v1147 = vmul.f32 %v1137, %v1143
    %v1148 = vmul.f32 %v1146, %v1132
    %v1149 = vmul.f32 %v1147, %v1133
    %v1150 = vlaneseq
    %v1151 = vshrl.u32 %v1150, 7
    %v1152 = vsub.s32 4, %v1151
    %v1153 = vrot.slane %v16, %v1152
    %v1154 = vadd.f32 %v1148, %v1153
    %v1155 = vadd.f32 %v1149, %v1153
    %v1156 = vadd.f32 %v47, %v1154
    %v1157 = vadd.f32 %v48, %v1155
    %v1158 = vpack.c.bf16 %v1157, %v1156
    %v1159 = vlaneseq
    %v1160 = vshrl.u32 %v1159, 7
    %v1161 = vsub.s32 1, %v1160
    %v1162 = vrot.slane %v16, %v1161
    %v1164 = vsel %vm56, %v1158, 0
    %1166 = vmatprep.subr.bf16.mxu0 0
    %1167 = vmatpush1.bf16.msra.mxu0 %v27
    %1168 = vmatprep.subr.bf16.mxu0 0
    %1169 = vmatpush1.bf16.msra.mxu0 %v28
    %1170 = vmatprep.subr.bf16.mxu0 0
    %1171 = vmatpush1.bf16.msra.mxu0 0
    %1172 = vmatprep.subr.bf16.mxu0 0
    %1173 = vmatpush1.bf16.msra.mxu0 0
    %1174 = vmatprep.subr.bf16.mxu0 0
    %1175 = vmatpush1.bf16.msra.mxu0 0
    %1176 = vmatprep.subr.bf16.mxu0 0
    %1177 = vmatpush1.bf16.msra.mxu0 0
    %1178 = vmatprep.subr.bf16.mxu0 0
    %1179 = vmatpush1.bf16.msra.mxu0 0
    %1180 = vmatprep.subr.bf16.mxu0 0
    %1181 = vmatpush1.bf16.msra.mxu0 0
    %1182 = vmatprep.subr.bf16.mxu0 0
    %1183 = vmatpush1.bf16.msra.mxu0 0
    %1184 = vmatprep.subr.bf16.mxu0 0
    %1185 = vmatpush1.bf16.msra.mxu0 0
    %1186 = vmatprep.subr.bf16.mxu0 0
    %1187 = vmatpush1.bf16.msra.mxu0 0
    %1188 = vmatprep.subr.bf16.mxu0 0
    %1189 = vmatpush1.bf16.msra.mxu0 0
    %1190 = vmatprep.subr.bf16.mxu0 0
    %1191 = vmatpush1.bf16.msra.mxu0 0
    %1192 = vmatprep.subr.bf16.mxu0 0
    %1193 = vmatpush1.bf16.msra.mxu0 0
    %1194 = vmatprep.subr.bf16.mxu0 0
    %1195 = vmatpush1.bf16.msra.mxu0 0
    %1196 = vmatprep.subr.bf16.mxu0 0
    %1197 = vmatpush1.bf16.msra.mxu0 0
    %1198 = vmatprep.mubr.bf16.mxu0 0
    %1199 = vmatmul.mubr.bf16.gmra.mrb[0].mxu0 %v1164
    %v1200 = vpop.f32.mrb[0].mxu0
    %v1201 = vadd.f32 %v1162, %v1200
    %v1202 = vpop.f32.mrb[0].mxu0
    %v1203 = vpop.f32.mrb[0].mxu0
    %v1204 = vadd.f32 %v1162, %v1203
    %v1205 = vpop.f32.mrb[0].mxu0
    %1206 = vdwg.mxu0
    %v1207 = vpack.c.bf16 %v50, %v49
    %v1209 = vsel %vm56, %v1207, 0
    %1211 = vmatprep.subr.bf16.mxu0 0
    %1212 = vmatpush1.bf16.msra.mxu0 %v27
    %1213 = vmatprep.subr.bf16.mxu0 0
    %1214 = vmatpush1.bf16.msra.mxu0 %v28
    %1215 = vmatprep.subr.bf16.mxu0 0
    %1216 = vmatpush1.bf16.msra.mxu0 0
    %1217 = vmatprep.subr.bf16.mxu0 0
    %1218 = vmatpush1.bf16.msra.mxu0 0
    %1219 = vmatprep.subr.bf16.mxu0 0
    %1220 = vmatpush1.bf16.msra.mxu0 0
    %1221 = vmatprep.subr.bf16.mxu0 0
    %1222 = vmatpush1.bf16.msra.mxu0 0
    %1223 = vmatprep.subr.bf16.mxu0 0
    %1224 = vmatpush1.bf16.msra.mxu0 0
    %1225 = vmatprep.subr.bf16.mxu0 0
    %1226 = vmatpush1.bf16.msra.mxu0 0
    %1227 = vmatprep.subr.bf16.mxu0 0
    %1228 = vmatpush1.bf16.msra.mxu0 0
    %1229 = vmatprep.subr.bf16.mxu0 0
    %1230 = vmatpush1.bf16.msra.mxu0 0
    %1231 = vmatprep.subr.bf16.mxu0 0
    %1232 = vmatpush1.bf16.msra.mxu0 0
    %1233 = vmatprep.subr.bf16.mxu0 0
    %1234 = vmatpush1.bf16.msra.mxu0 0
    %1235 = vmatprep.subr.bf16.mxu0 0
    %1236 = vmatpush1.bf16.msra.mxu0 0
    %1237 = vmatprep.subr.bf16.mxu0 0
    %1238 = vmatpush1.bf16.msra.mxu0 0
    %1239 = vmatprep.subr.bf16.mxu0 0
    %1240 = vmatpush1.bf16.msra.mxu0 0
    %1241 = vmatprep.subr.bf16.mxu0 0
    %1242 = vmatpush1.bf16.msra.mxu0 0
    %1243 = vmatprep.mubr.bf16.mxu0 0
    %1244 = vmatmul.mubr.bf16.gmra.mrb[0].mxu0 %v1209
    %v1245 = vpop.f32.mrb[0].mxu0
    %v1246 = vadd.f32 %v1162, %v1245
    %v1247 = vpop.f32.mrb[0].mxu0
    %v1248 = vpop.f32.mrb[0].mxu0
    %v1249 = vadd.f32 %v1162, %v1248
    %v1250 = vpop.f32.mrb[0].mxu0
    %1251 = vdwg.mxu0
    %v1252 = vpack.c.bf16 %v1201, %v1201
    %v1253 = vpack.c.bf16 %v1246, %v1246
    %1255 = vrot.lane.b32.xlu0 %v1253, 96
    %v1256 = vpop.permute.xlu0 %1255
    %v1258 = vsel %vm105, %v1252, 0
    %v1261 = vsel %vm105, %v1256, 0
    %1263 = vmatprep.subr.bf16.mxu0 0
    %1264 = vmatpush1.bf16.xpose.msra.mxu0 %v1261
    %1265 = vmatprep.subr.bf16.mxu0 0
    %1266 = vmatpush1.bf16.xpose.msra.mxu0 0
    %1267 = vmatprep.subr.bf16.mxu0 0
    %1268 = vmatpush1.bf16.xpose.msra.mxu0 0
    %1269 = vmatprep.subr.bf16.mxu0 0
    %1270 = vmatpush1.bf16.xpose.msra.mxu0 0
    %1271 = vmatprep.subr.bf16.mxu0 0
    %1272 = vmatpush1.bf16.xpose.msra.mxu0 0
    %1273 = vmatprep.subr.bf16.mxu0 0
    %1274 = vmatpush1.bf16.xpose.msra.mxu0 0
    %1275 = vmatprep.subr.bf16.mxu0 0
    %1276 = vmatpush1.bf16.xpose.msra.mxu0 0
    %1277 = vmatprep.subr.bf16.mxu0 0
    %1278 = vmatpush1.bf16.xpose.msra.mxu0 0
    %1279 = vmatprep.subr.bf16.mxu0 0
    %1280 = vmatpush1.bf16.xpose.msra.mxu0 0
    %1281 = vmatprep.subr.bf16.mxu0 0
    %1282 = vmatpush1.bf16.xpose.msra.mxu0 0
    %1283 = vmatprep.subr.bf16.mxu0 0
    %1284 = vmatpush1.bf16.xpose.msra.mxu0 0
    %1285 = vmatprep.subr.bf16.mxu0 0
    %1286 = vmatpush1.bf16.xpose.msra.mxu0 0
    %1287 = vmatprep.subr.bf16.mxu0 0
    %1288 = vmatpush1.bf16.xpose.msra.mxu0 0
    %1289 = vmatprep.subr.bf16.mxu0 0
    %1290 = vmatpush1.bf16.xpose.msra.mxu0 0
    %1291 = vmatprep.subr.bf16.mxu0 0
    %1292 = vmatpush1.bf16.xpose.msra.mxu0 0
    %1293 = vmatprep.subr.bf16.mxu0 0
    %1294 = vmatpush1.bf16.xpose.msra.mxu0 0
    %1295 = vmatprep.mubr.bf16.mxu0 0
    %1296 = vmatmul.mubr.bf16.gmra.mrb[0].mxu0 %v1258
    %v1297 = vpop.f32.mrb[0].mxu0
    %v1298 = vadd.f32 0.0, %v1297
    %v1299 = vpop.f32.mrb[0].mxu0
    %v1300 = vpop.f32.mrb[0].mxu0
    %v1301 = vpop.f32.mrb[0].mxu0
    %1302 = vdwg.mxu0
    %1304 = vrot.lane.b32.xlu0 %v1252, 120
    %v1305 = vpop.permute.xlu0 %1304
    %1306 = vrot.lane.b32.xlu0 %v1253, 88
    %v1307 = vpop.permute.xlu0 %1306
    %v1309 = vsel %vm105, %v1305, 0
    %v1312 = vsel %vm105, %v1307, 0
    %1314 = vmatprep.subr.bf16.mxu0 0
    %1315 = vmatpush1.bf16.xpose.msra.mxu0 %v1312
    %1316 = vmatprep.subr.bf16.mxu0 0
    %1317 = vmatpush1.bf16.xpose.msra.mxu0 0
    %1318 = vmatprep.subr.bf16.mxu0 0
    %1319 = vmatpush1.bf16.xpose.msra.mxu0 0
    %1320 = vmatprep.subr.bf16.mxu0 0
    %1321 = vmatpush1.bf16.xpose.msra.mxu0 0
    %1322 = vmatprep.subr.bf16.mxu0 0
    %1323 = vmatpush1.bf16.xpose.msra.mxu0 0
    %1324 = vmatprep.subr.bf16.mxu0 0
    %1325 = vmatpush1.bf16.xpose.msra.mxu0 0
    %1326 = vmatprep.subr.bf16.mxu0 0
    %1327 = vmatpush1.bf16.xpose.msra.mxu0 0
    %1328 = vmatprep.subr.bf16.mxu0 0
    %1329 = vmatpush1.bf16.xpose.msra.mxu0 0
    %1330 = vmatprep.subr.bf16.mxu0 0
    %1331 = vmatpush1.bf16.xpose.msra.mxu0 0
    %1332 = vmatprep.subr.bf16.mxu0 0
    %1333 = vmatpush1.bf16.xpose.msra.mxu0 0
    %1334 = vmatprep.subr.bf16.mxu0 0
    %1335 = vmatpush1.bf16.xpose.msra.mxu0 0
    %1336 = vmatprep.subr.bf16.mxu0 0
    %1337 = vmatpush1.bf16.xpose.msra.mxu0 0
    %1338 = vmatprep.subr.bf16.mxu0 0
    %1339 = vmatpush1.bf16.xpose.msra.mxu0 0
    %1340 = vmatprep.subr.bf16.mxu0 0
    %1341 = vmatpush1.bf16.xpose.msra.mxu0 0
    %1342 = vmatprep.subr.bf16.mxu0 0
    %1343 = vmatpush1.bf16.xpose.msra.mxu0 0
    %1344 = vmatprep.subr.bf16.mxu0 0
    %1345 = vmatpush1.bf16.xpose.msra.mxu0 0
    %1346 = vmatprep.mubr.bf16.mxu0 0
    %1347 = vmatmul.mubr.bf16.gmra.mrb[0].mxu0 %v1309
    %v1348 = vpop.f32.mrb[0].mxu0
    %v1349 = vadd.f32 0.0, %v1348
    %v1350 = vpop.f32.mrb[0].mxu0
    %v1351 = vpop.f32.mrb[0].mxu0
    %v1352 = vpop.f32.mrb[0].mxu0
    %1353 = vdwg.mxu0
    %1354 = vrot.lane.b32.xlu0 %v1252, 112
    %v1355 = vpop.permute.xlu0 %1354
    %1356 = vrot.lane.b32.xlu0 %v1253, 80
    %v1357 = vpop.permute.xlu0 %1356
    %v1359 = vsel %vm105, %v1355, 0
    %v1362 = vsel %vm105, %v1357, 0
    %1364 = vmatprep.subr.bf16.mxu0 0
    %1365 = vmatpush1.bf16.xpose.msra.mxu0 %v1362
    %1366 = vmatprep.subr.bf16.mxu0 0
    %1367 = vmatpush1.bf16.xpose.msra.mxu0 0
    %1368 = vmatprep.subr.bf16.mxu0 0
    %1369 = vmatpush1.bf16.xpose.msra.mxu0 0
    %1370 = vmatprep.subr.bf16.mxu0 0
    %1371 = vmatpush1.bf16.xpose.msra.mxu0 0
    %1372 = vmatprep.subr.bf16.mxu0 0
    %1373 = vmatpush1.bf16.xpose.msra.mxu0 0
    %1374 = vmatprep.subr.bf16.mxu0 0
    %1375 = vmatpush1.bf16.xpose.msra.mxu0 0
    %1376 = vmatprep.subr.bf16.mxu0 0
    %1377 = vmatpush1.bf16.xpose.msra.mxu0 0
    %1378 = vmatprep.subr.bf16.mxu0 0
    %1379 = vmatpush1.bf16.xpose.msra.mxu0 0
    %1380 = vmatprep.subr.bf16.mxu0 0
    %1381 = vmatpush1.bf16.xpose.msra.mxu0 0
    %1382 = vmatprep.subr.bf16.mxu0 0
    %1383 = vmatpush1.bf16.xpose.msra.mxu0 0
    %1384 = vmatprep.subr.bf16.mxu0 0
    %1385 = vmatpush1.bf16.xpose.msra.mxu0 0
    %1386 = vmatprep.subr.bf16.mxu0 0
    %1387 = vmatpush1.bf16.xpose.msra.mxu0 0
    %1388 = vmatprep.subr.bf16.mxu0 0
    %1389 = vmatpush1.bf16.xpose.msra.mxu0 0
    %1390 = vmatprep.subr.bf16.mxu0 0
    %1391 = vmatpush1.bf16.xpose.msra.mxu0 0
    %1392 = vmatprep.subr.bf16.mxu0 0
    %1393 = vmatpush1.bf16.xpose.msra.mxu0 0
    %1394 = vmatprep.subr.bf16.mxu0 0
    %1395 = vmatpush1.bf16.xpose.msra.mxu0 0
    %1396 = vmatprep.mubr.bf16.mxu0 0
    %1397 = vmatmul.mubr.bf16.gmra.mrb[0].mxu0 %v1359
    %v1398 = vpop.f32.mrb[0].mxu0
    %v1399 = vadd.f32 0.0, %v1398
    %v1400 = vpop.f32.mrb[0].mxu0
    %v1401 = vpop.f32.mrb[0].mxu0
    %v1402 = vpop.f32.mrb[0].mxu0
    %1403 = vdwg.mxu0
    %1404 = vrot.lane.b32.xlu0 %v1252, 104
    %v1405 = vpop.permute.xlu0 %1404
    %1406 = vrot.lane.b32.xlu0 %v1253, 72
    %v1407 = vpop.permute.xlu0 %1406
    %v1409 = vsel %vm105, %v1405, 0
    %v1412 = vsel %vm105, %v1407, 0
    %1414 = vmatprep.subr.bf16.mxu0 0
    %1415 = vmatpush1.bf16.xpose.msra.mxu0 %v1412
    %1416 = vmatprep.subr.bf16.mxu0 0
    %1417 = vmatpush1.bf16.xpose.msra.mxu0 0
    %1418 = vmatprep.subr.bf16.mxu0 0
    %1419 = vmatpush1.bf16.xpose.msra.mxu0 0
    %1420 = vmatprep.subr.bf16.mxu0 0
    %1421 = vmatpush1.bf16.xpose.msra.mxu0 0
    %1422 = vmatprep.subr.bf16.mxu0 0
    %1423 = vmatpush1.bf16.xpose.msra.mxu0 0
    %1424 = vmatprep.subr.bf16.mxu0 0
    %1425 = vmatpush1.bf16.xpose.msra.mxu0 0
    %1426 = vmatprep.subr.bf16.mxu0 0
    %1427 = vmatpush1.bf16.xpose.msra.mxu0 0
    %1428 = vmatprep.subr.bf16.mxu0 0
    %1429 = vmatpush1.bf16.xpose.msra.mxu0 0
    %1430 = vmatprep.subr.bf16.mxu0 0
    %1431 = vmatpush1.bf16.xpose.msra.mxu0 0
    %1432 = vmatprep.subr.bf16.mxu0 0
    %1433 = vmatpush1.bf16.xpose.msra.mxu0 0
    %1434 = vmatprep.subr.bf16.mxu0 0
    %1435 = vmatpush1.bf16.xpose.msra.mxu0 0
    %1436 = vmatprep.subr.bf16.mxu0 0
    %1437 = vmatpush1.bf16.xpose.msra.mxu0 0
    %1438 = vmatprep.subr.bf16.mxu0 0
    %1439 = vmatpush1.bf16.xpose.msra.mxu0 0
    %1440 = vmatprep.subr.bf16.mxu0 0
    %1441 = vmatpush1.bf16.xpose.msra.mxu0 0
    %1442 = vmatprep.subr.bf16.mxu0 0
    %1443 = vmatpush1.bf16.xpose.msra.mxu0 0
    %1444 = vmatprep.subr.bf16.mxu0 0
    %1445 = vmatpush1.bf16.xpose.msra.mxu0 0
    %1446 = vmatprep.mubr.bf16.mxu0 0
    %1447 = vmatmul.mubr.bf16.gmra.mrb[0].mxu0 %v1409
    %v1448 = vpop.f32.mrb[0].mxu0
    %v1449 = vadd.f32 0.0, %v1448
    %v1450 = vpop.f32.mrb[0].mxu0
    %v1451 = vpop.f32.mrb[0].mxu0
    %v1452 = vpop.f32.mrb[0].mxu0
    %1453 = vdwg.mxu0
    %v1454 = vpack.c.bf16 %v1204, %v1204
    %v1455 = vpack.c.bf16 %v1249, %v1249
    %1457 = vrot.lane.b32.xlu0 %v1455, 96
    %v1458 = vpop.permute.xlu0 %1457
    %v1460 = vsel %vm105, %v1454, 0
    %v1463 = vsel %vm105, %v1458, 0
    %1465 = vmatprep.subr.bf16.mxu0 0
    %1466 = vmatpush1.bf16.xpose.msra.mxu0 %v1463
    %1467 = vmatprep.subr.bf16.mxu0 0
    %1468 = vmatpush1.bf16.xpose.msra.mxu0 0
    %1469 = vmatprep.subr.bf16.mxu0 0
    %1470 = vmatpush1.bf16.xpose.msra.mxu0 0
    %1471 = vmatprep.subr.bf16.mxu0 0
    %1472 = vmatpush1.bf16.xpose.msra.mxu0 0
    %1473 = vmatprep.subr.bf16.mxu0 0
    %1474 = vmatpush1.bf16.xpose.msra.mxu0 0
    %1475 = vmatprep.subr.bf16.mxu0 0
    %1476 = vmatpush1.bf16.xpose.msra.mxu0 0
    %1477 = vmatprep.subr.bf16.mxu0 0
    %1478 = vmatpush1.bf16.xpose.msra.mxu0 0
    %1479 = vmatprep.subr.bf16.mxu0 0
    %1480 = vmatpush1.bf16.xpose.msra.mxu0 0
    %1481 = vmatprep.subr.bf16.mxu0 0
    %1482 = vmatpush1.bf16.xpose.msra.mxu0 0
    %1483 = vmatprep.subr.bf16.mxu0 0
    %1484 = vmatpush1.bf16.xpose.msra.mxu0 0
    %1485 = vmatprep.subr.bf16.mxu0 0
    %1486 = vmatpush1.bf16.xpose.msra.mxu0 0
    %1487 = vmatprep.subr.bf16.mxu0 0
    %1488 = vmatpush1.bf16.xpose.msra.mxu0 0
    %1489 = vmatprep.subr.bf16.mxu0 0
    %1490 = vmatpush1.bf16.xpose.msra.mxu0 0
    %1491 = vmatprep.subr.bf16.mxu0 0
    %1492 = vmatpush1.bf16.xpose.msra.mxu0 0
    %1493 = vmatprep.subr.bf16.mxu0 0
    %1494 = vmatpush1.bf16.xpose.msra.mxu0 0
    %1495 = vmatprep.subr.bf16.mxu0 0
    %1496 = vmatpush1.bf16.xpose.msra.mxu0 0
    %1497 = vmatprep.mubr.bf16.mxu0 0
    %1498 = vmatmul.mubr.bf16.gmra.mrb[0].mxu0 %v1460
    %v1499 = vpop.f32.mrb[0].mxu0
    %v1500 = vadd.f32 0.0, %v1499
    %v1501 = vpop.f32.mrb[0].mxu0
    %v1502 = vpop.f32.mrb[0].mxu0
    %v1503 = vpop.f32.mrb[0].mxu0
    %1504 = vdwg.mxu0
    %1506 = vrot.lane.b32.xlu0 %v1454, 120
    %v1507 = vpop.permute.xlu0 %1506
    %1508 = vrot.lane.b32.xlu0 %v1455, 88
    %v1509 = vpop.permute.xlu0 %1508
    %v1511 = vsel %vm105, %v1507, 0
    %v1514 = vsel %vm105, %v1509, 0
    %1516 = vmatprep.subr.bf16.mxu0 0
    %1517 = vmatpush1.bf16.xpose.msra.mxu0 %v1514
    %1518 = vmatprep.subr.bf16.mxu0 0
    %1519 = vmatpush1.bf16.xpose.msra.mxu0 0
    %1520 = vmatprep.subr.bf16.mxu0 0
    %1521 = vmatpush1.bf16.xpose.msra.mxu0 0
    %1522 = vmatprep.subr.bf16.mxu0 0
    %1523 = vmatpush1.bf16.xpose.msra.mxu0 0
    %1524 = vmatprep.subr.bf16.mxu0 0
    %1525 = vmatpush1.bf16.xpose.msra.mxu0 0
    %1526 = vmatprep.subr.bf16.mxu0 0
    %1527 = vmatpush1.bf16.xpose.msra.mxu0 0
    %1528 = vmatprep.subr.bf16.mxu0 0
    %1529 = vmatpush1.bf16.xpose.msra.mxu0 0
    %1530 = vmatprep.subr.bf16.mxu0 0
    %1531 = vmatpush1.bf16.xpose.msra.mxu0 0
    %1532 = vmatprep.subr.bf16.mxu0 0
    %1533 = vmatpush1.bf16.xpose.msra.mxu0 0
    %1534 = vmatprep.subr.bf16.mxu0 0
    %1535 = vmatpush1.bf16.xpose.msra.mxu0 0
    %1536 = vmatprep.subr.bf16.mxu0 0
    %1537 = vmatpush1.bf16.xpose.msra.mxu0 0
    %1538 = vmatprep.subr.bf16.mxu0 0
    %1539 = vmatpush1.bf16.xpose.msra.mxu0 0
    %1540 = vmatprep.subr.bf16.mxu0 0
    %1541 = vmatpush1.bf16.xpose.msra.mxu0 0
    %1542 = vmatprep.subr.bf16.mxu0 0
    %1543 = vmatpush1.bf16.xpose.msra.mxu0 0
    %1544 = vmatprep.subr.bf16.mxu0 0
    %1545 = vmatpush1.bf16.xpose.msra.mxu0 0
    %1546 = vmatprep.subr.bf16.mxu0 0
    %1547 = vmatpush1.bf16.xpose.msra.mxu0 0
    %1548 = vmatprep.mubr.bf16.mxu0 0
    %1549 = vmatmul.mubr.bf16.gmra.mrb[0].mxu0 %v1511
    %v1550 = vpop.f32.mrb[0].mxu0
    %v1551 = vadd.f32 0.0, %v1550
    %v1552 = vpop.f32.mrb[0].mxu0
    %v1553 = vpop.f32.mrb[0].mxu0
    %v1554 = vpop.f32.mrb[0].mxu0
    %1555 = vdwg.mxu0
    %1556 = vrot.lane.b32.xlu0 %v1454, 112
    %v1557 = vpop.permute.xlu0 %1556
    %1558 = vrot.lane.b32.xlu0 %v1455, 80
    %v1559 = vpop.permute.xlu0 %1558
    %v1561 = vsel %vm105, %v1557, 0
    %v1564 = vsel %vm105, %v1559, 0
    %1566 = vmatprep.subr.bf16.mxu0 0
    %1567 = vmatpush1.bf16.xpose.msra.mxu0 %v1564
    %1568 = vmatprep.subr.bf16.mxu0 0
    %1569 = vmatpush1.bf16.xpose.msra.mxu0 0
    %1570 = vmatprep.subr.bf16.mxu0 0
    %1571 = vmatpush1.bf16.xpose.msra.mxu0 0
    %1572 = vmatprep.subr.bf16.mxu0 0
    %1573 = vmatpush1.bf16.xpose.msra.mxu0 0
    %1574 = vmatprep.subr.bf16.mxu0 0
    %1575 = vmatpush1.bf16.xpose.msra.mxu0 0
    %1576 = vmatprep.subr.bf16.mxu0 0
    %1577 = vmatpush1.bf16.xpose.msra.mxu0 0
    %1578 = vmatprep.subr.bf16.mxu0 0
    %1579 = vmatpush1.bf16.xpose.msra.mxu0 0
    %1580 = vmatprep.subr.bf16.mxu0 0
    %1581 = vmatpush1.bf16.xpose.msra.mxu0 0
    %1582 = vmatprep.subr.bf16.mxu0 0
    %1583 = vmatpush1.bf16.xpose.msra.mxu0 0
    %1584 = vmatprep.subr.bf16.mxu0 0
    %1585 = vmatpush1.bf16.xpose.msra.mxu0 0
    %1586 = vmatprep.subr.bf16.mxu0 0
    %1587 = vmatpush1.bf16.xpose.msra.mxu0 0
    %1588 = vmatprep.subr.bf16.mxu0 0
    %1589 = vmatpush1.bf16.xpose.msra.mxu0 0
    %1590 = vmatprep.subr.bf16.mxu0 0
    %1591 = vmatpush1.bf16.xpose.msra.mxu0 0
    %1592 = vmatprep.subr.bf16.mxu0 0
    %1593 = vmatpush1.bf16.xpose.msra.mxu0 0
    %1594 = vmatprep.subr.bf16.mxu0 0
    %1595 = vmatpush1.bf16.xpose.msra.mxu0 0
    %1596 = vmatprep.subr.bf16.mxu0 0
    %1597 = vmatpush1.bf16.xpose.msra.mxu0 0
    %1598 = vmatprep.mubr.bf16.mxu0 0
    %1599 = vmatmul.mubr.bf16.gmra.mrb[0].mxu0 %v1561
    %v1600 = vpop.f32.mrb[0].mxu0
    %v1601 = vadd.f32 0.0, %v1600
    %v1602 = vpop.f32.mrb[0].mxu0
    %v1603 = vpop.f32.mrb[0].mxu0
    %v1604 = vpop.f32.mrb[0].mxu0
    %1605 = vdwg.mxu0
    %1606 = vrot.lane.b32.xlu0 %v1454, 104
    %v1607 = vpop.permute.xlu0 %1606
    %1608 = vrot.lane.b32.xlu0 %v1455, 72
    %v1609 = vpop.permute.xlu0 %1608
    %v1611 = vsel %vm105, %v1607, 0
    %v1614 = vsel %vm105, %v1609, 0
    %1616 = vmatprep.subr.bf16.mxu0 0
    %1617 = vmatpush1.bf16.xpose.msra.mxu0 %v1614
    %1618 = vmatprep.subr.bf16.mxu0 0
    %1619 = vmatpush1.bf16.xpose.msra.mxu0 0
    %1620 = vmatprep.subr.bf16.mxu0 0
    %1621 = vmatpush1.bf16.xpose.msra.mxu0 0
    %1622 = vmatprep.subr.bf16.mxu0 0
    %1623 = vmatpush1.bf16.xpose.msra.mxu0 0
    %1624 = vmatprep.subr.bf16.mxu0 0
    %1625 = vmatpush1.bf16.xpose.msra.mxu0 0
    %1626 = vmatprep.subr.bf16.mxu0 0
    %1627 = vmatpush1.bf16.xpose.msra.mxu0 0
    %1628 = vmatprep.subr.bf16.mxu0 0
    %1629 = vmatpush1.bf16.xpose.msra.mxu0 0
    %1630 = vmatprep.subr.bf16.mxu0 0
    %1631 = vmatpush1.bf16.xpose.msra.mxu0 0
    %1632 = vmatprep.subr.bf16.mxu0 0
    %1633 = vmatpush1.bf16.xpose.msra.mxu0 0
    %1634 = vmatprep.subr.bf16.mxu0 0
    %1635 = vmatpush1.bf16.xpose.msra.mxu0 0
    %1636 = vmatprep.subr.bf16.mxu0 0
    %1637 = vmatpush1.bf16.xpose.msra.mxu0 0
    %1638 = vmatprep.subr.bf16.mxu0 0
    %1639 = vmatpush1.bf16.xpose.msra.mxu0 0
    %1640 = vmatprep.subr.bf16.mxu0 0
    %1641 = vmatpush1.bf16.xpose.msra.mxu0 0
    %1642 = vmatprep.subr.bf16.mxu0 0
    %1643 = vmatpush1.bf16.xpose.msra.mxu0 0
    %1644 = vmatprep.subr.bf16.mxu0 0
    %1645 = vmatpush1.bf16.xpose.msra.mxu0 0
    %1646 = vmatprep.subr.bf16.mxu0 0
    %1647 = vmatpush1.bf16.xpose.msra.mxu0 0
    %1648 = vmatprep.mubr.bf16.mxu0 0
    %1649 = vmatmul.mubr.bf16.gmra.mrb[0].mxu0 %v1611
    %v1650 = vpop.f32.mrb[0].mxu0
    %v1651 = vadd.f32 0.0, %v1650
    %v1652 = vpop.f32.mrb[0].mxu0
    %v1653 = vpop.f32.mrb[0].mxu0
    %v1654 = vpop.f32.mrb[0].mxu0
    %1655 = vdwg.mxu0
    %v1656 = vld [vmem:[%s2 + $0xb8] sm:$0xff]
    %v1657 = vld [vmem:[%s2 + $0xc0] sm:$0xff]
    %v1658 = vmul.f32 %v1298, 0.35355338
    %v1659 = vmul.f32 %v1349, 0.35355338
    %v1660 = vmul.f32 %v1399, 0.35355338
    %v1661 = vmul.f32 %v1449, 0.35355338
    %v1662 = vmul.f32 %v1500, 0.35355338
    %v1663 = vmul.f32 %v1551, 0.35355338
    %v1664 = vmul.f32 %v1601, 0.35355338
    %v1665 = vmul.f32 %v1651, 0.35355338
    %v1666 = vadd.f32 %v1658, %v1656
    %v1667 = vadd.f32 %v1659, %v1656
    %v1668 = vadd.f32 %v1660, %v1656
    %v1669 = vadd.f32 %v1661, %v1656
    %v1670 = vadd.f32 %v1662, %v1657
    %v1671 = vadd.f32 %v1663, %v1657
    %v1672 = vadd.f32 %v1664, %v1657
    %v1673 = vadd.f32 %v1665, %v1657
    %v1674 = vsel %vm105, %v1666, -inf
    %1675 = vmax.xlane.f32.xlu0 %v1674
    %v1676 = vpop.xlane.xlu0 %1675
    %v1677 = vsel %vm105, %v1667, -inf
    %1678 = vmax.xlane.f32.xlu0 %v1677
    %v1679 = vpop.xlane.xlu0 %1678
    %v1680 = vsel %vm105, %v1668, -inf
    %1681 = vmax.xlane.f32.xlu0 %v1680
    %v1682 = vpop.xlane.xlu0 %1681
    %v1683 = vsel %vm105, %v1669, -inf
    %1684 = vmax.xlane.f32.xlu0 %v1683
    %v1685 = vpop.xlane.xlu0 %1684
    %v1686 = vsel %vm105, %v1670, -inf
    %1687 = vmax.xlane.f32.xlu0 %v1686
    %v1688 = vpop.xlane.xlu0 %1687
    %v1689 = vsel %vm105, %v1671, -inf
    %1690 = vmax.xlane.f32.xlu0 %v1689
    %v1691 = vpop.xlane.xlu0 %1690
    %v1692 = vsel %vm105, %v1672, -inf
    %1693 = vmax.xlane.f32.xlu0 %v1692
    %v1694 = vpop.xlane.xlu0 %1693
    %v1695 = vsel %vm105, %v1673, -inf
    %1696 = vmax.xlane.f32.xlu0 %v1695
    %v1697 = vpop.xlane.xlu0 %1696
    %v1698 = vsub.f32 %v1666, %v1676
    %v1699 = vsub.f32 %v1667, %v1679
    %v1700 = vsub.f32 %v1668, %v1682
    %v1701 = vsub.f32 %v1669, %v1685
    %v1702 = vsub.f32 %v1670, %v1688
    %v1703 = vsub.f32 %v1671, %v1691
    %v1704 = vsub.f32 %v1672, %v1694
    %v1705 = vsub.f32 %v1673, %v1697
    %v1706 = vmul.f32 %v1698, 1.442695
    %v1707 = vpow.pop %v1706
    %v1708 = vmul.f32 %v1699, 1.442695
    %v1709 = vpow.pop %v1708
    %v1710 = vmul.f32 %v1700, 1.442695
    %v1711 = vpow.pop %v1710
    %v1712 = vmul.f32 %v1701, 1.442695
    %v1713 = vpow.pop %v1712
    %v1714 = vmul.f32 %v1702, 1.442695
    %v1715 = vpow.pop %v1714
    %v1716 = vmul.f32 %v1703, 1.442695
    %v1717 = vpow.pop %v1716
    %v1718 = vmul.f32 %v1704, 1.442695
    %v1719 = vpow.pop %v1718
    %v1720 = vmul.f32 %v1705, 1.442695
    %v1721 = vpow.pop %v1720
    %v1722 = vsel %vm105, %v1707, 0.0
    %1723 = vadd.xlane.f32.xlu0 %v1722
    %v1724 = vpop.xlane.xlu0 %1723
    %v1725 = vsel %vm105, %v1709, 0.0
    %1726 = vadd.xlane.f32.xlu0 %v1725
    %v1727 = vpop.xlane.xlu0 %1726
    %v1728 = vsel %vm105, %v1711, 0.0
    %1729 = vadd.xlane.f32.xlu0 %v1728
    %v1730 = vpop.xlane.xlu0 %1729
    %v1731 = vsel %vm105, %v1713, 0.0
    %1732 = vadd.xlane.f32.xlu0 %v1731
    %v1733 = vpop.xlane.xlu0 %1732
    %v1734 = vsel %vm105, %v1715, 0.0
    %1735 = vadd.xlane.f32.xlu0 %v1734
    %v1736 = vpop.xlane.xlu0 %1735
    %v1737 = vsel %vm105, %v1717, 0.0
    %1738 = vadd.xlane.f32.xlu0 %v1737
    %v1739 = vpop.xlane.xlu0 %1738
    %v1740 = vsel %vm105, %v1719, 0.0
    %1741 = vadd.xlane.f32.xlu0 %v1740
    %v1742 = vpop.xlane.xlu0 %1741
    %v1743 = vsel %vm105, %v1721, 0.0
    %1744 = vadd.xlane.f32.xlu0 %v1743
    %v1745 = vpop.xlane.xlu0 %1744
    %v1746 = vrcp.pop %v1724
    %v1747 = vrcp.pop %v1727
    %v1748 = vrcp.pop %v1730
    %v1749 = vrcp.pop %v1733
    %v1750 = vrcp.pop %v1736
    %v1751 = vrcp.pop %v1739
    %v1752 = vrcp.pop %v1742
    %v1753 = vrcp.pop %v1745
    %v1754 = vmul.f32 %v1707, %v1746
    %v1755 = vmul.f32 %v1709, %v1747
    %v1756 = vmul.f32 %v1711, %v1748
    %v1757 = vmul.f32 %v1713, %v1749
    %v1758 = vmul.f32 %v1715, %v1750
    %v1759 = vmul.f32 %v1717, %v1751
    %v1760 = vmul.f32 %v1719, %v1752
    %v1761 = vmul.f32 %v1721, %v1753
    %v1762 = vpack.c.bf16 %v1754, %v1754
    %1763 = vrot.lane.b32.xlu0 %v1253, 64
    %v1764 = vpop.permute.xlu0 %1763
    %v1766 = vsel %vm105, %v1762, 0
    %v1769 = vsel %vm614, %v1764, 0
    %1771 = vmatprep.subr.bf16.mxu0 0
    %1772 = vmatpush1.bf16.msra.mxu0 %v1769
    %1773 = vmatprep.subr.bf16.mxu0 0
    %1774 = vmatpush1.bf16.msra.mxu0 0
    %1775 = vmatprep.subr.bf16.mxu0 0
    %1776 = vmatpush1.bf16.msra.mxu0 0
    %1777 = vmatprep.subr.bf16.mxu0 0
    %1778 = vmatpush1.bf16.msra.mxu0 0
    %1779 = vmatprep.subr.bf16.mxu0 0
    %1780 = vmatpush1.bf16.msra.mxu0 0
    %1781 = vmatprep.subr.bf16.mxu0 0
    %1782 = vmatpush1.bf16.msra.mxu0 0
    %1783 = vmatprep.subr.bf16.mxu0 0
    %1784 = vmatpush1.bf16.msra.mxu0 0
    %1785 = vmatprep.subr.bf16.mxu0 0
    %1786 = vmatpush1.bf16.msra.mxu0 0
    %1787 = vmatprep.subr.bf16.mxu0 0
    %1788 = vmatpush1.bf16.msra.mxu0 0
    %1789 = vmatprep.subr.bf16.mxu0 0
    %1790 = vmatpush1.bf16.msra.mxu0 0
    %1791 = vmatprep.subr.bf16.mxu0 0
    %1792 = vmatpush1.bf16.msra.mxu0 0
    %1793 = vmatprep.subr.bf16.mxu0 0
    %1794 = vmatpush1.bf16.msra.mxu0 0
    %1795 = vmatprep.subr.bf16.mxu0 0
    %1796 = vmatpush1.bf16.msra.mxu0 0
    %1797 = vmatprep.subr.bf16.mxu0 0
    %1798 = vmatpush1.bf16.msra.mxu0 0
    %1799 = vmatprep.subr.bf16.mxu0 0
    %1800 = vmatpush1.bf16.msra.mxu0 0
    %1801 = vmatprep.subr.bf16.mxu0 0
    %1802 = vmatpush1.bf16.msra.mxu0 0
    %1803 = vmatprep.mubr.bf16.mxu0 0
    %1804 = vmatmul.mubr.bf16.gmra.mrb[0].mxu0 %v1766
    %v1805 = vpop.f32.mrb[0].mxu0
    %v1806 = vadd.f32 0.0, %v1805
    %v1807 = vpop.f32.mrb[0].mxu0
    %v1808 = vpop.f32.mrb[0].mxu0
    %v1809 = vpop.f32.mrb[0].mxu0
    %1810 = vdwg.mxu0
    %v1811 = vpack.c.bf16 %v1755, %v1755
    %1812 = vrot.lane.b32.xlu0 %v1253, 56
    %v1813 = vpop.permute.xlu0 %1812
    %v1815 = vsel %vm105, %v1811, 0
    %v1818 = vsel %vm614, %v1813, 0
    %1820 = vmatprep.subr.bf16.mxu0 0
    %1821 = vmatpush1.bf16.msra.mxu0 %v1818
    %1822 = vmatprep.subr.bf16.mxu0 0
    %1823 = vmatpush1.bf16.msra.mxu0 0
    %1824 = vmatprep.subr.bf16.mxu0 0
    %1825 = vmatpush1.bf16.msra.mxu0 0
    %1826 = vmatprep.subr.bf16.mxu0 0
    %1827 = vmatpush1.bf16.msra.mxu0 0
    %1828 = vmatprep.subr.bf16.mxu0 0
    %1829 = vmatpush1.bf16.msra.mxu0 0
    %1830 = vmatprep.subr.bf16.mxu0 0
    %1831 = vmatpush1.bf16.msra.mxu0 0
    %1832 = vmatprep.subr.bf16.mxu0 0
    %1833 = vmatpush1.bf16.msra.mxu0 0
    %1834 = vmatprep.subr.bf16.mxu0 0
    %1835 = vmatpush1.bf16.msra.mxu0 0
    %1836 = vmatprep.subr.bf16.mxu0 0
    %1837 = vmatpush1.bf16.msra.mxu0 0
    %1838 = vmatprep.subr.bf16.mxu0 0
    %1839 = vmatpush1.bf16.msra.mxu0 0
    %1840 = vmatprep.subr.bf16.mxu0 0
    %1841 = vmatpush1.bf16.msra.mxu0 0
    %1842 = vmatprep.subr.bf16.mxu0 0
    %1843 = vmatpush1.bf16.msra.mxu0 0
    %1844 = vmatprep.subr.bf16.mxu0 0
    %1845 = vmatpush1.bf16.msra.mxu0 0
    %1846 = vmatprep.subr.bf16.mxu0 0
    %1847 = vmatpush1.bf16.msra.mxu0 0
    %1848 = vmatprep.subr.bf16.mxu0 0
    %1849 = vmatpush1.bf16.msra.mxu0 0
    %1850 = vmatprep.subr.bf16.mxu0 0
    %1851 = vmatpush1.bf16.msra.mxu0 0
    %1852 = vmatprep.mubr.bf16.mxu0 0
    %1853 = vmatmul.mubr.bf16.gmra.mrb[0].mxu0 %v1815
    %v1854 = vpop.f32.mrb[0].mxu0
    %v1855 = vadd.f32 0.0, %v1854
    %v1856 = vpop.f32.mrb[0].mxu0
    %v1857 = vpop.f32.mrb[0].mxu0
    %v1858 = vpop.f32.mrb[0].mxu0
    %1859 = vdwg.mxu0
    %v1860 = vpack.c.bf16 %v1756, %v1756
    %1861 = vrot.lane.b32.xlu0 %v1253, 48
    %v1862 = vpop.permute.xlu0 %1861
    %v1864 = vsel %vm105, %v1860, 0
    %v1867 = vsel %vm614, %v1862, 0
    %1869 = vmatprep.subr.bf16.mxu0 0
    %1870 = vmatpush1.bf16.msra.mxu0 %v1867
    %1871 = vmatprep.subr.bf16.mxu0 0
    %1872 = vmatpush1.bf16.msra.mxu0 0
    %1873 = vmatprep.subr.bf16.mxu0 0
    %1874 = vmatpush1.bf16.msra.mxu0 0
    %1875 = vmatprep.subr.bf16.mxu0 0
    %1876 = vmatpush1.bf16.msra.mxu0 0
    %1877 = vmatprep.subr.bf16.mxu0 0
    %1878 = vmatpush1.bf16.msra.mxu0 0
    %1879 = vmatprep.subr.bf16.mxu0 0
    %1880 = vmatpush1.bf16.msra.mxu0 0
    %1881 = vmatprep.subr.bf16.mxu0 0
    %1882 = vmatpush1.bf16.msra.mxu0 0
    %1883 = vmatprep.subr.bf16.mxu0 0
    %1884 = vmatpush1.bf16.msra.mxu0 0
    %1885 = vmatprep.subr.bf16.mxu0 0
    %1886 = vmatpush1.bf16.msra.mxu0 0
    %1887 = vmatprep.subr.bf16.mxu0 0
    %1888 = vmatpush1.bf16.msra.mxu0 0
    %1889 = vmatprep.subr.bf16.mxu0 0
    %1890 = vmatpush1.bf16.msra.mxu0 0
    %1891 = vmatprep.subr.bf16.mxu0 0
    %1892 = vmatpush1.bf16.msra.mxu0 0
    %1893 = vmatprep.subr.bf16.mxu0 0
    %1894 = vmatpush1.bf16.msra.mxu0 0
    %1895 = vmatprep.subr.bf16.mxu0 0
    %1896 = vmatpush1.bf16.msra.mxu0 0
    %1897 = vmatprep.subr.bf16.mxu0 0
    %1898 = vmatpush1.bf16.msra.mxu0 0
    %1899 = vmatprep.subr.bf16.mxu0 0
    %1900 = vmatpush1.bf16.msra.mxu0 0
    %1901 = vmatprep.mubr.bf16.mxu0 0
    %1902 = vmatmul.mubr.bf16.gmra.mrb[0].mxu0 %v1864
    %v1903 = vpop.f32.mrb[0].mxu0
    %v1904 = vadd.f32 0.0, %v1903
    %v1905 = vpop.f32.mrb[0].mxu0
    %v1906 = vpop.f32.mrb[0].mxu0
    %v1907 = vpop.f32.mrb[0].mxu0
    %1908 = vdwg.mxu0
    %v1909 = vpack.c.bf16 %v1757, %v1757
    %1910 = vrot.lane.b32.xlu0 %v1253, 40
    %v1911 = vpop.permute.xlu0 %1910
    %v1913 = vsel %vm105, %v1909, 0
    %v1916 = vsel %vm614, %v1911, 0
    %1918 = vmatprep.subr.bf16.mxu0 0
    %1919 = vmatpush1.bf16.msra.mxu0 %v1916
    %1920 = vmatprep.subr.bf16.mxu0 0
    %1921 = vmatpush1.bf16.msra.mxu0 0
    %1922 = vmatprep.subr.bf16.mxu0 0
    %1923 = vmatpush1.bf16.msra.mxu0 0
    %1924 = vmatprep.subr.bf16.mxu0 0
    %1925 = vmatpush1.bf16.msra.mxu0 0
    %1926 = vmatprep.subr.bf16.mxu0 0
    %1927 = vmatpush1.bf16.msra.mxu0 0
    %1928 = vmatprep.subr.bf16.mxu0 0
    %1929 = vmatpush1.bf16.msra.mxu0 0
    %1930 = vmatprep.subr.bf16.mxu0 0
    %1931 = vmatpush1.bf16.msra.mxu0 0
    %1932 = vmatprep.subr.bf16.mxu0 0
    %1933 = vmatpush1.bf16.msra.mxu0 0
    %1934 = vmatprep.subr.bf16.mxu0 0
    %1935 = vmatpush1.bf16.msra.mxu0 0
    %1936 = vmatprep.subr.bf16.mxu0 0
    %1937 = vmatpush1.bf16.msra.mxu0 0
    %1938 = vmatprep.subr.bf16.mxu0 0
    %1939 = vmatpush1.bf16.msra.mxu0 0
    %1940 = vmatprep.subr.bf16.mxu0 0
    %1941 = vmatpush1.bf16.msra.mxu0 0
    %1942 = vmatprep.subr.bf16.mxu0 0
    %1943 = vmatpush1.bf16.msra.mxu0 0
    %1944 = vmatprep.subr.bf16.mxu0 0
    %1945 = vmatpush1.bf16.msra.mxu0 0
    %1946 = vmatprep.subr.bf16.mxu0 0
    %1947 = vmatpush1.bf16.msra.mxu0 0
    %1948 = vmatprep.subr.bf16.mxu0 0
    %1949 = vmatpush1.bf16.msra.mxu0 0
    %1950 = vmatprep.mubr.bf16.mxu0 0
    %1951 = vmatmul.mubr.bf16.gmra.mrb[0].mxu0 %v1913
    %v1952 = vpop.f32.mrb[0].mxu0
    %v1953 = vadd.f32 0.0, %v1952
    %v1954 = vpop.f32.mrb[0].mxu0
    %v1955 = vpop.f32.mrb[0].mxu0
    %v1956 = vpop.f32.mrb[0].mxu0
    %1957 = vdwg.mxu0
    %1959 = vrot.lane.b32.xlu0 %v1855, 8
    %v1960 = vpop.permute.xlu0 %1959
    %1963 = vrot.lane.b32.xlu0 %v1904, 16
    %v1964 = vpop.permute.xlu0 %1963
    %1967 = vrot.lane.b32.xlu0 %v1953, 24
    %v1968 = vpop.permute.xlu0 %1967
    %v1970 = vsel %vm105, %v1806, %v1960
    %v1971 = vsel %vm818, %v1970, %v1964
    %v1972 = vsel %vm820, %v1971, %v1968
    %v1973 = vpack.c.bf16 %v1758, %v1758
    %1974 = vrot.lane.b32.xlu0 %v1455, 64
    %v1975 = vpop.permute.xlu0 %1974
    %v1977 = vsel %vm105, %v1973, 0
    %v1980 = vsel %vm614, %v1975, 0
    %1982 = vmatprep.subr.bf16.mxu0 0
    %1983 = vmatpush1.bf16.msra.mxu0 %v1980
    %1984 = vmatprep.subr.bf16.mxu0 0
    %1985 = vmatpush1.bf16.msra.mxu0 0
    %1986 = vmatprep.subr.bf16.mxu0 0
    %1987 = vmatpush1.bf16.msra.mxu0 0
    %1988 = vmatprep.subr.bf16.mxu0 0
    %1989 = vmatpush1.bf16.msra.mxu0 0
    %1990 = vmatprep.subr.bf16.mxu0 0
    %1991 = vmatpush1.bf16.msra.mxu0 0
    %1992 = vmatprep.subr.bf16.mxu0 0
    %1993 = vmatpush1.bf16.msra.mxu0 0
    %1994 = vmatprep.subr.bf16.mxu0 0
    %1995 = vmatpush1.bf16.msra.mxu0 0
    %1996 = vmatprep.subr.bf16.mxu0 0
    %1997 = vmatpush1.bf16.msra.mxu0 0
    %1998 = vmatprep.subr.bf16.mxu0 0
    %1999 = vmatpush1.bf16.msra.mxu0 0
    %2000 = vmatprep.subr.bf16.mxu0 0
    %2001 = vmatpush1.bf16.msra.mxu0 0
    %2002 = vmatprep.subr.bf16.mxu0 0
    %2003 = vmatpush1.bf16.msra.mxu0 0
    %2004 = vmatprep.subr.bf16.mxu0 0
    %2005 = vmatpush1.bf16.msra.mxu0 0
    %2006 = vmatprep.subr.bf16.mxu0 0
    %2007 = vmatpush1.bf16.msra.mxu0 0
    %2008 = vmatprep.subr.bf16.mxu0 0
    %2009 = vmatpush1.bf16.msra.mxu0 0
    %2010 = vmatprep.subr.bf16.mxu0 0
    %2011 = vmatpush1.bf16.msra.mxu0 0
    %2012 = vmatprep.subr.bf16.mxu0 0
    %2013 = vmatpush1.bf16.msra.mxu0 0
    %2014 = vmatprep.mubr.bf16.mxu0 0
    %2015 = vmatmul.mubr.bf16.gmra.mrb[0].mxu0 %v1977
    %v2016 = vpop.f32.mrb[0].mxu0
    %v2017 = vadd.f32 0.0, %v2016
    %v2018 = vpop.f32.mrb[0].mxu0
    %v2019 = vpop.f32.mrb[0].mxu0
    %v2020 = vpop.f32.mrb[0].mxu0
    %2021 = vdwg.mxu0
    %v2022 = vpack.c.bf16 %v1759, %v1759
    %2023 = vrot.lane.b32.xlu0 %v1455, 56
    %v2024 = vpop.permute.xlu0 %2023
    %v2026 = vsel %vm105, %v2022, 0
    %v2029 = vsel %vm614, %v2024, 0
    %2031 = vmatprep.subr.bf16.mxu0 0
    %2032 = vmatpush1.bf16.msra.mxu0 %v2029
    %2033 = vmatprep.subr.bf16.mxu0 0
    %2034 = vmatpush1.bf16.msra.mxu0 0
    %2035 = vmatprep.subr.bf16.mxu0 0
    %2036 = vmatpush1.bf16.msra.mxu0 0
    %2037 = vmatprep.subr.bf16.mxu0 0
    %2038 = vmatpush1.bf16.msra.mxu0 0
    %2039 = vmatprep.subr.bf16.mxu0 0
    %2040 = vmatpush1.bf16.msra.mxu0 0
    %2041 = vmatprep.subr.bf16.mxu0 0
    %2042 = vmatpush1.bf16.msra.mxu0 0
    %2043 = vmatprep.subr.bf16.mxu0 0
    %2044 = vmatpush1.bf16.msra.mxu0 0
    %2045 = vmatprep.subr.bf16.mxu0 0
    %2046 = vmatpush1.bf16.msra.mxu0 0
    %2047 = vmatprep.subr.bf16.mxu0 0
    %2048 = vmatpush1.bf16.msra.mxu0 0
    %2049 = vmatprep.subr.bf16.mxu0 0
    %2050 = vmatpush1.bf16.msra.mxu0 0
    %2051 = vmatprep.subr.bf16.mxu0 0
    %2052 = vmatpush1.bf16.msra.mxu0 0
    %2053 = vmatprep.subr.bf16.mxu0 0
    %2054 = vmatpush1.bf16.msra.mxu0 0
    %2055 = vmatprep.subr.bf16.mxu0 0
    %2056 = vmatpush1.bf16.msra.mxu0 0
    %2057 = vmatprep.subr.bf16.mxu0 0
    %2058 = vmatpush1.bf16.msra.mxu0 0
    %2059 = vmatprep.subr.bf16.mxu0 0
    %2060 = vmatpush1.bf16.msra.mxu0 0
    %2061 = vmatprep.subr.bf16.mxu0 0
    %2062 = vmatpush1.bf16.msra.mxu0 0
    %2063 = vmatprep.mubr.bf16.mxu0 0
    %2064 = vmatmul.mubr.bf16.gmra.mrb[0].mxu0 %v2026
    %v2065 = vpop.f32.mrb[0].mxu0
    %v2066 = vadd.f32 0.0, %v2065
    %v2067 = vpop.f32.mrb[0].mxu0
    %v2068 = vpop.f32.mrb[0].mxu0
    %v2069 = vpop.f32.mrb[0].mxu0
    %2070 = vdwg.mxu0
    %v2071 = vpack.c.bf16 %v1760, %v1760
    %2072 = vrot.lane.b32.xlu0 %v1455, 48
    %v2073 = vpop.permute.xlu0 %2072
    %v2075 = vsel %vm105, %v2071, 0
    %v2078 = vsel %vm614, %v2073, 0
    %2080 = vmatprep.subr.bf16.mxu0 0
    %2081 = vmatpush1.bf16.msra.mxu0 %v2078
    %2082 = vmatprep.subr.bf16.mxu0 0
    %2083 = vmatpush1.bf16.msra.mxu0 0
    %2084 = vmatprep.subr.bf16.mxu0 0
    %2085 = vmatpush1.bf16.msra.mxu0 0
    %2086 = vmatprep.subr.bf16.mxu0 0
    %2087 = vmatpush1.bf16.msra.mxu0 0
    %2088 = vmatprep.subr.bf16.mxu0 0
    %2089 = vmatpush1.bf16.msra.mxu0 0
    %2090 = vmatprep.subr.bf16.mxu0 0
    %2091 = vmatpush1.bf16.msra.mxu0 0
    %2092 = vmatprep.subr.bf16.mxu0 0
    %2093 = vmatpush1.bf16.msra.mxu0 0
    %2094 = vmatprep.subr.bf16.mxu0 0
    %2095 = vmatpush1.bf16.msra.mxu0 0
    %2096 = vmatprep.subr.bf16.mxu0 0
    %2097 = vmatpush1.bf16.msra.mxu0 0
    %2098 = vmatprep.subr.bf16.mxu0 0
    %2099 = vmatpush1.bf16.msra.mxu0 0
    %2100 = vmatprep.subr.bf16.mxu0 0
    %2101 = vmatpush1.bf16.msra.mxu0 0
    %2102 = vmatprep.subr.bf16.mxu0 0
    %2103 = vmatpush1.bf16.msra.mxu0 0
    %2104 = vmatprep.subr.bf16.mxu0 0
    %2105 = vmatpush1.bf16.msra.mxu0 0
    %2106 = vmatprep.subr.bf16.mxu0 0
    %2107 = vmatpush1.bf16.msra.mxu0 0
    %2108 = vmatprep.subr.bf16.mxu0 0
    %2109 = vmatpush1.bf16.msra.mxu0 0
    %2110 = vmatprep.subr.bf16.mxu0 0
    %2111 = vmatpush1.bf16.msra.mxu0 0
    %2112 = vmatprep.mubr.bf16.mxu0 0
    %2113 = vmatmul.mubr.bf16.gmra.mrb[0].mxu0 %v2075
    %v2114 = vpop.f32.mrb[0].mxu0
    %v2115 = vadd.f32 0.0, %v2114
    %v2116 = vpop.f32.mrb[0].mxu0
    %v2117 = vpop.f32.mrb[0].mxu0
    %v2118 = vpop.f32.mrb[0].mxu0
    %2119 = vdwg.mxu0
    %v2120 = vpack.c.bf16 %v1761, %v1761
    %2121 = vrot.lane.b32.xlu0 %v1455, 40
    %v2122 = vpop.permute.xlu0 %2121
    %v2124 = vsel %vm105, %v2120, 0
    %v2127 = vsel %vm614, %v2122, 0
    %2129 = vmatprep.subr.bf16.mxu0 0
    %2130 = vmatpush1.bf16.msra.mxu0 %v2127
    %2131 = vmatprep.subr.bf16.mxu0 0
    %2132 = vmatpush1.bf16.msra.mxu0 0
    %2133 = vmatprep.subr.bf16.mxu0 0
    %2134 = vmatpush1.bf16.msra.mxu0 0
    %2135 = vmatprep.subr.bf16.mxu0 0
    %2136 = vmatpush1.bf16.msra.mxu0 0
    %2137 = vmatprep.subr.bf16.mxu0 0
    %2138 = vmatpush1.bf16.msra.mxu0 0
    %2139 = vmatprep.subr.bf16.mxu0 0
    %2140 = vmatpush1.bf16.msra.mxu0 0
    %2141 = vmatprep.subr.bf16.mxu0 0
    %2142 = vmatpush1.bf16.msra.mxu0 0
    %2143 = vmatprep.subr.bf16.mxu0 0
    %2144 = vmatpush1.bf16.msra.mxu0 0
    %2145 = vmatprep.subr.bf16.mxu0 0
    %2146 = vmatpush1.bf16.msra.mxu0 0
    %2147 = vmatprep.subr.bf16.mxu0 0
    %2148 = vmatpush1.bf16.msra.mxu0 0
    %2149 = vmatprep.subr.bf16.mxu0 0
    %2150 = vmatpush1.bf16.msra.mxu0 0
    %2151 = vmatprep.subr.bf16.mxu0 0
    %2152 = vmatpush1.bf16.msra.mxu0 0
    %2153 = vmatprep.subr.bf16.mxu0 0
    %2154 = vmatpush1.bf16.msra.mxu0 0
    %2155 = vmatprep.subr.bf16.mxu0 0
    %2156 = vmatpush1.bf16.msra.mxu0 0
    %2157 = vmatprep.subr.bf16.mxu0 0
    %2158 = vmatpush1.bf16.msra.mxu0 0
    %2159 = vmatprep.subr.bf16.mxu0 0
    %2160 = vmatpush1.bf16.msra.mxu0 0
    %2161 = vmatprep.mubr.bf16.mxu0 0
    %2162 = vmatmul.mubr.bf16.gmra.mrb[0].mxu0 %v2124
    %v2163 = vpop.f32.mrb[0].mxu0
    %v2164 = vadd.f32 0.0, %v2163
    %v2165 = vpop.f32.mrb[0].mxu0
    %v2166 = vpop.f32.mrb[0].mxu0
    %v2167 = vpop.f32.mrb[0].mxu0
    %2168 = vdwg.mxu0
    %2170 = vrot.lane.b32.xlu0 %v2066, 8
    %v2171 = vpop.permute.xlu0 %2170
    %2174 = vrot.lane.b32.xlu0 %v2115, 16
    %v2175 = vpop.permute.xlu0 %2174
    %2178 = vrot.lane.b32.xlu0 %v2164, 24
    %v2179 = vpop.permute.xlu0 %2178
    %v2181 = vsel %vm105, %v2017, %v2171
    %v2182 = vsel %vm818, %v2181, %v2175
    %v2183 = vsel %vm820, %v2182, %v2179
    %v2184 = vpack.c.bf16 %v2183, %v1972
    %v2186 = vsel %vm56, %v2184, 0
    %2188 = vmatprep.subr.bf16.mxu0 0
    %2189 = vmatpush1.bf16.msra.mxu0 %v27
    %2190 = vmatprep.subr.bf16.mxu0 0
    %2191 = vmatpush1.bf16.msra.mxu0 %v28
    %2192 = vmatprep.subr.bf16.mxu0 0
    %2193 = vmatpush1.bf16.msra.mxu0 0
    %2194 = vmatprep.subr.bf16.mxu0 0
    %2195 = vmatpush1.bf16.msra.mxu0 0
    %2196 = vmatprep.subr.bf16.mxu0 0
    %2197 = vmatpush1.bf16.msra.mxu0 0
    %2198 = vmatprep.subr.bf16.mxu0 0
    %2199 = vmatpush1.bf16.msra.mxu0 0
    %2200 = vmatprep.subr.bf16.mxu0 0
    %2201 = vmatpush1.bf16.msra.mxu0 0
    %2202 = vmatprep.subr.bf16.mxu0 0
    %2203 = vmatpush1.bf16.msra.mxu0 0
    %2204 = vmatprep.subr.bf16.mxu0 0
    %2205 = vmatpush1.bf16.msra.mxu0 0
    %2206 = vmatprep.subr.bf16.mxu0 0
    %2207 = vmatpush1.bf16.msra.mxu0 0
    %2208 = vmatprep.subr.bf16.mxu0 0
    %2209 = vmatpush1.bf16.msra.mxu0 0
    %2210 = vmatprep.subr.bf16.mxu0 0
    %2211 = vmatpush1.bf16.msra.mxu0 0
    %2212 = vmatprep.subr.bf16.mxu0 0
    %2213 = vmatpush1.bf16.msra.mxu0 0
    %2214 = vmatprep.subr.bf16.mxu0 0
    %2215 = vmatpush1.bf16.msra.mxu0 0
    %2216 = vmatprep.subr.bf16.mxu0 0
    %2217 = vmatpush1.bf16.msra.mxu0 0
    %2218 = vmatprep.subr.bf16.mxu0 0
    %2219 = vmatpush1.bf16.msra.mxu0 0
    %2220 = vmatprep.mubr.bf16.mxu0 0
    %2221 = vmatmul.mubr.bf16.gmra.mrb[0].mxu0 %v2186
    %v2222 = vpop.f32.mrb[0].mxu0
    %v2223 = vadd.f32 0.0, %v2222
    %v2224 = vpop.f32.mrb[0].mxu0
    %v2225 = vpop.f32.mrb[0].mxu0
    %v2226 = vadd.f32 0.0, %v2225
    %v2227 = vpop.f32.mrb[0].mxu0
    %2228 = vdwg.mxu0
    %v2229 = vadd.f32 %v2223, %v1162
    %v2230 = vadd.f32 %v2226, %v1162
    %2233 = vrot.lane.b32.xlu0 %v2229, 32
    %v2234 = vpop.permute.xlu0 %2233
    %2235 = vrot.lane.b32.xlu0 %v2230, 32
    %v2236 = vpop.permute.xlu0 %2235
    %v2239 = vsel %vm56, %v2234, 0.0
    %2240 = vadd.xlane.f32.xlu0 %v2239
    %v2241 = vpop.xlane.xlu0 %2240
    %v2242 = vsel %vm56, %v2236, 0.0
    %2243 = vadd.xlane.f32.xlu0 %v2242
    %v2244 = vpop.xlane.xlu0 %2243
    %v2245 = vmul.f32 %v2241, 0.03125
    %v2246 = vmul.f32 %v2244, 0.03125
    %v2247 = vsub.f32 %v2229, %v2245
    %v2248 = vsub.f32 %v2230, %v2246
    %v2249 = vmul.f32 %v2247, %v2247
    %v2250 = vmul.f32 %v2248, %v2248
    %2253 = vrot.lane.b32.xlu0 %v2249, 32
    %v2254 = vpop.permute.xlu0 %2253
    %2255 = vrot.lane.b32.xlu0 %v2250, 32
    %v2256 = vpop.permute.xlu0 %2255
    %v2259 = vsel %vm56, %v2254, 0.0
    %2260 = vadd.xlane.f32.xlu0 %v2259
    %v2261 = vpop.xlane.xlu0 %2260
    %v2262 = vsel %vm56, %v2256, 0.0
    %2263 = vadd.xlane.f32.xlu0 %v2262
    %v2264 = vpop.xlane.xlu0 %2263
    %v2265 = vmul.f32 %v2261, 0.032258064
    %v2266 = vmul.f32 %v2264, 0.032258064
    %v2267 = vrsqrt.pop %v2265
    %v2268 = vmul.f32 %v2265, %v2267
    %vm2269 = vcmp.eq.f32.partialorder %v2265, inf
    %v2270 = vsel %vm2269, %v2265, %v2268
    %vm2271 = vcmp.eq.f32.partialorder %v2265, 0.0
    %v2272 = vand.u32 %v2265, 2147483648
    %v2273 = vsel %vm2271, %v2272, %v2270
    %v2274 = vrsqrt.pop %v2266
    %v2275 = vmul.f32 %v2266, %v2274
    %vm2276 = vcmp.eq.f32.partialorder %v2266, inf
    %v2277 = vsel %vm2276, %v2266, %v2275
    %vm2278 = vcmp.eq.f32.partialorder %v2266, 0.0
    %v2279 = vand.u32 %v2266, 2147483648
    %v2280 = vsel %vm2278, %v2279, %v2277
    %v2281 = vadd.f32 %v2273, 1e-06
    %v2282 = vadd.f32 %v2280, 1e-06
    %v2283 = vrcp.pop %v2281
    %v2284 = vrcp.pop %v2282
    %2287 = vrot.lane.b32.xlu0 %v2247, 64
    %v2288 = vpop.permute.xlu0 %2287
    %2289 = vrot.lane.b32.xlu0 %v2248, 64
    %v2290 = vpop.permute.xlu0 %2289
    %v2293 = vmul.f32 %v1137, %v2288
    %v2294 = vmul.f32 %v1137, %v2290
    %v2295 = vmul.f32 %v2293, %v2283
    %v2296 = vmul.f32 %v2294, %v2284
    %v2297 = vadd.f32 %v2295, %v1153
    %v2298 = vadd.f32 %v2296, %v1153
    %2301 = vrot.lane.b32.xlu0 %v2297, 96
    %v2302 = vpop.permute.xlu0 %2301
    %2303 = vrot.lane.b32.xlu0 %v2298, 96
    %v2304 = vpop.permute.xlu0 %2303
    %v2307 = vadd.f32 %v1156, %v2302
    %v2308 = vadd.f32 %v1157, %v2304
    %v2309 = vpack.c.bf16 %v2308, %v2307
    %v2310 = vlaneseq
    %v2311 = vshrl.u32 %v2310, 7
    %v2312 = vsub.s32 2, %v2311
    %v2313 = vrot.slane %v16, %v2312
    %v2315 = vsel %vm56, %v2309, 0
    %2317 = vmatprep.subr.bf16.mxu0 0
    %2318 = vmatpush1.bf16.msra.mxu0 %v33
    %2319 = vmatprep.subr.bf16.mxu0 0
    %2320 = vmatpush1.bf16.msra.mxu0 %v34
    %2321 = vmatprep.subr.bf16.mxu0 0
    %2322 = vmatpush1.bf16.msra.mxu0 0
    %2323 = vmatprep.subr.bf16.mxu0 0
    %2324 = vmatpush1.bf16.msra.mxu0 0
    %2325 = vmatprep.subr.bf16.mxu0 0
    %2326 = vmatpush1.bf16.msra.mxu0 0
    %2327 = vmatprep.subr.bf16.mxu0 0
    %2328 = vmatpush1.bf16.msra.mxu0 0
    %2329 = vmatprep.subr.bf16.mxu0 0
    %2330 = vmatpush1.bf16.msra.mxu0 0
    %2331 = vmatprep.subr.bf16.mxu0 0
    %2332 = vmatpush1.bf16.msra.mxu0 0
    %2333 = vmatprep.subr.bf16.mxu0 0
    %2334 = vmatpush1.bf16.msra.mxu0 0
    %2335 = vmatprep.subr.bf16.mxu0 0
    %2336 = vmatpush1.bf16.msra.mxu0 0
    %2337 = vmatprep.subr.bf16.mxu0 0
    %2338 = vmatpush1.bf16.msra.mxu0 0
    %2339 = vmatprep.subr.bf16.mxu0 0
    %2340 = vmatpush1.bf16.msra.mxu0 0
    %2341 = vmatprep.subr.bf16.mxu0 0
    %2342 = vmatpush1.bf16.msra.mxu0 0
    %2343 = vmatprep.subr.bf16.mxu0 0
    %2344 = vmatpush1.bf16.msra.mxu0 0
    %2345 = vmatprep.subr.bf16.mxu0 0
    %2346 = vmatpush1.bf16.msra.mxu0 0
    %2347 = vmatprep.subr.bf16.mxu0 0
    %2348 = vmatpush1.bf16.msra.mxu0 0
    %2349 = vmatprep.mubr.bf16.mxu0 0
    %2350 = vmatmul.mubr.bf16.gmra.mrb[0].mxu0 %v2315
    %v2351 = vpop.f32.mrb[0].mxu0
    %v2352 = vadd.f32 %v2313, %v2351
    %v2353 = vpop.f32.mrb[0].mxu0
    %v2354 = vpop.f32.mrb[0].mxu0
    %v2355 = vadd.f32 %v2313, %v2354
    %v2356 = vpop.f32.mrb[0].mxu0
    %2357 = vdwg.mxu0
    %v2358 = vmax.f32 %v2352, 0.0
    %v2359 = vmax.f32 %v2355, 0.0
    %v2360 = vpack.c.bf16 %v2359, %v2358
    %vm2361 = vcmask 523264
    %v2363 = vsel %vm2361, %v2360, 0
    %2365 = vmatprep.subr.bf16.mxu0 0
    %2366 = vmatpush1.bf16.msra.mxu0 %v43
    %2367 = vmatprep.subr.bf16.mxu0 0
    %2368 = vmatpush1.bf16.msra.mxu0 %v44
    %2369 = vmatprep.subr.bf16.mxu0 0
    %2370 = vmatpush1.bf16.msra.mxu0 %v45
    %2371 = vmatprep.subr.bf16.mxu0 0
    %2372 = vmatpush1.bf16.msra.mxu0 %v46
    %2373 = vmatprep.subr.bf16.mxu0 0
    %2374 = vmatpush1.bf16.msra.mxu0 0
    %2375 = vmatprep.subr.bf16.mxu0 0
    %2376 = vmatpush1.bf16.msra.mxu0 0
    %2377 = vmatprep.subr.bf16.mxu0 0
    %2378 = vmatpush1.bf16.msra.mxu0 0
    %2379 = vmatprep.subr.bf16.mxu0 0
    %2380 = vmatpush1.bf16.msra.mxu0 0
    %2381 = vmatprep.subr.bf16.mxu0 0
    %2382 = vmatpush1.bf16.msra.mxu0 0
    %2383 = vmatprep.subr.bf16.mxu0 0
    %2384 = vmatpush1.bf16.msra.mxu0 0
    %2385 = vmatprep.subr.bf16.mxu0 0
    %2386 = vmatpush1.bf16.msra.mxu0 0
    %2387 = vmatprep.subr.bf16.mxu0 0
    %2388 = vmatpush1.bf16.msra.mxu0 0
    %2389 = vmatprep.subr.bf16.mxu0 0
    %2390 = vmatpush1.bf16.msra.mxu0 0
    %2391 = vmatprep.subr.bf16.mxu0 0
    %2392 = vmatpush1.bf16.msra.mxu0 0
    %2393 = vmatprep.subr.bf16.mxu0 0
    %2394 = vmatpush1.bf16.msra.mxu0 0
    %2395 = vmatprep.subr.bf16.mxu0 0
    %2396 = vmatpush1.bf16.msra.mxu0 0
    %2397 = vmatprep.mubr.bf16.mxu0 0
    %2398 = vmatmul.mubr.bf16.gmra.mrb[0].mxu0 %v2363
    %v2399 = vpop.f32.mrb[0].mxu0
    %v2400 = vadd.f32 0.0, %v2399
    %v2401 = vpop.f32.mrb[0].mxu0
    %v2402 = vpop.f32.mrb[0].mxu0
    %v2403 = vadd.f32 0.0, %v2402
    %v2404 = vpop.f32.mrb[0].mxu0
    %2405 = vdwg.mxu0
    %2407 = vrot.lane.b32.xlu0 %v2313, 64
    %v2408 = vpop.permute.xlu0 %2407
    %v2410 = vadd.f32 %v2400, %v2408
    %v2411 = vadd.f32 %v2403, %v2408
    %v2412 = vsel %vm56, %v2410, 0.0
    %2413 = vadd.xlane.f32.xlu0 %v2412
    %v2414 = vpop.xlane.xlu0 %2413
    %v2415 = vsel %vm56, %v2411, 0.0
    %2416 = vadd.xlane.f32.xlu0 %v2415
    %v2417 = vpop.xlane.xlu0 %2416
    %v2418 = vmul.f32 %v2414, 0.03125
    %v2419 = vmul.f32 %v2417, 0.03125
    %v2420 = vsub.f32 %v2410, %v2418
    %v2421 = vsub.f32 %v2411, %v2419
    %v2422 = vmul.f32 %v2420, %v2420
    %v2423 = vmul.f32 %v2421, %v2421
    %v2424 = vsel %vm56, %v2422, 0.0
    %2425 = vadd.xlane.f32.xlu0 %v2424
    %v2426 = vpop.xlane.xlu0 %2425
    %v2427 = vsel %vm56, %v2423, 0.0
    %2428 = vadd.xlane.f32.xlu0 %v2427
    %v2429 = vpop.xlane.xlu0 %2428
    %v2430 = vmul.f32 %v2426, 0.032258064
    %v2431 = vmul.f32 %v2429, 0.032258064
    %v2432 = vrsqrt.pop %v2430
    %v2433 = vmul.f32 %v2430, %v2432
    %vm2434 = vcmp.eq.f32.partialorder %v2430, inf
    %v2435 = vsel %vm2434, %v2430, %v2433
    %vm2436 = vcmp.eq.f32.partialorder %v2430, 0.0
    %v2437 = vand.u32 %v2430, 2147483648
    %v2438 = vsel %vm2436, %v2437, %v2435
    %v2439 = vrsqrt.pop %v2431
    %v2440 = vmul.f32 %v2431, %v2439
    %vm2441 = vcmp.eq.f32.partialorder %v2431, inf
    %v2442 = vsel %vm2441, %v2431, %v2440
    %vm2443 = vcmp.eq.f32.partialorder %v2431, 0.0
    %v2444 = vand.u32 %v2431, 2147483648
    %v2445 = vsel %vm2443, %v2444, %v2442
    %v2446 = vadd.f32 %v2438, 1e-06
    %v2447 = vadd.f32 %v2445, 1e-06
    %v2448 = vrcp.pop %v2446
    %v2449 = vrcp.pop %v2447
    %2452 = vrot.lane.b32.xlu0 %v2420, 64
    %v2453 = vpop.permute.xlu0 %2452
    %2454 = vrot.lane.b32.xlu0 %v2421, 64
    %v2455 = vpop.permute.xlu0 %2454
    %v2458 = vmul.f32 %v1137, %v2453
    %v2459 = vmul.f32 %v1137, %v2455
    %v2460 = vmul.f32 %v2458, %v2448
    %v2461 = vmul.f32 %v2459, %v2449
    %v2462 = vadd.f32 %v2460, %v1153
    %v2463 = vadd.f32 %v2461, %v1153
    %2466 = vrot.lane.b32.xlu0 %v2462, 64
    %v2467 = vpop.permute.xlu0 %2466
    %2468 = vrot.lane.b32.xlu0 %v2463, 64
    %v2469 = vpop.permute.xlu0 %2468
    %v2472 = vadd.f32 %v2307, %v2467
    %v2473 = vadd.f32 %v2308, %v2469
    %2474 = vst.msk [vmem:[#allocation2] sm:$0xff] %vm56, %v2472
    %2475 = vst.msk [vmem:[#allocation2 + $0x8] sm:$0xff] %vm56, %v2473
    // Predicated region
    $region14: #{decoder_layer.1} parent=1 // pred_check
      _
    $region15: #{decoder_layer.1} parent=1 // pred_check_branch
      %2477 = sbr.rel (0) target = $region17
    $region16: #{decoder_layer.1} parent=1 // pred_region
      %s2479 = ssub.s32 256, 256
      %2480 = vsyncadd [#allocation3], %s2479
      %s2481 = sshll.u32 [#allocation2], 4
      %s2482 = int_to_ptr.vmem [resolvable:$true] %s2481
      %2487 = dma.vmem_to_hbm [thread:$0]  %s2482, 256, %s3, [#allocation3], 128, 128, 8
    $region17: #{decoder_layer.1} parent=1 // pred_fallthru
      _
    // Predicated region
    $region18: #{decoder_layer.1} parent=1 // pred_check
      _
    $region19: #{decoder_layer.1} parent=1 // pred_check_branch
      %2489 = sbr.rel (0) target = $region21
    $region20: #{decoder_layer.1} parent=1 // pred_region
      %2490 = dma.done [#allocation3], 256
    $region21: #{decoder_layer.1} parent=1 // pred_fallthru
      _
    %2491 = vsyncpa [#allocation3], 1

</llo_original>
